<compile_context>
chip_gen: v6e
topology: v6e:2x2x1
jax: 0.10.0
libtpu: 0.0.40
codegen_flags: <defaults>
</compile_context>

<pallas_src>
import jax
import jax.numpy as jnp
import numpy as np
from jax.experimental import pallas as pl
from jax.experimental.pallas import tpu as pltpu


def _layer_norm(x, gamma, beta, eps=1e-5):
    mu = jnp.mean(x, axis=-1, keepdims=True)
    var = jnp.mean((x - mu) ** 2, axis=-1, keepdims=True)
    return (x - mu) * jax.lax.rsqrt(var + eps) * gamma + beta


def _transformer_block_kernel(
    # activations (one batch tile per grid step)
    v_ref, k_ref, qh_ref, qres_ref, mask_ref,
    # attention weights (bf16) / bias (f32)
    wv_ref, wk_ref, wq_ref, wfc_ref, bfc_ref,
    # layernorm 1
    g1_ref, be1_ref,
    # feed-forward
    w1_ref, b1_ref, w2_ref, b2_ref,
    # layernorm 2
    g2_ref, be2_ref,
    # outputs
    out_ref, attn_ref,
):
    f32 = jnp.float32
    bf16 = jnp.bfloat16

    B, H, Lk, D = v_ref.shape
    Lq = qh_ref.shape[2]
    E = qres_ref.shape[2]
    BH = B * H

    # ---- per-head linear projections (weight shared across heads) -----------
    # One dense (B*H*L, D) @ (D, D) bf16 matmul per projection; the 1/sqrt(E)
    # softmax scale is pre-folded into wq by the wrapper.
    def project(x_ref, w_ref, L):
        x = x_ref[...].reshape(BH * L, D).astype(bf16)
        y = jnp.dot(x, w_ref[...], preferred_element_type=f32)
        return y.reshape(BH, L, D).astype(bf16)

    V = project(v_ref, wv_ref, Lk)      # (B*H, Lk, D) bf16
    K = project(k_ref, wk_ref, Lk)      # (B*H, Lk, D) bf16
    Q = project(qh_ref, wq_ref, Lq)     # (B*H, Lq, D) bf16 (pre-scaled)

    # ---- attention: all heads (and the batch tile) in one batched matmul ----
    energy = jnp.einsum("bqd,bkd->bqk", Q, K,
                        preferred_element_type=f32)          # (B*H, Lq, Lk) f32
    energy = energy.reshape(B, H, Lq, Lk)

    # mask bias computed once per grid step (shared by all heads), f32
    bias = jnp.where(mask_ref[...] == 0, f32(-1e20), f32(0.0))   # (B, Lq, Lk)
    energy = energy + bias[:, None, :, :]

    m = jnp.max(energy, axis=-1, keepdims=True)
    p = jnp.exp(energy - m)
    denom = jnp.sum(p, axis=-1, keepdims=True)
    attn = p * pl.reciprocal(denom, approx=True)             # (B, H, Lq, Lk) f32

    # single lane-dense store of the probabilities for this batch tile
    attn_ref[...] = attn

    ctx = jnp.einsum("bqk,bkd->bqd",
                     attn.reshape(BH, Lq, Lk).astype(bf16), V,
                     preferred_element_type=f32)             # (B*H, Lq, D) f32
    ctx = ctx.reshape(B, H, Lq, D).astype(bf16)

    # ---- fc_out: K-split of the (E, E) projection over heads -----------------
    # sum_h ctx[:, h] @ Wfc[h*D:(h+1)*D, :]  ==  concat_h(ctx_h) @ Wfc
    # (lane-dense f32 accumulator, no concatenate, no masked narrow stores)
    attn_out = jnp.zeros((B * Lq, E), f32)
    for h in range(H):
        ch = ctx[:, h].reshape(B * Lq, D)
        attn_out = attn_out + jnp.dot(ch, wfc_ref[h],
                                      preferred_element_type=f32)
    attn_out = attn_out + bfc_ref[...]

    # ---- residual + LayerNorm 1 ----------------------------------------------
    # TODO(synk): nn.Dropout omitted (eval-mode identity).
    q_res = qres_ref[...].reshape(B * Lq, E)
    x = _layer_norm(attn_out + q_res, g1_ref[...], be1_ref[...])

    # ---- feed-forward: Linear -> ReLU -> Linear (bf16 matmuls, f32 accum) ----
    h1 = jnp.dot(x.astype(bf16), w1_ref[...],
                 preferred_element_type=f32) + b1_ref[...]
    h1 = jnp.maximum(h1, 0.0)
    ff = jnp.dot(h1.astype(bf16), w2_ref[...],
                 preferred_element_type=f32) + b2_ref[...]

    # ---- residual + LayerNorm 2 ----------------------------------------------
    out = _layer_norm(ff + x, g2_ref[...], be2_ref[...])
    out_ref[...] = out.reshape(B, Lq, E).astype(out_ref.dtype)


def transformer_block(value, key, query, mask, params, *, embed_size, heads,
                      batch_tile=1, weight_buffer_count=1):
    """value/key: (N, Lk, E); query: (N, Lq, E); mask: (N, Lq, Lk) (1=keep, 0=mask).

    `params` holds PyTorch-layout weights (nn.Linear weight is (out, in)):
      wv/wk/wq: (D, D); wfc: (E, E); bfc: (E,); w1: (F, E); b1: (F,);
      w2: (E, F); b2: (E,); g1/be1/g2/be2: (E,).
    """
    N, Lq, E = query.shape
    Lk = key.shape[1]
    H = heads
    assert E == embed_size and E % H == 0
    D = E // H
    F = params["w1"].shape[0]
    B = batch_tile
    assert N % B == 0, "batch_tile must divide the batch size"

    f32, bf16 = jnp.float32, jnp.bfloat16

    # Head-major layout built once in the wrapper: the kernel then never has to
    # reshape the lane (E) dimension.
    def to_heads(x, L):
        return x.reshape(N, L, H, D).transpose(0, 2, 1, 3).astype(f32)

    v_h = to_heads(value, Lk)            # (N, H, Lk, D)
    k_h = to_heads(key, Lk)
    q_h = to_heads(query, Lq)
    q_res = query.astype(f32)            # E-packed query for the residual add
    mask = mask.astype(f32)

    scale = 1.0 / np.sqrt(float(embed_size))
    wv = params["wv"].T.astype(bf16)                     # (D, D)
    wk = params["wk"].T.astype(bf16)
    wq = (params["wq"].T * scale).astype(bf16)           # fold 1/sqrt(E) into Wq
    wfc = params["wfc"].T.reshape(H, D, E).astype(bf16)  # per-head K-split
    bfc = params["bfc"].reshape(1, E).astype(f32)
    g1 = params["g1"].reshape(1, E).astype(f32)
    be1 = params["be1"].reshape(1, E).astype(f32)
    w1 = params["w1"].T.astype(bf16)                     # (E, F)
    b1 = params["b1"].reshape(1, F).astype(f32)
    w2 = params["w2"].T.astype(bf16)                     # (F, E)
    b2 = params["b2"].reshape(1, E).astype(f32)
    g2 = params["g2"].reshape(1, E).astype(f32)
    be2 = params["be2"].reshape(1, E).astype(f32)

    def run(weight_mode):
        def wspec(shape):
            zero = lambda n: (0,) * len(shape)
            if weight_mode is None:
                return pl.BlockSpec(shape, zero)
            # Weight block index never changes -> single buffering frees VMEM.
            return pl.BlockSpec(shape, zero, pipeline_mode=weight_mode)

        in_specs = [
            pl.BlockSpec((B, H, Lk, D), lambda n: (n, 0, 0, 0)),   # value
            pl.BlockSpec((B, H, Lk, D), lambda n: (n, 0, 0, 0)),   # key
            pl.BlockSpec((B, H, Lq, D), lambda n: (n, 0, 0, 0)),   # query (heads)
            pl.BlockSpec((B, Lq, E), lambda n: (n, 0, 0)),         # query (residual)
            pl.BlockSpec((B, Lq, Lk), lambda n: (n, 0, 0)),        # mask
            wspec((D, D)), wspec((D, D)), wspec((D, D)),           # wv, wk, wq
            wspec((H, D, E)), wspec((1, E)),                       # wfc, bfc
            wspec((1, E)), wspec((1, E)),                          # g1, be1
            wspec((E, F)), wspec((1, F)),                          # w1, b1
            wspec((F, E)), wspec((1, E)),                          # w2, b2
            wspec((1, E)), wspec((1, E)),                          # g2, be2
        ]
        out_specs = [
            pl.BlockSpec((B, Lq, E), lambda n: (n, 0, 0)),
            pl.BlockSpec((B, H, Lq, Lk), lambda n: (n, 0, 0, 0)),
        ]
        out_shape = [
            jax.ShapeDtypeStruct((N, Lq, E), f32),
            jax.ShapeDtypeStruct((N, H, Lq, Lk), f32),
        ]
        return pl.pallas_call(
            _transformer_block_kernel,
            grid=(N // B,),
            in_specs=in_specs,
            out_specs=out_specs,
            out_shape=out_shape,
            compiler_params=pltpu.CompilerParams(
                dimension_semantics=("parallel",),
                vmem_limit_bytes=48 * 1024 * 1024),
        )(v_h, k_h, q_h, q_res, mask,
          wv, wk, wq, wfc, bfc, g1, be1, w1, b1, w2, b2, g2, be2)

    if weight_buffer_count is None:
        return run(None)
    try:
        return run(pl.Buffered(weight_buffer_count))
    except Exception:
        # TODO(synk): this Pallas build rejected the single-buffer pipeline hint;
        # fall back to default double-buffered weight operands.
        return run(None)


def _reference(value, key, query, mask, p, *, embed_size, heads):
    """Pure-JAX float32 replication of the PyTorch forward (eval mode)."""
    N, Lq, E = query.shape
    Lk = key.shape[1]
    D = E // heads

    v = value.reshape(N, Lk, heads, D) @ p["wv"].T
    k = key.reshape(N, Lk, heads, D) @ p["wk"].T
    q = query.reshape(N, Lq, heads, D) @ p["wq"].T

    energy = jnp.einsum("nqhd,nkhd->nhqk", q, k)
    energy = jnp.where(mask[:, None, :, :] == 0, -1e20, energy)
    attn = jax.nn.softmax(energy / jnp.sqrt(jnp.float32(E)), axis=3)
    out = jnp.einsum("nhql,nlhd->nqhd", attn, v).reshape(N, Lq, E)
    out = out @ p["wfc"].T + p["bfc"]

    def ln(x, g, b, eps=1e-5):
        mu = jnp.mean(x, axis=-1, keepdims=True)
        var = jnp.mean((x - mu) ** 2, axis=-1, keepdims=True)
        return (x - mu) * jax.lax.rsqrt(var + eps) * g + b

    x = ln(out + query, p["g1"], p["be1"])
    ff = jnp.maximum(x @ p["w1"].T + p["b1"], 0.0) @ p["w2"].T + p["b2"]
    o = ln(ff + x, p["g2"], p["be2"])
    return o, attn


if __name__ == "__main__":
    N, Lq, Lk = 2, 8, 8
    embed_size, heads, forward_expansion = 32, 4, 4
    D = embed_size // heads
    F = forward_expansion * embed_size

    root = jax.random.PRNGKey(0)
    keys = jax.random.split(root, 16)

    def init(k, shape, fan_in):
        bound = 1.0 / np.sqrt(fan_in)
        return jax.random.uniform(k, shape, jnp.float32, -bound, bound)

    params = {
        # PyTorch nn.Linear layout: weight is (out_features, in_features).
        "wv": init(keys[0], (D, D), D),
        "wk": init(keys[1], (D, D), D),
        "wq": init(keys[2], (D, D), D),
        "wfc": init(keys[3], (embed_size, embed_size), embed_size),
        "bfc": init(keys[4], (embed_size,), embed_size),
        "w1": init(keys[5], (F, embed_size), embed_size),
        "b1": init(keys[6], (F,), embed_size),
        "w2": init(keys[7], (embed_size, F), F),
        "b2": init(keys[8], (embed_size,), F),
        "g1": jnp.ones((embed_size,), jnp.float32),
        "be1": jnp.zeros((embed_size,), jnp.float32),
        "g2": jnp.ones((embed_size,), jnp.float32),
        "be2": jnp.zeros((embed_size,), jnp.float32),
    }

    value = jax.random.normal(keys[9], (N, Lk, embed_size), jnp.float32)
    key_t = jax.random.normal(keys[10], (N, Lk, embed_size), jnp.float32)
    query = jax.random.normal(keys[11], (N, Lq, embed_size), jnp.float32)
    # causal-style mask so the masking path is exercised (1 = keep, 0 = mask)
    mask = jnp.broadcast_to(
        jnp.tril(jnp.ones((Lq, Lk), jnp.float32))[None], (N, Lq, Lk))

    # batch_tile=1 keeps 2 grid steps (megacore-friendly); raise for real sizes.
    out, attn = transformer_block(value, key_t, query, mask, params,
                                  embed_size=embed_size, heads=heads,
                                  batch_tile=1)
    out = jax.block_until_ready(out)
    attn = jax.block_until_ready(attn)

    out_expected, attn_expected = _reference(value, key_t, query, mask, params,
                                             embed_size=embed_size, heads=heads)
    # bf16 MXU matmuls (f32 accumulation) -> relaxed tolerances vs the f32 ref.
    np.testing.assert_allclose(np.asarray(attn), np.asarray(attn_expected),
                               rtol=2e-2, atol=2e-2)
    np.testing.assert_allclose(np.asarray(out), np.asarray(out_expected),
                               rtol=5e-2, atol=5e-2)
    print("KERNEL_OK")
</pallas_src>

<mosaic_0001>
module attributes {stable_mosaic.version = 11 : i64} {
  func.func @_transformer_block_kernel(%arg0: i32, %arg1: memref<1x4x8x8xf32, #tpu.memory_space<vmem>>, %arg2: memref<1x4x8x8xf32, #tpu.memory_space<vmem>>, %arg3: memref<1x4x8x8xf32, #tpu.memory_space<vmem>>, %arg4: memref<1x8x32xf32, #tpu.memory_space<vmem>>, %arg5: memref<1x8x8xf32, #tpu.memory_space<vmem>>, %arg6: memref<8x8xbf16, #tpu.memory_space<vmem>>, %arg7: memref<8x8xbf16, #tpu.memory_space<vmem>>, %arg8: memref<8x8xbf16, #tpu.memory_space<vmem>>, %arg9: memref<4x8x32xbf16, #tpu.memory_space<vmem>>, %arg10: memref<1x32xf32, #tpu.memory_space<vmem>>, %arg11: memref<1x32xf32, #tpu.memory_space<vmem>>, %arg12: memref<1x32xf32, #tpu.memory_space<vmem>>, %arg13: memref<32x128xbf16, #tpu.memory_space<vmem>>, %arg14: memref<1x128xf32, #tpu.memory_space<vmem>>, %arg15: memref<128x32xbf16, #tpu.memory_space<vmem>>, %arg16: memref<1x32xf32, #tpu.memory_space<vmem>>, %arg17: memref<1x32xf32, #tpu.memory_space<vmem>>, %arg18: memref<1x32xf32, #tpu.memory_space<vmem>>, %arg19: memref<1x8x32xf32, #tpu.memory_space<vmem>>, %arg20: memref<1x4x8x8xf32, #tpu.memory_space<vmem>>) attributes {dimension_semantics = [#tpu.dimension_semantics<parallel>], iteration_bounds = array<i64: 2>, scalar_prefetch = 0 : i64, scratch_operands = 0 : i64, tpu.core_type = #tpu.core_type<tc>, window_params = [{transform_indices = @transform_0, window_bounds = array<i64: 1, 4, 8, 8>}, {transform_indices = @transform_1, window_bounds = array<i64: 1, 4, 8, 8>}, {transform_indices = @transform_2, window_bounds = array<i64: 1, 4, 8, 8>}, {transform_indices = @transform_3, window_bounds = array<i64: 1, 8, 32>}, {transform_indices = @transform_4, window_bounds = array<i64: 1, 8, 8>}, {pipeline_mode = #tpu.pipeline_mode<synchronous>, transform_indices = @transform_5, window_bounds = array<i64: 8, 8>}, {pipeline_mode = #tpu.pipeline_mode<synchronous>, transform_indices = @transform_6, window_bounds = array<i64: 8, 8>}, {pipeline_mode = #tpu.pipeline_mode<synchronous>, transform_indices = @transform_7, window_bounds = array<i64: 8, 8>}, {pipeline_mode = #tpu.pipeline_mode<synchronous>, transform_indices = @transform_8, window_bounds = array<i64: 4, 8, 32>}, {pipeline_mode = #tpu.pipeline_mode<synchronous>, transform_indices = @transform_9, window_bounds = array<i64: 1, 32>}, {pipeline_mode = #tpu.pipeline_mode<synchronous>, transform_indices = @transform_10, window_bounds = array<i64: 1, 32>}, {pipeline_mode = #tpu.pipeline_mode<synchronous>, transform_indices = @transform_11, window_bounds = array<i64: 1, 32>}, {pipeline_mode = #tpu.pipeline_mode<synchronous>, transform_indices = @transform_12, window_bounds = array<i64: 32, 128>}, {pipeline_mode = #tpu.pipeline_mode<synchronous>, transform_indices = @transform_13, window_bounds = array<i64: 1, 128>}, {pipeline_mode = #tpu.pipeline_mode<synchronous>, transform_indices = @transform_14, window_bounds = array<i64: 128, 32>}, {pipeline_mode = #tpu.pipeline_mode<synchronous>, transform_indices = @transform_15, window_bounds = array<i64: 1, 32>}, {pipeline_mode = #tpu.pipeline_mode<synchronous>, transform_indices = @transform_16, window_bounds = array<i64: 1, 32>}, {pipeline_mode = #tpu.pipeline_mode<synchronous>, transform_indices = @transform_17, window_bounds = array<i64: 1, 32>}, {transform_indices = @transform_18, window_bounds = array<i64: 1, 8, 32>}, {transform_indices = @transform_19, window_bounds = array<i64: 1, 4, 8, 8>}]} {
    %c0 = arith.constant 0 : index
    %c0_0 = arith.constant 0 : index
    %c0_1 = arith.constant 0 : index
    %c0_2 = arith.constant 0 : index
    %0 = vector.load %arg1[%c0, %c0_0, %c0_1, %c0_2] : memref<1x4x8x8xf32, #tpu.memory_space<vmem>>, vector<1x4x8x8xf32>
    %1 = vector.shape_cast %0 : vector<1x4x8x8xf32> to vector<32x8xf32>
    %2 = arith.truncf %1 : vector<32x8xf32> to vector<32x8xbf16>
    %c0_3 = arith.constant 0 : index
    %c0_4 = arith.constant 0 : index
    %3 = vector.load %arg6[%c0_3, %c0_4] : memref<8x8xbf16, #tpu.memory_space<vmem>>, vector<8x8xbf16>
    %cst = arith.constant dense<0.000000e+00> : vector<32x8xf32>
    %4 = tpu.matmul %2, %3, %cst {dimension_numbers = #tpu.dot_dimension_numbers<[1], [0], [0], [1], [0, 0, 1, 1], [], []>} : vector<32x8xbf16>, vector<8x8xbf16>, vector<32x8xf32> -> vector<32x8xf32>
    %5 = vector.shape_cast %4 : vector<32x8xf32> to vector<4x8x8xf32>
    %6 = arith.truncf %5 : vector<4x8x8xf32> to vector<4x8x8xbf16>
    %c0_5 = arith.constant 0 : index
    %c0_6 = arith.constant 0 : index
    %c0_7 = arith.constant 0 : index
    %c0_8 = arith.constant 0 : index
    %7 = vector.load %arg2[%c0_5, %c0_6, %c0_7, %c0_8] : memref<1x4x8x8xf32, #tpu.memory_space<vmem>>, vector<1x4x8x8xf32>
    %8 = vector.shape_cast %7 : vector<1x4x8x8xf32> to vector<32x8xf32>
    %9 = arith.truncf %8 : vector<32x8xf32> to vector<32x8xbf16>
    %c0_9 = arith.constant 0 : index
    %c0_10 = arith.constant 0 : index
    %10 = vector.load %arg7[%c0_9, %c0_10] : memref<8x8xbf16, #tpu.memory_space<vmem>>, vector<8x8xbf16>
    %cst_11 = arith.constant dense<0.000000e+00> : vector<32x8xf32>
    %11 = tpu.matmul %9, %10, %cst_11 {dimension_numbers = #tpu.dot_dimension_numbers<[1], [0], [0], [1], [0, 0, 1, 1], [], []>} : vector<32x8xbf16>, vector<8x8xbf16>, vector<32x8xf32> -> vector<32x8xf32>
    %12 = vector.shape_cast %11 : vector<32x8xf32> to vector<4x8x8xf32>
    %13 = arith.truncf %12 : vector<4x8x8xf32> to vector<4x8x8xbf16>
    %c0_12 = arith.constant 0 : index
    %c0_13 = arith.constant 0 : index
    %c0_14 = arith.constant 0 : index
    %c0_15 = arith.constant 0 : index
    %14 = vector.load %arg3[%c0_12, %c0_13, %c0_14, %c0_15] : memref<1x4x8x8xf32, #tpu.memory_space<vmem>>, vector<1x4x8x8xf32>
    %15 = vector.shape_cast %14 : vector<1x4x8x8xf32> to vector<32x8xf32>
    %16 = arith.truncf %15 : vector<32x8xf32> to vector<32x8xbf16>
    %c0_16 = arith.constant 0 : index
    %c0_17 = arith.constant 0 : index
    %17 = vector.load %arg8[%c0_16, %c0_17] : memref<8x8xbf16, #tpu.memory_space<vmem>>, vector<8x8xbf16>
    %cst_18 = arith.constant dense<0.000000e+00> : vector<32x8xf32>
    %18 = tpu.matmul %16, %17, %cst_18 {dimension_numbers = #tpu.dot_dimension_numbers<[1], [0], [0], [1], [0, 0, 1, 1], [], []>} : vector<32x8xbf16>, vector<8x8xbf16>, vector<32x8xf32> -> vector<32x8xf32>
    %19 = vector.shape_cast %18 : vector<32x8xf32> to vector<4x8x8xf32>
    %20 = arith.truncf %19 : vector<4x8x8xf32> to vector<4x8x8xbf16>
    "tpu.trace_start"() <{level = 10 : i32, message = "bqd,bkd->bqk"}> : () -> ()
    %cst_19 = arith.constant dense<0.000000e+00> : vector<4x8x8xf32>
    %21 = tpu.matmul %20, %13, %cst_19 {dimension_numbers = #tpu.dot_dimension_numbers<[2], [2], [1], [1], [0, 0, 0, 1, 1, 1], [0], [0]>} : vector<4x8x8xbf16>, vector<4x8x8xbf16>, vector<4x8x8xf32> -> vector<4x8x8xf32>
    "tpu.trace_stop"() : () -> ()
    %22 = vector.shape_cast %21 : vector<4x8x8xf32> to vector<1x4x8x8xf32>
    %c0_20 = arith.constant 0 : index
    %c0_21 = arith.constant 0 : index
    %c0_22 = arith.constant 0 : index
    %23 = vector.load %arg5[%c0_20, %c0_21, %c0_22] : memref<1x8x8xf32, #tpu.memory_space<vmem>>, vector<1x8x8xf32>
    %cst_23 = arith.constant 0.000000e+00 : f32
    %24 = vector.broadcast %cst_23 : f32 to vector<1x8x8xf32>
    %25 = arith.cmpf oeq, %23, %24 : vector<1x8x8xf32>
    %cst_24 = arith.constant -1.000000e+20 : f32
    %cst_25 = arith.constant 0.000000e+00 : f32
    %26 = vector.broadcast %cst_24 : f32 to vector<1x8x8xf32>
    %27 = vector.broadcast %cst_25 : f32 to vector<1x8x8xf32>
    %28 = arith.select %25, %26, %27 : vector<1x8x8xi1>, vector<1x8x8xf32>
    %29 = vector.shape_cast %28 : vector<1x8x8xf32> to vector<1x1x8x8xf32>
    %30 = vector.broadcast %29 : vector<1x1x8x8xf32> to vector<1x4x8x8xf32>
    %31 = arith.addf %22, %30 : vector<1x4x8x8xf32>
    %cst_26 = arith.constant dense<0xFF800000> : vector<1x4x8xf32>
    %32 = vector.multi_reduction <maximumf>, %31, %cst_26 [3] : vector<1x4x8x8xf32> to vector<1x4x8xf32>
    %33 = vector.shape_cast %32 : vector<1x4x8xf32> to vector<1x4x8x1xf32>
    %34 = vector.broadcast %33 : vector<1x4x8x1xf32> to vector<1x4x8x8xf32>
    %35 = arith.subf %31, %34 : vector<1x4x8x8xf32>
    %36 = math.exp %35 : vector<1x4x8x8xf32>
    %cst_27 = arith.constant dense<0.000000e+00> : vector<1x4x8xf32>
    %37 = vector.multi_reduction <add>, %36, %cst_27 [3] : vector<1x4x8x8xf32> to vector<1x4x8xf32>
    %38 = vector.shape_cast %37 : vector<1x4x8xf32> to vector<1x4x8x1xf32>
    %39 = tpu.reciprocal %38 {approx = true} : vector<1x4x8x1xf32> -> vector<1x4x8x1xf32>
    %40 = vector.broadcast %39 : vector<1x4x8x1xf32> to vector<1x4x8x8xf32>
    %41 = arith.mulf %36, %40 : vector<1x4x8x8xf32>
    %c0_28 = arith.constant 0 : index
    %c0_29 = arith.constant 0 : index
    %c0_30 = arith.constant 0 : index
    %c0_31 = arith.constant 0 : index
    %42 = vector.load %arg20[%c0_28, %c0_29, %c0_30, %c0_31] : memref<1x4x8x8xf32, #tpu.memory_space<vmem>>, vector<1x4x8x8xf32>
    tpu.vector_store %arg20[%c0_28, %c0_29, %c0_30, %c0_31], %41 {strides = array<i32>} : memref<1x4x8x8xf32, #tpu.memory_space<vmem>>, vector<1x4x8x8xf32>,
    %43 = vector.shape_cast %41 : vector<1x4x8x8xf32> to vector<4x8x8xf32>
    %44 = arith.truncf %43 : vector<4x8x8xf32> to vector<4x8x8xbf16>
    "tpu.trace_start"() <{level = 10 : i32, message = "bqk,bkd->bqd"}> : () -> ()
    %cst_32 = arith.constant dense<0.000000e+00> : vector<4x8x8xf32>
    %45 = tpu.matmul %44, %6, %cst_32 {dimension_numbers = #tpu.dot_dimension_numbers<[2], [1], [1], [2], [0, 0, 0, 1, 1, 2], [0], [0]>} : vector<4x8x8xbf16>, vector<4x8x8xbf16>, vector<4x8x8xf32> -> vector<4x8x8xf32>
    "tpu.trace_stop"() : () -> ()
    %46 = vector.shape_cast %45 : vector<4x8x8xf32> to vector<1x4x8x8xf32>
    %47 = arith.truncf %46 : vector<1x4x8x8xf32> to vector<1x4x8x8xbf16>
    %cst_33 = arith.constant 0.000000e+00 : f32
    %48 = vector.broadcast %cst_33 : f32 to vector<8x32xf32>
    %49 = vector.extract_strided_slice %47 {offsets = [0, 0, 0, 0], sizes = [1, 1, 8, 8], strides = [1, 1, 1, 1]} : vector<1x4x8x8xbf16> to vector<1x1x8x8xbf16>
    %50 = vector.shape_cast %49 : vector<1x1x8x8xbf16> to vector<1x8x8xbf16>
    %51 = vector.shape_cast %50 : vector<1x8x8xbf16> to vector<8x8xbf16>
    %c0_34 = arith.constant 0 : index
    %c0_35 = arith.constant 0 : index
    %c0_36 = arith.constant 0 : index
    %52 = vector.load %arg9[%c0_34, %c0_35, %c0_36] : memref<4x8x32xbf16, #tpu.memory_space<vmem>>, vector<1x8x32xbf16>
    %53 = vector.shape_cast %52 : vector<1x8x32xbf16> to vector<8x32xbf16>
    %cst_37 = arith.constant dense<0.000000e+00> : vector<8x32xf32>
    %54 = tpu.matmul %51, %53, %cst_37 {dimension_numbers = #tpu.dot_dimension_numbers<[1], [0], [0], [1], [0, 0, 1, 1], [], []>} : vector<8x8xbf16>, vector<8x32xbf16>, vector<8x32xf32> -> vector<8x32xf32>
    %55 = arith.addf %48, %54 : vector<8x32xf32>
    %56 = vector.extract_strided_slice %47 {offsets = [0, 1, 0, 0], sizes = [1, 1, 8, 8], strides = [1, 1, 1, 1]} : vector<1x4x8x8xbf16> to vector<1x1x8x8xbf16>
    %57 = vector.shape_cast %56 : vector<1x1x8x8xbf16> to vector<1x8x8xbf16>
    %58 = vector.shape_cast %57 : vector<1x8x8xbf16> to vector<8x8xbf16>
    %c1 = arith.constant 1 : index
    %c0_38 = arith.constant 0 : index
    %c0_39 = arith.constant 0 : index
    %59 = vector.load %arg9[%c1, %c0_38, %c0_39] : memref<4x8x32xbf16, #tpu.memory_space<vmem>>, vector<1x8x32xbf16>
    %60 = vector.shape_cast %59 : vector<1x8x32xbf16> to vector<8x32xbf16>
    %cst_40 = arith.constant dense<0.000000e+00> : vector<8x32xf32>
    %61 = tpu.matmul %58, %60, %cst_40 {dimension_numbers = #tpu.dot_dimension_numbers<[1], [0], [0], [1], [0, 0, 1, 1], [], []>} : vector<8x8xbf16>, vector<8x32xbf16>, vector<8x32xf32> -> vector<8x32xf32>
    %62 = arith.addf %55, %61 : vector<8x32xf32>
    %63 = vector.extract_strided_slice %47 {offsets = [0, 2, 0, 0], sizes = [1, 1, 8, 8], strides = [1, 1, 1, 1]} : vector<1x4x8x8xbf16> to vector<1x1x8x8xbf16>
    %64 = vector.shape_cast %63 : vector<1x1x8x8xbf16> to vector<1x8x8xbf16>
    %65 = vector.shape_cast %64 : vector<1x8x8xbf16> to vector<8x8xbf16>
    %c2 = arith.constant 2 : index
    %c0_41 = arith.constant 0 : index
    %c0_42 = arith.constant 0 : index
    %66 = vector.load %arg9[%c2, %c0_41, %c0_42] : memref<4x8x32xbf16, #tpu.memory_space<vmem>>, vector<1x8x32xbf16>
    %67 = vector.shape_cast %66 : vector<1x8x32xbf16> to vector<8x32xbf16>
    %cst_43 = arith.constant dense<0.000000e+00> : vector<8x32xf32>
    %68 = tpu.matmul %65, %67, %cst_43 {dimension_numbers = #tpu.dot_dimension_numbers<[1], [0], [0], [1], [0, 0, 1, 1], [], []>} : vector<8x8xbf16>, vector<8x32xbf16>, vector<8x32xf32> -> vector<8x32xf32>
    %69 = arith.addf %62, %68 : vector<8x32xf32>
    %70 = vector.extract_strided_slice %47 {offsets = [0, 3, 0, 0], sizes = [1, 1, 8, 8], strides = [1, 1, 1, 1]} : vector<1x4x8x8xbf16> to vector<1x1x8x8xbf16>
    %71 = vector.shape_cast %70 : vector<1x1x8x8xbf16> to vector<1x8x8xbf16>
    %72 = vector.shape_cast %71 : vector<1x8x8xbf16> to vector<8x8xbf16>
    %c3 = arith.constant 3 : index
    %c0_44 = arith.constant 0 : index
    %c0_45 = arith.constant 0 : index
    %73 = vector.load %arg9[%c3, %c0_44, %c0_45] : memref<4x8x32xbf16, #tpu.memory_space<vmem>>, vector<1x8x32xbf16>
    %74 = vector.shape_cast %73 : vector<1x8x32xbf16> to vector<8x32xbf16>
    %cst_46 = arith.constant dense<0.000000e+00> : vector<8x32xf32>
    %75 = tpu.matmul %72, %74, %cst_46 {dimension_numbers = #tpu.dot_dimension_numbers<[1], [0], [0], [1], [0, 0, 1, 1], [], []>} : vector<8x8xbf16>, vector<8x32xbf16>, vector<8x32xf32> -> vector<8x32xf32>
    %76 = arith.addf %69, %75 : vector<8x32xf32>
    %c0_47 = arith.constant 0 : index
    %c0_48 = arith.constant 0 : index
    %77 = vector.load %arg10[%c0_47, %c0_48] : memref<1x32xf32, #tpu.memory_space<vmem>>, vector<1x32xf32>
    %78 = vector.broadcast %77 : vector<1x32xf32> to vector<8x32xf32>
    %79 = arith.addf %76, %78 : vector<8x32xf32>
    %c0_49 = arith.constant 0 : index
    %c0_50 = arith.constant 0 : index
    %c0_51 = arith.constant 0 : index
    %80 = vector.load %arg4[%c0_49, %c0_50, %c0_51] : memref<1x8x32xf32, #tpu.memory_space<vmem>>, vector<1x8x32xf32>
    %81 = vector.shape_cast %80 : vector<1x8x32xf32> to vector<8x32xf32>
    %82 = arith.addf %79, %81 : vector<8x32xf32>
    %c0_52 = arith.constant 0 : index
    %c0_53 = arith.constant 0 : index
    %83 = vector.load %arg11[%c0_52, %c0_53] : memref<1x32xf32, #tpu.memory_space<vmem>>, vector<1x32xf32>
    %c0_54 = arith.constant 0 : index
    %c0_55 = arith.constant 0 : index
    %84 = vector.load %arg12[%c0_54, %c0_55] : memref<1x32xf32, #tpu.memory_space<vmem>>, vector<1x32xf32>
    %cst_56 = arith.constant dense<0.000000e+00> : vector<8xf32>
    %85 = vector.multi_reduction <add>, %82, %cst_56 [1] : vector<8x32xf32> to vector<8xf32>
    %86 = vector.shape_cast %85 : vector<8xf32> to vector<8x1xf32>
    %cst_57 = arith.constant 3.200000e+01 : f32
    %87 = vector.broadcast %cst_57 : f32 to vector<8x1xf32>
    %88 = arith.divf %86, %87 : vector<8x1xf32>
    %89 = vector.broadcast %88 : vector<8x1xf32> to vector<8x32xf32>
    %90 = arith.subf %82, %89 : vector<8x32xf32>
    %91 = arith.mulf %90, %90 : vector<8x32xf32>
    %cst_58 = arith.constant dense<0.000000e+00> : vector<8xf32>
    %92 = vector.multi_reduction <add>, %91, %cst_58 [1] : vector<8x32xf32> to vector<8xf32>
    %93 = vector.shape_cast %92 : vector<8xf32> to vector<8x1xf32>
    %cst_59 = arith.constant 3.200000e+01 : f32
    %94 = vector.broadcast %cst_59 : f32 to vector<8x1xf32>
    %95 = arith.divf %93, %94 : vector<8x1xf32>
    %96 = vector.broadcast %88 : vector<8x1xf32> to vector<8x32xf32>
    %97 = arith.subf %82, %96 : vector<8x32xf32>
    %cst_60 = arith.constant 9.99999974E-6 : f32
    %98 = vector.broadcast %cst_60 : f32 to vector<8x1xf32>
    %99 = arith.addf %95, %98 : vector<8x1xf32>
    %100 = math.rsqrt %99 : vector<8x1xf32>
    %101 = vector.broadcast %100 : vector<8x1xf32> to vector<8x32xf32>
    %102 = arith.mulf %97, %101 : vector<8x32xf32>
    %103 = vector.broadcast %83 : vector<1x32xf32> to vector<8x32xf32>
    %104 = arith.mulf %102, %103 : vector<8x32xf32>
    %105 = vector.broadcast %84 : vector<1x32xf32> to vector<8x32xf32>
    %106 = arith.addf %104, %105 : vector<8x32xf32>
    %107 = arith.truncf %106 : vector<8x32xf32> to vector<8x32xbf16>
    %c0_61 = arith.constant 0 : index
    %c0_62 = arith.constant 0 : index
    %108 = vector.load %arg13[%c0_61, %c0_62] : memref<32x128xbf16, #tpu.memory_space<vmem>>, vector<32x128xbf16>
    %cst_63 = arith.constant dense<0.000000e+00> : vector<8x128xf32>
    %109 = tpu.matmul %107, %108, %cst_63 {dimension_numbers = #tpu.dot_dimension_numbers<[1], [0], [0], [1], [0, 0, 1, 1], [], []>} : vector<8x32xbf16>, vector<32x128xbf16>, vector<8x128xf32> -> vector<8x128xf32>
    %c0_64 = arith.constant 0 : index
    %c0_65 = arith.constant 0 : index
    %110 = vector.load %arg14[%c0_64, %c0_65] : memref<1x128xf32, #tpu.memory_space<vmem>>, vector<1x128xf32>
    %111 = vector.broadcast %110 : vector<1x128xf32> to vector<8x128xf32>
    %112 = arith.addf %109, %111 : vector<8x128xf32>
    %cst_66 = arith.constant 0.000000e+00 : f32
    %113 = vector.broadcast %cst_66 : f32 to vector<8x128xf32>
    %114 = arith.maximumf %112, %113 : vector<8x128xf32>
    %115 = arith.truncf %114 : vector<8x128xf32> to vector<8x128xbf16>
    %c0_67 = arith.constant 0 : index
    %c0_68 = arith.constant 0 : index
    %116 = vector.load %arg15[%c0_67, %c0_68] : memref<128x32xbf16, #tpu.memory_space<vmem>>, vector<128x32xbf16>
    %cst_69 = arith.constant dense<0.000000e+00> : vector<8x32xf32>
    %117 = tpu.matmul %115, %116, %cst_69 {dimension_numbers = #tpu.dot_dimension_numbers<[1], [0], [0], [1], [0, 0, 1, 1], [], []>} : vector<8x128xbf16>, vector<128x32xbf16>, vector<8x32xf32> -> vector<8x32xf32>
    %c0_70 = arith.constant 0 : index
    %c0_71 = arith.constant 0 : index
    %118 = vector.load %arg16[%c0_70, %c0_71] : memref<1x32xf32, #tpu.memory_space<vmem>>, vector<1x32xf32>
    %119 = vector.broadcast %118 : vector<1x32xf32> to vector<8x32xf32>
    %120 = arith.addf %117, %119 : vector<8x32xf32>
    %121 = arith.addf %120, %106 : vector<8x32xf32>
    %c0_72 = arith.constant 0 : index
    %c0_73 = arith.constant 0 : index
    %122 = vector.load %arg17[%c0_72, %c0_73] : memref<1x32xf32, #tpu.memory_space<vmem>>, vector<1x32xf32>
    %c0_74 = arith.constant 0 : index
    %c0_75 = arith.constant 0 : index
    %123 = vector.load %arg18[%c0_74, %c0_75] : memref<1x32xf32, #tpu.memory_space<vmem>>, vector<1x32xf32>
    %cst_76 = arith.constant dense<0.000000e+00> : vector<8xf32>
    %124 = vector.multi_reduction <add>, %121, %cst_76 [1] : vector<8x32xf32> to vector<8xf32>
    %125 = vector.shape_cast %124 : vector<8xf32> to vector<8x1xf32>
    %cst_77 = arith.constant 3.200000e+01 : f32
    %126 = vector.broadcast %cst_77 : f32 to vector<8x1xf32>
    %127 = arith.divf %125, %126 : vector<8x1xf32>
    %128 = vector.broadcast %127 : vector<8x1xf32> to vector<8x32xf32>
    %129 = arith.subf %121, %128 : vector<8x32xf32>
    %130 = arith.mulf %129, %129 : vector<8x32xf32>
    %cst_78 = arith.constant dense<0.000000e+00> : vector<8xf32>
    %131 = vector.multi_reduction <add>, %130, %cst_78 [1] : vector<8x32xf32> to vector<8xf32>
    %132 = vector.shape_cast %131 : vector<8xf32> to vector<8x1xf32>
    %cst_79 = arith.constant 3.200000e+01 : f32
    %133 = vector.broadcast %cst_79 : f32 to vector<8x1xf32>
    %134 = arith.divf %132, %133 : vector<8x1xf32>
    %135 = vector.broadcast %127 : vector<8x1xf32> to vector<8x32xf32>
    %136 = arith.subf %121, %135 : vector<8x32xf32>
    %cst_80 = arith.constant 9.99999974E-6 : f32
    %137 = vector.broadcast %cst_80 : f32 to vector<8x1xf32>
    %138 = arith.addf %134, %137 : vector<8x1xf32>
    %139 = math.rsqrt %138 : vector<8x1xf32>
    %140 = vector.broadcast %139 : vector<8x1xf32> to vector<8x32xf32>
    %141 = arith.mulf %136, %140 : vector<8x32xf32>
    %142 = vector.broadcast %122 : vector<1x32xf32> to vector<8x32xf32>
    %143 = arith.mulf %141, %142 : vector<8x32xf32>
    %144 = vector.broadcast %123 : vector<1x32xf32> to vector<8x32xf32>
    %145 = arith.addf %143, %144 : vector<8x32xf32>
    %146 = vector.shape_cast %145 : vector<8x32xf32> to vector<1x8x32xf32>
    %c0_81 = arith.constant 0 : index
    %c0_82 = arith.constant 0 : index
    %c0_83 = arith.constant 0 : index
    %147 = vector.load %arg19[%c0_81, %c0_82, %c0_83] : memref<1x8x32xf32, #tpu.memory_space<vmem>>, vector<1x8x32xf32>
    tpu.vector_store %arg19[%c0_81, %c0_82, %c0_83], %146 {strides = array<i32>} : memref<1x8x32xf32, #tpu.memory_space<vmem>>, vector<1x8x32xf32>,
    return
  }
  func.func @transform_0(%arg0: i32) -> (i32, i32, i32, i32) {
    %c0_i32 = arith.constant 0 : i32
    %c0_i32_0 = arith.constant 0 : i32
    %c0_i32_1 = arith.constant 0 : i32
    %c0_i32_2 = arith.constant 0 : i32
    return %arg0, %c0_i32, %c0_i32_0, %c0_i32_1 : i32, i32, i32, i32
  }
  func.func @transform_1(%arg0: i32) -> (i32, i32, i32, i32) {
    %c0_i32 = arith.constant 0 : i32
    %c0_i32_0 = arith.constant 0 : i32
    %c0_i32_1 = arith.constant 0 : i32
    %c0_i32_2 = arith.constant 0 : i32
    return %arg0, %c0_i32, %c0_i32_0, %c0_i32_1 : i32, i32, i32, i32
  }
  func.func @transform_2(%arg0: i32) -> (i32, i32, i32, i32) {
    %c0_i32 = arith.constant 0 : i32
    %c0_i32_0 = arith.constant 0 : i32
    %c0_i32_1 = arith.constant 0 : i32
    %c0_i32_2 = arith.constant 0 : i32
    return %arg0, %c0_i32, %c0_i32_0, %c0_i32_1 : i32, i32, i32, i32
  }
  func.func @transform_3(%arg0: i32) -> (i32, i32, i32) {
    %c0_i32 = arith.constant 0 : i32
    %c0_i32_0 = arith.constant 0 : i32
    %c0_i32_1 = arith.constant 0 : i32
    return %arg0, %c0_i32, %c0_i32_0 : i32, i32, i32
  }
  func.func @transform_4(%arg0: i32) -> (i32, i32, i32) {
    %c0_i32 = arith.constant 0 : i32
    %c0_i32_0 = arith.constant 0 : i32
    %c0_i32_1 = arith.constant 0 : i32
    return %arg0, %c0_i32, %c0_i32_0 : i32, i32, i32
  }
  func.func @transform_5(%arg0: i32) -> (i32, i32) {
    %c0_i32 = arith.constant 0 : i32
    %c0_i32_0 = arith.constant 0 : i32
    %c0_i32_1 = arith.constant 0 : i32
    return %c0_i32, %c0_i32_0 : i32, i32
  }
  func.func @transform_6(%arg0: i32) -> (i32, i32) {
    %c0_i32 = arith.constant 0 : i32
    %c0_i32_0 = arith.constant 0 : i32
    %c0_i32_1 = arith.constant 0 : i32
    return %c0_i32, %c0_i32_0 : i32, i32
  }
  func.func @transform_7(%arg0: i32) -> (i32, i32) {
    %c0_i32 = arith.constant 0 : i32
    %c0_i32_0 = arith.constant 0 : i32
    %c0_i32_1 = arith.constant 0 : i32
    return %c0_i32, %c0_i32_0 : i32, i32
  }
  func.func @transform_8(%arg0: i32) -> (i32, i32, i32) {
    %c0_i32 = arith.constant 0 : i32
    %c0_i32_0 = arith.constant 0 : i32
    %c0_i32_1 = arith.constant 0 : i32
    %c0_i32_2 = arith.constant 0 : i32
    return %c0_i32, %c0_i32_0, %c0_i32_1 : i32, i32, i32
  }
  func.func @transform_9(%arg0: i32) -> (i32, i32) {
    %c0_i32 = arith.constant 0 : i32
    %c0_i32_0 = arith.constant 0 : i32
    %c0_i32_1 = arith.constant 0 : i32
    return %c0_i32, %c0_i32_0 : i32, i32
  }
  func.func @transform_10(%arg0: i32) -> (i32, i32) {
    %c0_i32 = arith.constant 0 : i32
    %c0_i32_0 = arith.constant 0 : i32
    %c0_i32_1 = arith.constant 0 : i32
    return %c0_i32, %c0_i32_0 : i32, i32
  }
  func.func @transform_11(%arg0: i32) -> (i32, i32) {
    %c0_i32 = arith.constant 0 : i32
    %c0_i32_0 = arith.constant 0 : i32
    %c0_i32_1 = arith.constant 0 : i32
    return %c0_i32, %c0_i32_0 : i32, i32
  }
  func.func @transform_12(%arg0: i32) -> (i32, i32) {
    %c0_i32 = arith.constant 0 : i32
    %c0_i32_0 = arith.constant 0 : i32
    %c0_i32_1 = arith.constant 0 : i32
    return %c0_i32, %c0_i32_0 : i32, i32
  }
  func.func @transform_13(%arg0: i32) -> (i32, i32) {
    %c0_i32 = arith.constant 0 : i32
    %c0_i32_0 = arith.constant 0 : i32
    %c0_i32_1 = arith.constant 0 : i32
    return %c0_i32, %c0_i32_0 : i32, i32
  }
  func.func @transform_14(%arg0: i32) -> (i32, i32) {
    %c0_i32 = arith.constant 0 : i32
    %c0_i32_0 = arith.constant 0 : i32
    %c0_i32_1 = arith.constant 0 : i32
    return %c0_i32, %c0_i32_0 : i32, i32
  }
  func.func @transform_15(%arg0: i32) -> (i32, i32) {
    %c0_i32 = arith.constant 0 : i32
    %c0_i32_0 = arith.constant 0 : i32
    %c0_i32_1 = arith.constant 0 : i32
    return %c0_i32, %c0_i32_0 : i32, i32
  }
  func.func @transform_16(%arg0: i32) -> (i32, i32) {
    %c0_i32 = arith.constant 0 : i32
    %c0_i32_0 = arith.constant 0 : i32
    %c0_i32_1 = arith.constant 0 : i32
    return %c0_i32, %c0_i32_0 : i32, i32
  }
  func.func @transform_17(%arg0: i32) -> (i32, i32) {
    %c0_i32 = arith.constant 0 : i32
    %c0_i32_0 = arith.constant 0 : i32
    %c0_i32_1 = arith.constant 0 : i32
    return %c0_i32, %c0_i32_0 : i32, i32
  }
  func.func @transform_18(%arg0: i32) -> (i32, i32, i32) {
    %c0_i32 = arith.constant 0 : i32
    %c0_i32_0 = arith.constant 0 : i32
    %c0_i32_1 = arith.constant 0 : i32
    return %arg0, %c0_i32, %c0_i32_0 : i32, i32, i32
  }
  func.func @transform_19(%arg0: i32) -> (i32, i32, i32, i32) {
    %c0_i32 = arith.constant 0 : i32
    %c0_i32_0 = arith.constant 0 : i32
    %c0_i32_1 = arith.constant 0 : i32
    %c0_i32_2 = arith.constant 0 : i32
    return %arg0, %c0_i32, %c0_i32_0, %c0_i32_1 : i32, i32, i32, i32
  }
}

module attributes {stable_mosaic.version = 11 : i64} {
  func.func @_transformer_block_kernel(%arg0: i32, %arg1: memref<1x4x8x8xf32, #tpu.memory_space<vmem>>, %arg2: memref<1x4x8x8xf32, #tpu.memory_space<vmem>>, %arg3: memref<1x4x8x8xf32, #tpu.memory_space<vmem>>, %arg4: memref<1x8x32xf32, #tpu.memory_space<vmem>>, %arg5: memref<1x8x8xf32, #tpu.memory_space<vmem>>, %arg6: memref<8x8xbf16, #tpu.memory_space<vmem>>, %arg7: memref<8x8xbf16, #tpu.memory_space<vmem>>, %arg8: memref<8x8xbf16, #tpu.memory_space<vmem>>, %arg9: memref<4x8x32xbf16, #tpu.memory_space<vmem>>, %arg10: memref<1x32xf32, #tpu.memory_space<vmem>>, %arg11: memref<1x32xf32, #tpu.memory_space<vmem>>, %arg12: memref<1x32xf32, #tpu.memory_space<vmem>>, %arg13: memref<32x128xbf16, #tpu.memory_space<vmem>>, %arg14: memref<1x128xf32, #tpu.memory_space<vmem>>, %arg15: memref<128x32xbf16, #tpu.memory_space<vmem>>, %arg16: memref<1x32xf32, #tpu.memory_space<vmem>>, %arg17: memref<1x32xf32, #tpu.memory_space<vmem>>, %arg18: memref<1x32xf32, #tpu.memory_space<vmem>>, %arg19: memref<1x8x32xf32, #tpu.memory_space<vmem>>, %arg20: memref<1x4x8x8xf32, #tpu.memory_space<vmem>>) attributes {dimension_semantics = [#tpu.dimension_semantics<parallel>], iteration_bounds = array<i64: 2>, scalar_prefetch = 0 : i64, scratch_operands = 0 : i64, tpu.core_type = #tpu.core_type<tc>, window_params = [{transform_indices = @transform_0, window_bounds = array<i64: 1, 4, 8, 8>}, {transform_indices = @transform_1, window_bounds = array<i64: 1, 4, 8, 8>}, {transform_indices = @transform_2, window_bounds = array<i64: 1, 4, 8, 8>}, {transform_indices = @transform_3, window_bounds = array<i64: 1, 8, 32>}, {transform_indices = @transform_4, window_bounds = array<i64: 1, 8, 8>}, {pipeline_mode = #tpu.pipeline_mode<synchronous>, transform_indices = @transform_5, window_bounds = array<i64: 8, 8>}, {pipeline_mode = #tpu.pipeline_mode<synchronous>, transform_indices = @transform_6, window_bounds = array<i64: 8, 8>}, {pipeline_mode = #tpu.pipeline_mode<synchronous>, transform_indices = @transform_7, window_bounds = array<i64: 8, 8>}, {pipeline_mode = #tpu.pipeline_mode<synchronous>, transform_indices = @transform_8, window_bounds = array<i64: 4, 8, 32>}, {pipeline_mode = #tpu.pipeline_mode<synchronous>, transform_indices = @transform_9, window_bounds = array<i64: 1, 32>}, {pipeline_mode = #tpu.pipeline_mode<synchronous>, transform_indices = @transform_10, window_bounds = array<i64: 1, 32>}, {pipeline_mode = #tpu.pipeline_mode<synchronous>, transform_indices = @transform_11, window_bounds = array<i64: 1, 32>}, {pipeline_mode = #tpu.pipeline_mode<synchronous>, transform_indices = @transform_12, window_bounds = array<i64: 32, 128>}, {pipeline_mode = #tpu.pipeline_mode<synchronous>, transform_indices = @transform_13, window_bounds = array<i64: 1, 128>}, {pipeline_mode = #tpu.pipeline_mode<synchronous>, transform_indices = @transform_14, window_bounds = array<i64: 128, 32>}, {pipeline_mode = #tpu.pipeline_mode<synchronous>, transform_indices = @transform_15, window_bounds = array<i64: 1, 32>}, {pipeline_mode = #tpu.pipeline_mode<synchronous>, transform_indices = @transform_16, window_bounds = array<i64: 1, 32>}, {pipeline_mode = #tpu.pipeline_mode<synchronous>, transform_indices = @transform_17, window_bounds = array<i64: 1, 32>}, {transform_indices = @transform_18, window_bounds = array<i64: 1, 8, 32>}, {transform_indices = @transform_19, window_bounds = array<i64: 1, 4, 8, 8>}]} {
    %c0 = arith.constant 0 : index
    %c0_0 = arith.constant 0 : index
    %c0_1 = arith.constant 0 : index
    %c0_2 = arith.constant 0 : index
    %0 = vector.load %arg1[%c0, %c0_0, %c0_1, %c0_2] : memref<1x4x8x8xf32, #tpu.memory_space<vmem>>, vector<1x4x8x8xf32>
    %1 = vector.shape_cast %0 : vector<1x4x8x8xf32> to vector<32x8xf32>
    %2 = arith.truncf %1 : vector<32x8xf32> to vector<32x8xbf16>
    %c0_3 = arith.constant 0 : index
    %c0_4 = arith.constant 0 : index
    %3 = vector.load %arg6[%c0_3, %c0_4] : memref<8x8xbf16, #tpu.memory_space<vmem>>, vector<8x8xbf16>
    %cst = arith.constant dense<0.000000e+00> : vector<32x8xf32>
    %4 = tpu.matmul %2, %3, %cst {dimension_numbers = #tpu.dot_dimension_numbers<[1], [0], [0], [1], [0, 0, 1, 1], [], []>} : vector<32x8xbf16>, vector<8x8xbf16>, vector<32x8xf32> -> vector<32x8xf32>
    %5 = vector.shape_cast %4 : vector<32x8xf32> to vector<4x8x8xf32>
    %6 = arith.truncf %5 : vector<4x8x8xf32> to vector<4x8x8xbf16>
    %c0_5 = arith.constant 0 : index
    %c0_6 = arith.constant 0 : index
    %c0_7 = arith.constant 0 : index
    %c0_8 = arith.constant 0 : index
    %7 = vector.load %arg2[%c0_5, %c0_6, %c0_7, %c0_8] : memref<1x4x8x8xf32, #tpu.memory_space<vmem>>, vector<1x4x8x8xf32>
    %8 = vector.shape_cast %7 : vector<1x4x8x8xf32> to vector<32x8xf32>
    %9 = arith.truncf %8 : vector<32x8xf32> to vector<32x8xbf16>
    %c0_9 = arith.constant 0 : index
    %c0_10 = arith.constant 0 : index
    %10 = vector.load %arg7[%c0_9, %c0_10] : memref<8x8xbf16, #tpu.memory_space<vmem>>, vector<8x8xbf16>
    %cst_11 = arith.constant dense<0.000000e+00> : vector<32x8xf32>
    %11 = tpu.matmul %9, %10, %cst_11 {dimension_numbers = #tpu.dot_dimension_numbers<[1], [0], [0], [1], [0, 0, 1, 1], [], []>} : vector<32x8xbf16>, vector<8x8xbf16>, vector<32x8xf32> -> vector<32x8xf32>
    %12 = vector.shape_cast %11 : vector<32x8xf32> to vector<4x8x8xf32>
    %13 = arith.truncf %12 : vector<4x8x8xf32> to vector<4x8x8xbf16>
    %c0_12 = arith.constant 0 : index
    %c0_13 = arith.constant 0 : index
    %c0_14 = arith.constant 0 : index
    %c0_15 = arith.constant 0 : index
    %14 = vector.load %arg3[%c0_12, %c0_13, %c0_14, %c0_15] : memref<1x4x8x8xf32, #tpu.memory_space<vmem>>, vector<1x4x8x8xf32>
    %15 = vector.shape_cast %14 : vector<1x4x8x8xf32> to vector<32x8xf32>
    %16 = arith.truncf %15 : vector<32x8xf32> to vector<32x8xbf16>
    %c0_16 = arith.constant 0 : index
    %c0_17 = arith.constant 0 : index
    %17 = vector.load %arg8[%c0_16, %c0_17] : memref<8x8xbf16, #tpu.memory_space<vmem>>, vector<8x8xbf16>
    %cst_18 = arith.constant dense<0.000000e+00> : vector<32x8xf32>
    %18 = tpu.matmul %16, %17, %cst_18 {dimension_numbers = #tpu.dot_dimension_numbers<[1], [0], [0], [1], [0, 0, 1, 1], [], []>} : vector<32x8xbf16>, vector<8x8xbf16>, vector<32x8xf32> -> vector<32x8xf32>
    %19 = vector.shape_cast %18 : vector<32x8xf32> to vector<4x8x8xf32>
    %20 = arith.truncf %19 : vector<4x8x8xf32> to vector<4x8x8xbf16>
    "tpu.trace_start"() <{level = 10 : i32, message = "bqd,bkd->bqk"}> : () -> ()
    %cst_19 = arith.constant dense<0.000000e+00> : vector<4x8x8xf32>
    %21 = tpu.matmul %20, %13, %cst_19 {dimension_numbers = #tpu.dot_dimension_numbers<[2], [2], [1], [1], [0, 0, 0, 1, 1, 1], [0], [0]>} : vector<4x8x8xbf16>, vector<4x8x8xbf16>, vector<4x8x8xf32> -> vector<4x8x8xf32>
    "tpu.trace_stop"() : () -> ()
    %22 = vector.shape_cast %21 : vector<4x8x8xf32> to vector<1x4x8x8xf32>
    %c0_20 = arith.constant 0 : index
    %c0_21 = arith.constant 0 : index
    %c0_22 = arith.constant 0 : index
    %23 = vector.load %arg5[%c0_20, %c0_21, %c0_22] : memref<1x8x8xf32, #tpu.memory_space<vmem>>, vector<1x8x8xf32>
    %cst_23 = arith.constant 0.000000e+00 : f32
    %24 = vector.broadcast %cst_23 : f32 to vector<1x8x8xf32>
    %25 = arith.cmpf oeq, %23, %24 : vector<1x8x8xf32>
    %cst_24 = arith.constant -1.000000e+20 : f32
    %cst_25 = arith.constant 0.000000e+00 : f32
    %26 = vector.broadcast %cst_24 : f32 to vector<1x8x8xf32>
    %27 = vector.broadcast %cst_25 : f32 to vector<1x8x8xf32>
    %28 = arith.select %25, %26, %27 : vector<1x8x8xi1>, vector<1x8x8xf32>
    %29 = vector.shape_cast %28 : vector<1x8x8xf32> to vector<1x1x8x8xf32>
    %30 = vector.broadcast %29 : vector<1x1x8x8xf32> to vector<1x4x8x8xf32>
    %31 = arith.addf %22, %30 : vector<1x4x8x8xf32>
    %cst_26 = arith.constant dense<0xFF800000> : vector<1x4x8xf32>
    %32 = vector.multi_reduction <maximumf>, %31, %cst_26 [3] : vector<1x4x8x8xf32> to vector<1x4x8xf32>
    %33 = vector.shape_cast %32 : vector<1x4x8xf32> to vector<1x4x8x1xf32>
    %34 = vector.broadcast %33 : vector<1x4x8x1xf32> to vector<1x4x8x8xf32>
    %35 = arith.subf %31, %34 : vector<1x4x8x8xf32>
    %36 = math.exp %35 : vector<1x4x8x8xf32>
    %cst_27 = arith.constant dense<0.000000e+00> : vector<1x4x8xf32>
    %37 = vector.multi_reduction <add>, %36, %cst_27 [3] : vector<1x4x8x8xf32> to vector<1x4x8xf32>
    %38 = vector.shape_cast %37 : vector<1x4x8xf32> to vector<1x4x8x1xf32>
    %39 = tpu.reciprocal %38 {approx = true} : vector<1x4x8x1xf32> -> vector<1x4x8x1xf32>
    %40 = vector.broadcast %39 : vector<1x4x8x1xf32> to vector<1x4x8x8xf32>
    %41 = arith.mulf %36, %40 : vector<1x4x8x8xf32>
    %c0_28 = arith.constant 0 : index
    %c0_29 = arith.constant 0 : index
    %c0_30 = arith.constant 0 : index
    %c0_31 = arith.constant 0 : index
    %42 = vector.load %arg20[%c0_28, %c0_29, %c0_30, %c0_31] : memref<1x4x8x8xf32, #tpu.memory_space<vmem>>, vector<1x4x8x8xf32>
    tpu.vector_store %arg20[%c0_28, %c0_29, %c0_30, %c0_31], %41 {strides = array<i32>} : memref<1x4x8x8xf32, #tpu.memory_space<vmem>>, vector<1x4x8x8xf32>,
    %43 = vector.shape_cast %41 : vector<1x4x8x8xf32> to vector<4x8x8xf32>
    %44 = arith.truncf %43 : vector<4x8x8xf32> to vector<4x8x8xbf16>
    "tpu.trace_start"() <{level = 10 : i32, message = "bqk,bkd->bqd"}> : () -> ()
    %cst_32 = arith.constant dense<0.000000e+00> : vector<4x8x8xf32>
    %45 = tpu.matmul %44, %6, %cst_32 {dimension_numbers = #tpu.dot_dimension_numbers<[2], [1], [1], [2], [0, 0, 0, 1, 1, 2], [0], [0]>} : vector<4x8x8xbf16>, vector<4x8x8xbf16>, vector<4x8x8xf32> -> vector<4x8x8xf32>
    "tpu.trace_stop"() : () -> ()
    %46 = vector.shape_cast %45 : vector<4x8x8xf32> to vector<1x4x8x8xf32>
    %47 = arith.truncf %46 : vector<1x4x8x8xf32> to vector<1x4x8x8xbf16>
    %cst_33 = arith.constant 0.000000e+00 : f32
    %48 = vector.broadcast %cst_33 : f32 to vector<8x32xf32>
    %49 = vector.extract_strided_slice %47 {offsets = [0, 0, 0, 0], sizes = [1, 1, 8, 8], strides = [1, 1, 1, 1]} : vector<1x4x8x8xbf16> to vector<1x1x8x8xbf16>
    %50 = vector.shape_cast %49 : vector<1x1x8x8xbf16> to vector<1x8x8xbf16>
    %51 = vector.shape_cast %50 : vector<1x8x8xbf16> to vector<8x8xbf16>
    %c0_34 = arith.constant 0 : index
    %c0_35 = arith.constant 0 : index
    %c0_36 = arith.constant 0 : index
    %52 = vector.load %arg9[%c0_34, %c0_35, %c0_36] : memref<4x8x32xbf16, #tpu.memory_space<vmem>>, vector<1x8x32xbf16>
    %53 = vector.shape_cast %52 : vector<1x8x32xbf16> to vector<8x32xbf16>
    %cst_37 = arith.constant dense<0.000000e+00> : vector<8x32xf32>
    %54 = tpu.matmul %51, %53, %cst_37 {dimension_numbers = #tpu.dot_dimension_numbers<[1], [0], [0], [1], [0, 0, 1, 1], [], []>} : vector<8x8xbf16>, vector<8x32xbf16>, vector<8x32xf32> -> vector<8x32xf32>
    %55 = arith.addf %48, %54 : vector<8x32xf32>
    %56 = vector.extract_strided_slice %47 {offsets = [0, 1, 0, 0], sizes = [1, 1, 8, 8], strides = [1, 1, 1, 1]} : vector<1x4x8x8xbf16> to vector<1x1x8x8xbf16>
    %57 = vector.shape_cast %56 : vector<1x1x8x8xbf16> to vector<1x8x8xbf16>
    %58 = vector.shape_cast %57 : vector<1x8x8xbf16> to vector<8x8xbf16>
    %c1 = arith.constant 1 : index
    %c0_38 = arith.constant 0 : index
    %c0_39 = arith.constant 0 : index
    %59 = vector.load %arg9[%c1, %c0_38, %c0_39] : memref<4x8x32xbf16, #tpu.memory_space<vmem>>, vector<1x8x32xbf16>
    %60 = vector.shape_cast %59 : vector<1x8x32xbf16> to vector<8x32xbf16>
    %cst_40 = arith.constant dense<0.000000e+00> : vector<8x32xf32>
    %61 = tpu.matmul %58, %60, %cst_40 {dimension_numbers = #tpu.dot_dimension_numbers<[1], [0], [0], [1], [0, 0, 1, 1], [], []>} : vector<8x8xbf16>, vector<8x32xbf16>, vector<8x32xf32> -> vector<8x32xf32>
    %62 = arith.addf %55, %61 : vector<8x32xf32>
    %63 = vector.extract_strided_slice %47 {offsets = [0, 2, 0, 0], sizes = [1, 1, 8, 8], strides = [1, 1, 1, 1]} : vector<1x4x8x8xbf16> to vector<1x1x8x8xbf16>
    %64 = vector.shape_cast %63 : vector<1x1x8x8xbf16> to vector<1x8x8xbf16>
    %65 = vector.shape_cast %64 : vector<1x8x8xbf16> to vector<8x8xbf16>
    %c2 = arith.constant 2 : index
    %c0_41 = arith.constant 0 : index
    %c0_42 = arith.constant 0 : index
    %66 = vector.load %arg9[%c2, %c0_41, %c0_42] : memref<4x8x32xbf16, #tpu.memory_space<vmem>>, vector<1x8x32xbf16>
    %67 = vector.shape_cast %66 : vector<1x8x32xbf16> to vector<8x32xbf16>
    %cst_43 = arith.constant dense<0.000000e+00> : vector<8x32xf32>
    %68 = tpu.matmul %65, %67, %cst_43 {dimension_numbers = #tpu.dot_dimension_numbers<[1], [0], [0], [1], [0, 0, 1, 1], [], []>} : vector<8x8xbf16>, vector<8x32xbf16>, vector<8x32xf32> -> vector<8x32xf32>
    %69 = arith.addf %62, %68 : vector<8x32xf32>
    %70 = vector.extract_strided_slice %47 {offsets = [0, 3, 0, 0], sizes = [1, 1, 8, 8], strides = [1, 1, 1, 1]} : vector<1x4x8x8xbf16> to vector<1x1x8x8xbf16>
    %71 = vector.shape_cast %70 : vector<1x1x8x8xbf16> to vector<1x8x8xbf16>
    %72 = vector.shape_cast %71 : vector<1x8x8xbf16> to vector<8x8xbf16>
    %c3 = arith.constant 3 : index
    %c0_44 = arith.constant 0 : index
    %c0_45 = arith.constant 0 : index
    %73 = vector.load %arg9[%c3, %c0_44, %c0_45] : memref<4x8x32xbf16, #tpu.memory_space<vmem>>, vector<1x8x32xbf16>
    %74 = vector.shape_cast %73 : vector<1x8x32xbf16> to vector<8x32xbf16>
    %cst_46 = arith.constant dense<0.000000e+00> : vector<8x32xf32>
    %75 = tpu.matmul %72, %74, %cst_46 {dimension_numbers = #tpu.dot_dimension_numbers<[1], [0], [0], [1], [0, 0, 1, 1], [], []>} : vector<8x8xbf16>, vector<8x32xbf16>, vector<8x32xf32> -> vector<8x32xf32>
    %76 = arith.addf %69, %75 : vector<8x32xf32>
    %c0_47 = arith.constant 0 : index
    %c0_48 = arith.constant 0 : index
    %77 = vector.load %arg10[%c0_47, %c0_48] : memref<1x32xf32, #tpu.memory_space<vmem>>, vector<1x32xf32>
    %78 = vector.broadcast %77 : vector<1x32xf32> to vector<8x32xf32>
    %79 = arith.addf %76, %78 : vector<8x32xf32>
    %c0_49 = arith.constant 0 : index
    %c0_50 = arith.constant 0 : index
    %c0_51 = arith.constant 0 : index
    %80 = vector.load %arg4[%c0_49, %c0_50, %c0_51] : memref<1x8x32xf32, #tpu.memory_space<vmem>>, vector<1x8x32xf32>
    %81 = vector.shape_cast %80 : vector<1x8x32xf32> to vector<8x32xf32>
    %82 = arith.addf %79, %81 : vector<8x32xf32>
    %c0_52 = arith.constant 0 : index
    %c0_53 = arith.constant 0 : index
    %83 = vector.load %arg11[%c0_52, %c0_53] : memref<1x32xf32, #tpu.memory_space<vmem>>, vector<1x32xf32>
    %c0_54 = arith.constant 0 : index
    %c0_55 = arith.constant 0 : index
    %84 = vector.load %arg12[%c0_54, %c0_55] : memref<1x32xf32, #tpu.memory_space<vmem>>, vector<1x32xf32>
    %cst_56 = arith.constant dense<0.000000e+00> : vector<8xf32>
    %85 = vector.multi_reduction <add>, %82, %cst_56 [1] : vector<8x32xf32> to vector<8xf32>
    %86 = vector.shape_cast %85 : vector<8xf32> to vector<8x1xf32>
    %cst_57 = arith.constant 3.200000e+01 : f32
    %87 = vector.broadcast %cst_57 : f32 to vector<8x1xf32>
    %88 = arith.divf %86, %87 : vector<8x1xf32>
    %89 = vector.broadcast %88 : vector<8x1xf32> to vector<8x32xf32>
    %90 = arith.subf %82, %89 : vector<8x32xf32>
    %91 = arith.mulf %90, %90 : vector<8x32xf32>
    %cst_58 = arith.constant dense<0.000000e+00> : vector<8xf32>
    %92 = vector.multi_reduction <add>, %91, %cst_58 [1] : vector<8x32xf32> to vector<8xf32>
    %93 = vector.shape_cast %92 : vector<8xf32> to vector<8x1xf32>
    %cst_59 = arith.constant 3.200000e+01 : f32
    %94 = vector.broadcast %cst_59 : f32 to vector<8x1xf32>
    %95 = arith.divf %93, %94 : vector<8x1xf32>
    %96 = vector.broadcast %88 : vector<8x1xf32> to vector<8x32xf32>
    %97 = arith.subf %82, %96 : vector<8x32xf32>
    %cst_60 = arith.constant 9.99999974E-6 : f32
    %98 = vector.broadcast %cst_60 : f32 to vector<8x1xf32>
    %99 = arith.addf %95, %98 : vector<8x1xf32>
    %100 = math.rsqrt %99 : vector<8x1xf32>
    %101 = vector.broadcast %100 : vector<8x1xf32> to vector<8x32xf32>
    %102 = arith.mulf %97, %101 : vector<8x32xf32>
    %103 = vector.broadcast %83 : vector<1x32xf32> to vector<8x32xf32>
    %104 = arith.mulf %102, %103 : vector<8x32xf32>
    %105 = vector.broadcast %84 : vector<1x32xf32> to vector<8x32xf32>
    %106 = arith.addf %104, %105 : vector<8x32xf32>
    %107 = arith.truncf %106 : vector<8x32xf32> to vector<8x32xbf16>
    %c0_61 = arith.constant 0 : index
    %c0_62 = arith.constant 0 : index
    %108 = vector.load %arg13[%c0_61, %c0_62] : memref<32x128xbf16, #tpu.memory_space<vmem>>, vector<32x128xbf16>
    %cst_63 = arith.constant dense<0.000000e+00> : vector<8x128xf32>
    %109 = tpu.matmul %107, %108, %cst_63 {dimension_numbers = #tpu.dot_dimension_numbers<[1], [0], [0], [1], [0, 0, 1, 1], [], []>} : vector<8x32xbf16>, vector<32x128xbf16>, vector<8x128xf32> -> vector<8x128xf32>
    %c0_64 = arith.constant 0 : index
    %c0_65 = arith.constant 0 : index
    %110 = vector.load %arg14[%c0_64, %c0_65] : memref<1x128xf32, #tpu.memory_space<vmem>>, vector<1x128xf32>
    %111 = vector.broadcast %110 : vector<1x128xf32> to vector<8x128xf32>
    %112 = arith.addf %109, %111 : vector<8x128xf32>
    %cst_66 = arith.constant 0.000000e+00 : f32
    %113 = vector.broadcast %cst_66 : f32 to vector<8x128xf32>
    %114 = arith.maximumf %112, %113 : vector<8x128xf32>
    %115 = arith.truncf %114 : vector<8x128xf32> to vector<8x128xbf16>
    %c0_67 = arith.constant 0 : index
    %c0_68 = arith.constant 0 : index
    %116 = vector.load %arg15[%c0_67, %c0_68] : memref<128x32xbf16, #tpu.memory_space<vmem>>, vector<128x32xbf16>
    %cst_69 = arith.constant dense<0.000000e+00> : vector<8x32xf32>
    %117 = tpu.matmul %115, %116, %cst_69 {dimension_numbers = #tpu.dot_dimension_numbers<[1], [0], [0], [1], [0, 0, 1, 1], [], []>} : vector<8x128xbf16>, vector<128x32xbf16>, vector<8x32xf32> -> vector<8x32xf32>
    %c0_70 = arith.constant 0 : index
    %c0_71 = arith.constant 0 : index
    %118 = vector.load %arg16[%c0_70, %c0_71] : memref<1x32xf32, #tpu.memory_space<vmem>>, vector<1x32xf32>
    %119 = vector.broadcast %118 : vector<1x32xf32> to vector<8x32xf32>
    %120 = arith.addf %117, %119 : vector<8x32xf32>
    %121 = arith.addf %120, %106 : vector<8x32xf32>
    %c0_72 = arith.constant 0 : index
    %c0_73 = arith.constant 0 : index
    %122 = vector.load %arg17[%c0_72, %c0_73] : memref<1x32xf32, #tpu.memory_space<vmem>>, vector<1x32xf32>
    %c0_74 = arith.constant 0 : index
    %c0_75 = arith.constant 0 : index
    %123 = vector.load %arg18[%c0_74, %c0_75] : memref<1x32xf32, #tpu.memory_space<vmem>>, vector<1x32xf32>
    %cst_76 = arith.constant dense<0.000000e+00> : vector<8xf32>
    %124 = vector.multi_reduction <add>, %121, %cst_76 [1] : vector<8x32xf32> to vector<8xf32>
    %125 = vector.shape_cast %124 : vector<8xf32> to vector<8x1xf32>
    %cst_77 = arith.constant 3.200000e+01 : f32
    %126 = vector.broadcast %cst_77 : f32 to vector<8x1xf32>
    %127 = arith.divf %125, %126 : vector<8x1xf32>
    %128 = vector.broadcast %127 : vector<8x1xf32> to vector<8x32xf32>
    %129 = arith.subf %121, %128 : vector<8x32xf32>
    %130 = arith.mulf %129, %129 : vector<8x32xf32>
    %cst_78 = arith.constant dense<0.000000e+00> : vector<8xf32>
    %131 = vector.multi_reduction <add>, %130, %cst_78 [1] : vector<8x32xf32> to vector<8xf32>
    %132 = vector.shape_cast %131 : vector<8xf32> to vector<8x1xf32>
    %cst_79 = arith.constant 3.200000e+01 : f32
    %133 = vector.broadcast %cst_79 : f32 to vector<8x1xf32>
    %134 = arith.divf %132, %133 : vector<8x1xf32>
    %135 = vector.broadcast %127 : vector<8x1xf32> to vector<8x32xf32>
    %136 = arith.subf %121, %135 : vector<8x32xf32>
    %cst_80 = arith.constant 9.99999974E-6 : f32
    %137 = vector.broadcast %cst_80 : f32 to vector<8x1xf32>
    %138 = arith.addf %134, %137 : vector<8x1xf32>
    %139 = math.rsqrt %138 : vector<8x1xf32>
    %140 = vector.broadcast %139 : vector<8x1xf32> to vector<8x32xf32>
    %141 = arith.mulf %136, %140 : vector<8x32xf32>
    %142 = vector.broadcast %122 : vector<1x32xf32> to vector<8x32xf32>
    %143 = arith.mulf %141, %142 : vector<8x32xf32>
    %144 = vector.broadcast %123 : vector<1x32xf32> to vector<8x32xf32>
    %145 = arith.addf %143, %144 : vector<8x32xf32>
    %146 = vector.shape_cast %145 : vector<8x32xf32> to vector<1x8x32xf32>
    %c0_81 = arith.constant 0 : index
    %c0_82 = arith.constant 0 : index
    %c0_83 = arith.constant 0 : index
    %147 = vector.load %arg19[%c0_81, %c0_82, %c0_83] : memref<1x8x32xf32, #tpu.memory_space<vmem>>, vector<1x8x32xf32>
    tpu.vector_store %arg19[%c0_81, %c0_82, %c0_83], %146 {strides = array<i32>} : memref<1x8x32xf32, #tpu.memory_space<vmem>>, vector<1x8x32xf32>,
    return
  }
  func.func @transform_0(%arg0: i32) -> (i32, i32, i32, i32) {
    %c0_i32 = arith.constant 0 : i32
    %c0_i32_0 = arith.constant 0 : i32
    %c0_i32_1 = arith.constant 0 : i32
    %c0_i32_2 = arith.constant 0 : i32
    return %arg0, %c0_i32, %c0_i32_0, %c0_i32_1 : i32, i32, i32, i32
  }
  func.func @transform_1(%arg0: i32) -> (i32, i32, i32, i32) {
    %c0_i32 = arith.constant 0 : i32
    %c0_i32_0 = arith.constant 0 : i32
    %c0_i32_1 = arith.constant 0 : i32
    %c0_i32_2 = arith.constant 0 : i32
    return %arg0, %c0_i32, %c0_i32_0, %c0_i32_1 : i32, i32, i32, i32
  }
  func.func @transform_2(%arg0: i32) -> (i32, i32, i32, i32) {
    %c0_i32 = arith.constant 0 : i32
    %c0_i32_0 = arith.constant 0 : i32
    %c0_i32_1 = arith.constant 0 : i32
    %c0_i32_2 = arith.constant 0 : i32
    return %arg0, %c0_i32, %c0_i32_0, %c0_i32_1 : i32, i32, i32, i32
  }
  func.func @transform_3(%arg0: i32) -> (i32, i32, i32) {
    %c0_i32 = arith.constant 0 : i32
    %c0_i32_0 = arith.constant 0 : i32
    %c0_i32_1 = arith.constant 0 : i32
    return %arg0, %c0_i32, %c0_i32_0 : i32, i32, i32
  }
  func.func @transform_4(%arg0: i32) -> (i32, i32, i32) {
    %c0_i32 = arith.constant 0 : i32
    %c0_i32_0 = arith.constant 0 : i32
    %c0_i32_1 = arith.constant 0 : i32
    return %arg0, %c0_i32, %c0_i32_0 : i32, i32, i32
  }
  func.func @transform_5(%arg0: i32) -> (i32, i32) {
    %c0_i32 = arith.constant 0 : i32
    %c0_i32_0 = arith.constant 0 : i32
    %c0_i32_1 = arith.constant 0 : i32
    return %c0_i32, %c0_i32_0 : i32, i32
  }
  func.func @transform_6(%arg0: i32) -> (i32, i32) {
    %c0_i32 = arith.constant 0 : i32
    %c0_i32_0 = arith.constant 0 : i32
    %c0_i32_1 = arith.constant 0 : i32
    return %c0_i32, %c0_i32_0 : i32, i32
  }
  func.func @transform_7(%arg0: i32) -> (i32, i32) {
    %c0_i32 = arith.constant 0 : i32
    %c0_i32_0 = arith.constant 0 : i32
    %c0_i32_1 = arith.constant 0 : i32
    return %c0_i32, %c0_i32_0 : i32, i32
  }
  func.func @transform_8(%arg0: i32) -> (i32, i32, i32) {
    %c0_i32 = arith.constant 0 : i32
    %c0_i32_0 = arith.constant 0 : i32
    %c0_i32_1 = arith.constant 0 : i32
    %c0_i32_2 = arith.constant 0 : i32
    return %c0_i32, %c0_i32_0, %c0_i32_1 : i32, i32, i32
  }
  func.func @transform_9(%arg0: i32) -> (i32, i32) {
    %c0_i32 = arith.constant 0 : i32
    %c0_i32_0 = arith.constant 0 : i32
    %c0_i32_1 = arith.constant 0 : i32
    return %c0_i32, %c0_i32_0 : i32, i32
  }
  func.func @transform_10(%arg0: i32) -> (i32, i32) {
    %c0_i32 = arith.constant 0 : i32
    %c0_i32_0 = arith.constant 0 : i32
    %c0_i32_1 = arith.constant 0 : i32
    return %c0_i32, %c0_i32_0 : i32, i32
  }
  func.func @transform_11(%arg0: i32) -> (i32, i32) {
    %c0_i32 = arith.constant 0 : i32
    %c0_i32_0 = arith.constant 0 : i32
    %c0_i32_1 = arith.constant 0 : i32
    return %c0_i32, %c0_i32_0 : i32, i32
  }
  func.func @transform_12(%arg0: i32) -> (i32, i32) {
    %c0_i32 = arith.constant 0 : i32
    %c0_i32_0 = arith.constant 0 : i32
    %c0_i32_1 = arith.constant 0 : i32
    return %c0_i32, %c0_i32_0 : i32, i32
  }
  func.func @transform_13(%arg0: i32) -> (i32, i32) {
    %c0_i32 = arith.constant 0 : i32
    %c0_i32_0 = arith.constant 0 : i32
    %c0_i32_1 = arith.constant 0 : i32
    return %c0_i32, %c0_i32_0 : i32, i32
  }
  func.func @transform_14(%arg0: i32) -> (i32, i32) {
    %c0_i32 = arith.constant 0 : i32
    %c0_i32_0 = arith.constant 0 : i32
    %c0_i32_1 = arith.constant 0 : i32
    return %c0_i32, %c0_i32_0 : i32, i32
  }
  func.func @transform_15(%arg0: i32) -> (i32, i32) {
    %c0_i32 = arith.constant 0 : i32
    %c0_i32_0 = arith.constant 0 : i32
    %c0_i32_1 = arith.constant 0 : i32
    return %c0_i32, %c0_i32_0 : i32, i32
  }
  func.func @transform_16(%arg0: i32) -> (i32, i32) {
    %c0_i32 = arith.constant 0 : i32
    %c0_i32_0 = arith.constant 0 : i32
    %c0_i32_1 = arith.constant 0 : i32
    return %c0_i32, %c0_i32_0 : i32, i32
  }
  func.func @transform_17(%arg0: i32) -> (i32, i32) {
    %c0_i32 = arith.constant 0 : i32
    %c0_i32_0 = arith.constant 0 : i32
    %c0_i32_1 = arith.constant 0 : i32
    return %c0_i32, %c0_i32_0 : i32, i32
  }
  func.func @transform_18(%arg0: i32) -> (i32, i32, i32) {
    %c0_i32 = arith.constant 0 : i32
    %c0_i32_0 = arith.constant 0 : i32
    %c0_i32_1 = arith.constant 0 : i32
    return %arg0, %c0_i32, %c0_i32_0 : i32, i32, i32
  }
  func.func @transform_19(%arg0: i32) -> (i32, i32, i32, i32) {
    %c0_i32 = arith.constant 0 : i32
    %c0_i32_0 = arith.constant 0 : i32
    %c0_i32_1 = arith.constant 0 : i32
    %c0_i32_2 = arith.constant 0 : i32
    return %arg0, %c0_i32, %c0_i32_0, %c0_i32_1 : i32, i32, i32, i32
  }
}

</mosaic_0001>

<llo_original>
// kernel: tpu_custom_call.1
$region0: #{tpu_custom_call.1}
  #allocation0 [shape = 'u32[]', space=smem, size = 0x4, offset = 0x4, fixed_abs, tag = 'smem constant byte address 0x4 - core index']
  #allocation1 [shape = 'u32[144,128]{1,0:T(1,128)}', space=vmem, size = 0x12000, scoped, tag = 'internal scratch']
  %s0 = inlined_call_operand.vmem [shape: f32[2,4,8,8], index: 0, kind: input, shape index: {}]
  %s1 = inlined_call_operand.hbm [shape: f32[2,4,8,8], index: 1, kind: input, shape index: {}]
  %s2 = inlined_call_operand.hbm [shape: f32[2,4,8,8], index: 2, kind: input, shape index: {}]
  %s3 = inlined_call_operand.vmem [shape: f32[2,8,32], index: 3, kind: input, shape index: {}]
  %s4 = inlined_call_operand.hbm [shape: f32[2,8,8], index: 4, kind: input, shape index: {}]
  %s5 = inlined_call_operand.hbm [shape: bf16[8,8], index: 5, kind: input, shape index: {}]
  %s6 = inlined_call_operand.hbm [shape: bf16[8,8], index: 6, kind: input, shape index: {}]
  %s7 = inlined_call_operand.hbm [shape: bf16[8,8], index: 7, kind: input, shape index: {}]
  %s8 = inlined_call_operand.hbm [shape: bf16[4,8,32], index: 8, kind: input, shape index: {}]
  %s9 = inlined_call_operand.hbm [shape: f32[1,32], index: 9, kind: input, shape index: {}]
  %s10 = inlined_call_operand.vmem [shape: f32[1,32], index: 10, kind: input, shape index: {}]
  %s11 = inlined_call_operand.vmem [shape: f32[1,32], index: 11, kind: input, shape index: {}]
  %s12 = inlined_call_operand.vmem [shape: bf16[32,128], index: 12, kind: input, shape index: {}]
  %s13 = inlined_call_operand.vmem [shape: f32[1,128], index: 13, kind: input, shape index: {}]
  %s14 = inlined_call_operand.vmem [shape: bf16[128,32], index: 14, kind: input, shape index: {}]
  %s15 = inlined_call_operand.vmem [shape: f32[1,32], index: 15, kind: input, shape index: {}]
  %s16 = inlined_call_operand.vmem [shape: f32[1,32], index: 16, kind: input, shape index: {}]
  %s17 = inlined_call_operand.vmem [shape: f32[1,32], index: 17, kind: input, shape index: {}]
  %s18 = inlined_call_operand.hbm [shape: f32[2,8,32], index: 18, kind: output, shape index: {0}]
  %s19 = inlined_call_operand.hbm [shape: f32[2,4,8,8], index: 19, kind: output, shape index: {1}]
  %20 = xla_tuple %s18, %s19
  %s21 = sld [smem:[#allocation0]]
  $region145: #{tpu_custom_call.1} parent=0
    _
  %s23 = ssub.s32 1, %s21
  %s24 = scalar_select 0, %s23, %s21
  $region1: #{tpu_custom_call.1} parent=0
    #allocation2 [shape = 'u8[32768]{0}', space=vmem, size = 0x8000, scoped, tag = 'input window, operand 1']
    #allocation3 [shape = 's32[2]{0}', space=sflag, size = 0x8, scoped, tag = 'scoped memory for tpu_custom_call.1']
    #allocation4 [shape = 's32[2]{0}', space=sflag, size = 0x8, scoped, tag = 'scoped memory for tpu_custom_call.1']
    #allocation5 [shape = 'u8[32768]{0}', space=vmem, size = 0x8000, scoped, tag = 'input window, operand 2']
    #allocation6 [shape = 's32[2]{0}', space=sflag, size = 0x8, scoped, tag = 'scoped memory for tpu_custom_call.1']
    #allocation7 [shape = 'u8[8192]{0}', space=vmem, size = 0x2000, scoped, tag = 'input window, operand 4']
    #allocation8 [shape = 'u8[2048]{0}', space=vmem, size = 0x800, scoped, tag = 'input window, operand 5, single buffered']
    #allocation9 [shape = 's32[1]{0}', space=sflag, size = 0x4, scoped, tag = 'scoped memory for tpu_custom_call.1']
    #allocation10 [shape = 'u8[2048]{0}', space=vmem, size = 0x800, scoped, tag = 'input window, operand 6, single buffered']
    #allocation11 [shape = 'u8[2048]{0}', space=vmem, size = 0x800, scoped, tag = 'input window, operand 7, single buffered']
    #allocation12 [shape = 's32[1]{0}', space=sflag, size = 0x4, scoped, tag = 'scoped memory for tpu_custom_call.1']
    #allocation13 [shape = 'u8[8192]{0}', space=vmem, size = 0x2000, scoped, tag = 'input window, operand 8, single buffered']
    #allocation14 [shape = 'u8[512]{0}', space=vmem, size = 0x400, scoped, tag = 'input window, operand 9, single buffered']
    #allocation15 [shape = 's32[1]{0}', space=sflag, size = 0x4, scoped, tag = 'scoped memory for tpu_custom_call.1']
    #allocation16 [shape = 'u8[8192]{0}', space=vmem, size = 0x2000, scoped, tag = 'output window, operand 0']
    #allocation17 [shape = 'u8[32768]{0}', space=vmem, size = 0x8000, scoped, tag = 'output window, operand 1']
    #allocation18 [shape = 's32[2]{0}', space=sflag, size = 0x8, scoped, tag = 'scoped memory for tpu_custom_call.1']
    %25 = vsyncpa [#allocation3], 0
    %s26 = scalar_lea.sflag [#allocation3], 1
    %27 = vsyncpa %s26, 0
    %28 = vsyncpa [#allocation6], 0
    %s29 = scalar_lea.sflag [#allocation6], 1
    %30 = vsyncpa %s29, 0
    %31 = vsyncpa [#allocation9], 0
    %32 = vsyncpa [#allocation12], 0
    %33 = vsyncpa [#allocation15], 0
    %34 = vsyncpa [#allocation4], 0
    %s35 = scalar_lea.sflag [#allocation4], 1
    %36 = vsyncpa %s35, 0
    %37 = vsyncpa [#allocation18], 0
    %s38 = scalar_lea.sflag [#allocation18], 1
    %39 = vsyncpa %s38, 0
    loop: start=0, step=1, limit=4
    $region2: #{tpu_custom_call.1} parent=1 // loop_pre_header
      _
    $region3: #{tpu_custom_call.1} parent=1 // loop_header
      %s41 = sphi 0, %s45
      %p42 = scmp.ge.s32.totalorder %s41, 4
      %s51 = sphi 0, %s53
      %s54 = sphi 0, %s51
      %s55 = sphi 0, %s54
      %s71 = sphi 0, %s55
      %s77 = sphi 0, %s79
      %s80 = sphi 0, %s77
      %s81 = sphi 0, %s80
      %s97 = sphi 0, %s81
      %s103 = sphi 0, %s105
      %s106 = sphi 0, %s103
      %s107 = sphi 0, %s106
      %s123 = sphi 0, %s107
      %s129 = sphi 0, %s131
      %s132 = sphi 0, %s129
      %s133 = sphi 0, %s132
      %s149 = sphi 0, %s133
      %s155 = sphi 0, %s157
      %s158 = sphi 0, %s155
      %s159 = sphi 0, %s158
      %s175 = sphi 0, %s159
      %s179 = sphi 0, %s179
      %s181 = sphi 0, %s179
      %s182 = sphi 0, %s181
      %s196 = sphi 0, %s182
      %s200 = sphi 0, %s200
      %s202 = sphi 0, %s200
      %s203 = sphi 0, %s202
      %s217 = sphi 0, %s203
      %s221 = sphi 0, %s221
      %s223 = sphi 0, %s221
      %s224 = sphi 0, %s223
      %s238 = sphi 0, %s224
      %s242 = sphi 0, %s242
      %s244 = sphi 0, %s242
      %s245 = sphi 0, %s244
      %s259 = sphi 0, %s245
      %s263 = sphi 0, %s263
      %s265 = sphi 0, %s263
      %s266 = sphi 0, %s265
      %s280 = sphi 0, %s266
      %s284 = sphi 0, %s284
      %s286 = sphi 0, %s284
      %s287 = sphi 0, %s286
      %s301 = sphi 0, %s287
      %s305 = sphi 0, %s305
      %s307 = sphi 0, %s305
      %s308 = sphi 0, %s307
      %s322 = sphi 0, %s308
      %s326 = sphi 0, %s326
      %s328 = sphi 0, %s326
      %s329 = sphi 0, %s328
      %s343 = sphi 0, %s329
      %s347 = sphi 0, %s347
      %s349 = sphi 0, %s347
      %s350 = sphi 0, %s349
      %s364 = sphi 0, %s350
      %s368 = sphi 0, %s368
      %s370 = sphi 0, %s368
      %s371 = sphi 0, %s370
      %s385 = sphi 0, %s371
      %s389 = sphi 0, %s389
      %s391 = sphi 0, %s389
      %s392 = sphi 0, %s391
      %s406 = sphi 0, %s392
      %s410 = sphi 0, %s410
      %s412 = sphi 0, %s410
      %s413 = sphi 0, %s412
      %s427 = sphi 0, %s413
      %s431 = sphi 0, %s431
      %s433 = sphi 0, %s431
      %s434 = sphi 0, %s433
      %s448 = sphi 0, %s434
      %s454 = sphi 0, %s456
      %s457 = sphi 0, %s454
      %s458 = sphi 0, %s457
      %s474 = sphi 0, %s458
      %s480 = sphi 0, %s482
      %s483 = sphi 0, %s480
      %s484 = sphi 0, %s483
      %s500 = sphi 0, %s484
    $region4: #{tpu_custom_call.1} parent=1 // loop_header_branch
      %44 = sbr.rel (%p42) target = $region8
    $region5: #{tpu_custom_call.1} parent=1 // loop_body
      %s46 = ssub.s32 %s41, 1
      %s47 = ssub.s32 %s41, 2
      %s48 = sadd.s32 %s41, 1
      %s49 = ssub.s32 %s41, %s48
      %p50 = scmp.eq.s32.totalorder %s49, 0
      %s52 = sadd.s32 %s51, 1
      %s53 = scalar_select %p50, %s51, %s52
      %p56 = pneg %p50
      %p57 = scmp.eq.s32.totalorder %s41, 1
      %p58 = por %p56, %p57
      %p59 = scmp.ne.s32.totalorder %s51, %s54
      %p60 = scmp.eq.s32.totalorder %s41, 0
      %p61 = por %p59, %p60
      %p62 = scmp.ne.s32.totalorder %s51, %s54
      %p63 = scmp.eq.s32.totalorder %s46, 1
      %p64 = por %p62, %p63
      %p65 = scmp.ne.s32.totalorder %s54, %s55
      %p66 = scmp.eq.s32.totalorder %s46, 0
      %p67 = por %p65, %p66
      %p68 = scmp.ne.s32.totalorder %s54, %s55
      %p69 = scmp.eq.s32.totalorder %s47, 1
      %p70 = por %p68, %p69
      %p72 = scmp.ne.s32.totalorder %s55, %s71
      %p73 = scmp.eq.s32.totalorder %s47, 0
      %p74 = por %p72, %p73
      %s75 = ssub.s32 %s41, %s48
      %p76 = scmp.eq.s32.totalorder %s75, 0
      %s78 = sadd.s32 %s77, 1
      %s79 = scalar_select %p76, %s77, %s78
      %p82 = pneg %p76
      %p83 = scmp.eq.s32.totalorder %s41, 1
      %p84 = por %p82, %p83
      %p85 = scmp.ne.s32.totalorder %s77, %s80
      %p86 = scmp.eq.s32.totalorder %s41, 0
      %p87 = por %p85, %p86
      %p88 = scmp.ne.s32.totalorder %s77, %s80
      %p89 = scmp.eq.s32.totalorder %s46, 1
      %p90 = por %p88, %p89
      %p91 = scmp.ne.s32.totalorder %s80, %s81
      %p92 = scmp.eq.s32.totalorder %s46, 0
      %p93 = por %p91, %p92
      %p94 = scmp.ne.s32.totalorder %s80, %s81
      %p95 = scmp.eq.s32.totalorder %s47, 1
      %p96 = por %p94, %p95
      %p98 = scmp.ne.s32.totalorder %s81, %s97
      %p99 = scmp.eq.s32.totalorder %s47, 0
      %p100 = por %p98, %p99
      %s101 = ssub.s32 %s41, %s48
      %p102 = scmp.eq.s32.totalorder %s101, 0
      %s104 = sadd.s32 %s103, 1
      %s105 = scalar_select %p102, %s103, %s104
      %p108 = pneg %p102
      %p109 = scmp.eq.s32.totalorder %s41, 1
      %p110 = por %p108, %p109
      %p111 = scmp.ne.s32.totalorder %s103, %s106
      %p112 = scmp.eq.s32.totalorder %s41, 0
      %p113 = por %p111, %p112
      %p114 = scmp.ne.s32.totalorder %s103, %s106
      %p115 = scmp.eq.s32.totalorder %s46, 1
      %p116 = por %p114, %p115
      %p117 = scmp.ne.s32.totalorder %s106, %s107
      %p118 = scmp.eq.s32.totalorder %s46, 0
      %p119 = por %p117, %p118
      %p120 = scmp.ne.s32.totalorder %s106, %s107
      %p121 = scmp.eq.s32.totalorder %s47, 1
      %p122 = por %p120, %p121
      %p124 = scmp.ne.s32.totalorder %s107, %s123
      %p125 = scmp.eq.s32.totalorder %s47, 0
      %p126 = por %p124, %p125
      %s127 = ssub.s32 %s41, %s48
      %p128 = scmp.eq.s32.totalorder %s127, 0
      %s130 = sadd.s32 %s129, 1
      %s131 = scalar_select %p128, %s129, %s130
      %p134 = pneg %p128
      %p135 = scmp.eq.s32.totalorder %s41, 1
      %p136 = por %p134, %p135
      %p137 = scmp.ne.s32.totalorder %s129, %s132
      %p138 = scmp.eq.s32.totalorder %s41, 0
      %p139 = por %p137, %p138
      %p140 = scmp.ne.s32.totalorder %s129, %s132
      %p141 = scmp.eq.s32.totalorder %s46, 1
      %p142 = por %p140, %p141
      %p143 = scmp.ne.s32.totalorder %s132, %s133
      %p144 = scmp.eq.s32.totalorder %s46, 0
      %p145 = por %p143, %p144
      %p146 = scmp.ne.s32.totalorder %s132, %s133
      %p147 = scmp.eq.s32.totalorder %s47, 1
      %p148 = por %p146, %p147
      %p150 = scmp.ne.s32.totalorder %s133, %s149
      %p151 = scmp.eq.s32.totalorder %s47, 0
      %p152 = por %p150, %p151
      %s153 = ssub.s32 %s41, %s48
      %p154 = scmp.eq.s32.totalorder %s153, 0
      %s156 = sadd.s32 %s155, 1
      %s157 = scalar_select %p154, %s155, %s156
      %p160 = pneg %p154
      %p161 = scmp.eq.s32.totalorder %s41, 1
      %p162 = por %p160, %p161
      %p163 = scmp.ne.s32.totalorder %s155, %s158
      %p164 = scmp.eq.s32.totalorder %s41, 0
      %p165 = por %p163, %p164
      %p166 = scmp.ne.s32.totalorder %s155, %s158
      %p167 = scmp.eq.s32.totalorder %s46, 1
      %p168 = por %p166, %p167
      %p169 = scmp.ne.s32.totalorder %s158, %s159
      %p170 = scmp.eq.s32.totalorder %s46, 0
      %p171 = por %p169, %p170
      %p172 = scmp.ne.s32.totalorder %s158, %s159
      %p173 = scmp.eq.s32.totalorder %s47, 1
      %p174 = por %p172, %p173
      %p176 = scmp.ne.s32.totalorder %s159, %s175
      %p177 = scmp.eq.s32.totalorder %s47, 0
      %p178 = por %p176, %p177
      %s180 = sadd.s32 %s179, 1
      %p183 = scmp.eq.s32.totalorder %s41, 1
      %p184 = scmp.ne.s32.totalorder %s179, %s181
      %p185 = scmp.eq.s32.totalorder %s41, 0
      %p186 = por %p184, %p185
      %p187 = scmp.ne.s32.totalorder %s179, %s181
      %p188 = scmp.eq.s32.totalorder %s46, 1
      %p189 = por %p187, %p188
      %p190 = scmp.ne.s32.totalorder %s181, %s182
      %p191 = scmp.eq.s32.totalorder %s46, 0
      %p192 = por %p190, %p191
      %p193 = scmp.ne.s32.totalorder %s181, %s182
      %p194 = scmp.eq.s32.totalorder %s47, 1
      %p195 = por %p193, %p194
      %p197 = scmp.ne.s32.totalorder %s182, %s196
      %p198 = scmp.eq.s32.totalorder %s47, 0
      %p199 = por %p197, %p198
      %s201 = sadd.s32 %s200, 1
      %p204 = scmp.eq.s32.totalorder %s41, 1
      %p205 = scmp.ne.s32.totalorder %s200, %s202
      %p206 = scmp.eq.s32.totalorder %s41, 0
      %p207 = por %p205, %p206
      %p208 = scmp.ne.s32.totalorder %s200, %s202
      %p209 = scmp.eq.s32.totalorder %s46, 1
      %p210 = por %p208, %p209
      %p211 = scmp.ne.s32.totalorder %s202, %s203
      %p212 = scmp.eq.s32.totalorder %s46, 0
      %p213 = por %p211, %p212
      %p214 = scmp.ne.s32.totalorder %s202, %s203
      %p215 = scmp.eq.s32.totalorder %s47, 1
      %p216 = por %p214, %p215
      %p218 = scmp.ne.s32.totalorder %s203, %s217
      %p219 = scmp.eq.s32.totalorder %s47, 0
      %p220 = por %p218, %p219
      %s222 = sadd.s32 %s221, 1
      %p225 = scmp.eq.s32.totalorder %s41, 1
      %p226 = scmp.ne.s32.totalorder %s221, %s223
      %p227 = scmp.eq.s32.totalorder %s41, 0
      %p228 = por %p226, %p227
      %p229 = scmp.ne.s32.totalorder %s221, %s223
      %p230 = scmp.eq.s32.totalorder %s46, 1
      %p231 = por %p229, %p230
      %p232 = scmp.ne.s32.totalorder %s223, %s224
      %p233 = scmp.eq.s32.totalorder %s46, 0
      %p234 = por %p232, %p233
      %p235 = scmp.ne.s32.totalorder %s223, %s224
      %p236 = scmp.eq.s32.totalorder %s47, 1
      %p237 = por %p235, %p236
      %p239 = scmp.ne.s32.totalorder %s224, %s238
      %p240 = scmp.eq.s32.totalorder %s47, 0
      %p241 = por %p239, %p240
      %s243 = sadd.s32 %s242, 1
      %p246 = scmp.eq.s32.totalorder %s41, 1
      %p247 = scmp.ne.s32.totalorder %s242, %s244
      %p248 = scmp.eq.s32.totalorder %s41, 0
      %p249 = por %p247, %p248
      %p250 = scmp.ne.s32.totalorder %s242, %s244
      %p251 = scmp.eq.s32.totalorder %s46, 1
      %p252 = por %p250, %p251
      %p253 = scmp.ne.s32.totalorder %s244, %s245
      %p254 = scmp.eq.s32.totalorder %s46, 0
      %p255 = por %p253, %p254
      %p256 = scmp.ne.s32.totalorder %s244, %s245
      %p257 = scmp.eq.s32.totalorder %s47, 1
      %p258 = por %p256, %p257
      %p260 = scmp.ne.s32.totalorder %s245, %s259
      %p261 = scmp.eq.s32.totalorder %s47, 0
      %p262 = por %p260, %p261
      %s264 = sadd.s32 %s263, 1
      %p267 = scmp.eq.s32.totalorder %s41, 1
      %p268 = scmp.ne.s32.totalorder %s263, %s265
      %p269 = scmp.eq.s32.totalorder %s41, 0
      %p270 = por %p268, %p269
      %p271 = scmp.ne.s32.totalorder %s263, %s265
      %p272 = scmp.eq.s32.totalorder %s46, 1
      %p273 = por %p271, %p272
      %p274 = scmp.ne.s32.totalorder %s265, %s266
      %p275 = scmp.eq.s32.totalorder %s46, 0
      %p276 = por %p274, %p275
      %p277 = scmp.ne.s32.totalorder %s265, %s266
      %p278 = scmp.eq.s32.totalorder %s47, 1
      %p279 = por %p277, %p278
      %p281 = scmp.ne.s32.totalorder %s266, %s280
      %p282 = scmp.eq.s32.totalorder %s47, 0
      %p283 = por %p281, %p282
      %s285 = sadd.s32 %s284, 1
      %p288 = scmp.eq.s32.totalorder %s41, 1
      %p289 = scmp.ne.s32.totalorder %s284, %s286
      %p290 = scmp.eq.s32.totalorder %s41, 0
      %p291 = por %p289, %p290
      %p292 = scmp.ne.s32.totalorder %s284, %s286
      %p293 = scmp.eq.s32.totalorder %s46, 1
      %p294 = por %p292, %p293
      %p295 = scmp.ne.s32.totalorder %s286, %s287
      %p296 = scmp.eq.s32.totalorder %s46, 0
      %p297 = por %p295, %p296
      %p298 = scmp.ne.s32.totalorder %s286, %s287
      %p299 = scmp.eq.s32.totalorder %s47, 1
      %p300 = por %p298, %p299
      %p302 = scmp.ne.s32.totalorder %s287, %s301
      %p303 = scmp.eq.s32.totalorder %s47, 0
      %p304 = por %p302, %p303
      %s306 = sadd.s32 %s305, 1
      %p309 = scmp.eq.s32.totalorder %s41, 1
      %p310 = scmp.ne.s32.totalorder %s305, %s307
      %p311 = scmp.eq.s32.totalorder %s41, 0
      %p312 = por %p310, %p311
      %p313 = scmp.ne.s32.totalorder %s305, %s307
      %p314 = scmp.eq.s32.totalorder %s46, 1
      %p315 = por %p313, %p314
      %p316 = scmp.ne.s32.totalorder %s307, %s308
      %p317 = scmp.eq.s32.totalorder %s46, 0
      %p318 = por %p316, %p317
      %p319 = scmp.ne.s32.totalorder %s307, %s308
      %p320 = scmp.eq.s32.totalorder %s47, 1
      %p321 = por %p319, %p320
      %p323 = scmp.ne.s32.totalorder %s308, %s322
      %p324 = scmp.eq.s32.totalorder %s47, 0
      %p325 = por %p323, %p324
      %s327 = sadd.s32 %s326, 1
      %p330 = scmp.eq.s32.totalorder %s41, 1
      %p331 = scmp.ne.s32.totalorder %s326, %s328
      %p332 = scmp.eq.s32.totalorder %s41, 0
      %p333 = por %p331, %p332
      %p334 = scmp.ne.s32.totalorder %s326, %s328
      %p335 = scmp.eq.s32.totalorder %s46, 1
      %p336 = por %p334, %p335
      %p337 = scmp.ne.s32.totalorder %s328, %s329
      %p338 = scmp.eq.s32.totalorder %s46, 0
      %p339 = por %p337, %p338
      %p340 = scmp.ne.s32.totalorder %s328, %s329
      %p341 = scmp.eq.s32.totalorder %s47, 1
      %p342 = por %p340, %p341
      %p344 = scmp.ne.s32.totalorder %s329, %s343
      %p345 = scmp.eq.s32.totalorder %s47, 0
      %p346 = por %p344, %p345
      %s348 = sadd.s32 %s347, 1
      %p351 = scmp.eq.s32.totalorder %s41, 1
      %p352 = scmp.ne.s32.totalorder %s347, %s349
      %p353 = scmp.eq.s32.totalorder %s41, 0
      %p354 = por %p352, %p353
      %p355 = scmp.ne.s32.totalorder %s347, %s349
      %p356 = scmp.eq.s32.totalorder %s46, 1
      %p357 = por %p355, %p356
      %p358 = scmp.ne.s32.totalorder %s349, %s350
      %p359 = scmp.eq.s32.totalorder %s46, 0
      %p360 = por %p358, %p359
      %p361 = scmp.ne.s32.totalorder %s349, %s350
      %p362 = scmp.eq.s32.totalorder %s47, 1
      %p363 = por %p361, %p362
      %p365 = scmp.ne.s32.totalorder %s350, %s364
      %p366 = scmp.eq.s32.totalorder %s47, 0
      %p367 = por %p365, %p366
      %s369 = sadd.s32 %s368, 1
      %p372 = scmp.eq.s32.totalorder %s41, 1
      %p373 = scmp.ne.s32.totalorder %s368, %s370
      %p374 = scmp.eq.s32.totalorder %s41, 0
      %p375 = por %p373, %p374
      %p376 = scmp.ne.s32.totalorder %s368, %s370
      %p377 = scmp.eq.s32.totalorder %s46, 1
      %p378 = por %p376, %p377
      %p379 = scmp.ne.s32.totalorder %s370, %s371
      %p380 = scmp.eq.s32.totalorder %s46, 0
      %p381 = por %p379, %p380
      %p382 = scmp.ne.s32.totalorder %s370, %s371
      %p383 = scmp.eq.s32.totalorder %s47, 1
      %p384 = por %p382, %p383
      %p386 = scmp.ne.s32.totalorder %s371, %s385
      %p387 = scmp.eq.s32.totalorder %s47, 0
      %p388 = por %p386, %p387
      %s390 = sadd.s32 %s389, 1
      %p393 = scmp.eq.s32.totalorder %s41, 1
      %p394 = scmp.ne.s32.totalorder %s389, %s391
      %p395 = scmp.eq.s32.totalorder %s41, 0
      %p396 = por %p394, %p395
      %p397 = scmp.ne.s32.totalorder %s389, %s391
      %p398 = scmp.eq.s32.totalorder %s46, 1
      %p399 = por %p397, %p398
      %p400 = scmp.ne.s32.totalorder %s391, %s392
      %p401 = scmp.eq.s32.totalorder %s46, 0
      %p402 = por %p400, %p401
      %p403 = scmp.ne.s32.totalorder %s391, %s392
      %p404 = scmp.eq.s32.totalorder %s47, 1
      %p405 = por %p403, %p404
      %p407 = scmp.ne.s32.totalorder %s392, %s406
      %p408 = scmp.eq.s32.totalorder %s47, 0
      %p409 = por %p407, %p408
      %s411 = sadd.s32 %s410, 1
      %p414 = scmp.eq.s32.totalorder %s41, 1
      %p415 = scmp.ne.s32.totalorder %s410, %s412
      %p416 = scmp.eq.s32.totalorder %s41, 0
      %p417 = por %p415, %p416
      %p418 = scmp.ne.s32.totalorder %s410, %s412
      %p419 = scmp.eq.s32.totalorder %s46, 1
      %p420 = por %p418, %p419
      %p421 = scmp.ne.s32.totalorder %s412, %s413
      %p422 = scmp.eq.s32.totalorder %s46, 0
      %p423 = por %p421, %p422
      %p424 = scmp.ne.s32.totalorder %s412, %s413
      %p425 = scmp.eq.s32.totalorder %s47, 1
      %p426 = por %p424, %p425
      %p428 = scmp.ne.s32.totalorder %s413, %s427
      %p429 = scmp.eq.s32.totalorder %s47, 0
      %p430 = por %p428, %p429
      %s432 = sadd.s32 %s431, 1
      %p435 = scmp.eq.s32.totalorder %s41, 1
      %p436 = scmp.ne.s32.totalorder %s431, %s433
      %p437 = scmp.eq.s32.totalorder %s41, 0
      %p438 = por %p436, %p437
      %p439 = scmp.ne.s32.totalorder %s431, %s433
      %p440 = scmp.eq.s32.totalorder %s46, 1
      %p441 = por %p439, %p440
      %p442 = scmp.ne.s32.totalorder %s433, %s434
      %p443 = scmp.eq.s32.totalorder %s46, 0
      %p444 = por %p442, %p443
      %p445 = scmp.ne.s32.totalorder %s433, %s434
      %p446 = scmp.eq.s32.totalorder %s47, 1
      %p447 = por %p445, %p446
      %p449 = scmp.ne.s32.totalorder %s434, %s448
      %p450 = scmp.eq.s32.totalorder %s47, 0
      %p451 = por %p449, %p450
      %s452 = ssub.s32 %s41, %s48
      %p453 = scmp.eq.s32.totalorder %s452, 0
      %s455 = sadd.s32 %s454, 1
      %s456 = scalar_select %p453, %s454, %s455
      %p459 = pneg %p453
      %p460 = scmp.eq.s32.totalorder %s41, 1
      %p461 = por %p459, %p460
      %p462 = scmp.ne.s32.totalorder %s454, %s457
      %p463 = scmp.eq.s32.totalorder %s41, 0
      %p464 = por %p462, %p463
      %p465 = scmp.ne.s32.totalorder %s454, %s457
      %p466 = scmp.eq.s32.totalorder %s46, 1
      %p467 = por %p465, %p466
      %p468 = scmp.ne.s32.totalorder %s457, %s458
      %p469 = scmp.eq.s32.totalorder %s46, 0
      %p470 = por %p468, %p469
      %p471 = scmp.ne.s32.totalorder %s457, %s458
      %p472 = scmp.eq.s32.totalorder %s47, 1
      %p473 = por %p471, %p472
      %p475 = scmp.ne.s32.totalorder %s458, %s474
      %p476 = scmp.eq.s32.totalorder %s47, 0
      %p477 = por %p475, %p476
      %s478 = ssub.s32 %s41, %s48
      %p479 = scmp.eq.s32.totalorder %s478, 0
      %s481 = sadd.s32 %s480, 1
      %s482 = scalar_select %p479, %s480, %s481
      %p485 = pneg %p479
      %p486 = scmp.eq.s32.totalorder %s41, 1
      %p487 = por %p485, %p486
      %p488 = scmp.ne.s32.totalorder %s480, %s483
      %p489 = scmp.eq.s32.totalorder %s41, 0
      %p490 = por %p488, %p489
      %p491 = scmp.ne.s32.totalorder %s480, %s483
      %p492 = scmp.eq.s32.totalorder %s46, 1
      %p493 = por %p491, %p492
      %p494 = scmp.ne.s32.totalorder %s483, %s484
      %p495 = scmp.eq.s32.totalorder %s46, 0
      %p496 = por %p494, %p495
      %p497 = scmp.ne.s32.totalorder %s483, %s484
      %p498 = scmp.eq.s32.totalorder %s47, 1
      %p499 = por %p497, %p498
      %p501 = scmp.ne.s32.totalorder %s484, %s500
      %p502 = scmp.eq.s32.totalorder %s47, 0
      %p503 = por %p501, %p502
      %p504 = scmp.le.s32.totalorder 1, %s41
      %p505 = scmp.lt.s32.totalorder %s41, 3
      %p506 = pnand %p504, %p505
      %p507 = pneg %p506
      // Predicated region
      $region9: #{tpu_custom_call.1} parent=5 // pred_check
        _
      $region10: #{tpu_custom_call.1} parent=5 // pred_check_branch
        %509 = sbr.rel (%p506) target = $region12
      $region11: #{tpu_custom_call.1} parent=5 // pred_region
        %s510 = ssub.s32 %s41, 1
        // Predicated region
        $region13: #{tpu_custom_call.1} parent=11 // pred_check
          %p511 = pneg %p192
        $region14: #{tpu_custom_call.1} parent=11 // pred_check_branch
          %513 = sbr.rel (%p511) target = $region16
        $region15: #{tpu_custom_call.1} parent=11 // pred_region
          %s515 = ssub.s32 64, 64
          %516 = vsyncadd [#allocation9], %s515
          %s518 = sshll.u32 [#allocation8], 4
          %s519 = int_to_ptr.vmem [resolvable:$true] %s518
          %521 = dma.hbm_to_vmem [thread:$0]  %s5, 64, %s519, [#allocation9]
        $region16: #{tpu_custom_call.1} parent=11 // pred_fallthru
          _
        // Predicated region
        $region17: #{tpu_custom_call.1} parent=11 // pred_check
          %p522 = pneg %p213
        $region18: #{tpu_custom_call.1} parent=11 // pred_check_branch
          %524 = sbr.rel (%p522) target = $region20
        $region19: #{tpu_custom_call.1} parent=11 // pred_region
          %s526 = ssub.s32 64, 64
          %527 = vsyncadd [#allocation9], %s526
          %s529 = sshll.u32 [#allocation10], 4
          %s530 = int_to_ptr.vmem [resolvable:$true] %s529
          %532 = dma.hbm_to_vmem [thread:$0]  %s6, 64, %s530, [#allocation9]
        $region20: #{tpu_custom_call.1} parent=11 // pred_fallthru
          _
        // Predicated region
        $region21: #{tpu_custom_call.1} parent=11 // pred_check
          %p533 = pneg %p234
        $region22: #{tpu_custom_call.1} parent=11 // pred_check_branch
          %535 = sbr.rel (%p533) target = $region24
        $region23: #{tpu_custom_call.1} parent=11 // pred_region
          %s537 = ssub.s32 64, 64
          %538 = vsyncadd [#allocation12], %s537
          %s540 = sshll.u32 [#allocation11], 4
          %s541 = int_to_ptr.vmem [resolvable:$true] %s540
          %543 = dma.hbm_to_vmem [thread:$0]  %s7, 64, %s541, [#allocation12]
        $region24: #{tpu_custom_call.1} parent=11 // pred_fallthru
          _
        // Predicated region
        $region25: #{tpu_custom_call.1} parent=11 // pred_check
          %p544 = pneg %p255
        $region26: #{tpu_custom_call.1} parent=11 // pred_check_branch
          %546 = sbr.rel (%p544) target = $region28
        $region27: #{tpu_custom_call.1} parent=11 // pred_region
          %s548 = ssub.s32 256, 256
          %549 = vsyncadd [#allocation12], %s548
          %s550 = sshll.u32 [#allocation13], 4
          %s551 = int_to_ptr.vmem [resolvable:$true] %s550
          %556 = dma.hbm_to_vmem [thread:$0]  %s8, 256, %s551, [#allocation12], 64, 64, 4
        $region28: #{tpu_custom_call.1} parent=11 // pred_fallthru
          _
        // Predicated region
        $region29: #{tpu_custom_call.1} parent=11 // pred_check
          %p557 = pneg %p276
        $region30: #{tpu_custom_call.1} parent=11 // pred_check_branch
          %559 = sbr.rel (%p557) target = $region32
        $region31: #{tpu_custom_call.1} parent=11 // pred_region
          %s561 = ssub.s32 16, 16
          %562 = vsyncadd [#allocation15], %s561
          %s564 = sshll.u32 [#allocation14], 4
          %s565 = int_to_ptr.vmem [resolvable:$true] %s564
          %567 = dma.hbm_to_vmem [thread:$0]  %s9, 16, %s565, [#allocation15]
        $region32: #{tpu_custom_call.1} parent=11 // pred_fallthru
          _
        // Predicated region
        $region33: #{tpu_custom_call.1} parent=11 // pred_check
          %p568 = pneg %p297
        $region34: #{tpu_custom_call.1} parent=11 // pred_check_branch
          %570 = sbr.rel (%p568) target = $region36
        $region35: #{tpu_custom_call.1} parent=11 // pred_region
          _
        $region36: #{tpu_custom_call.1} parent=11 // pred_fallthru
          _
        // Predicated region
        $region37: #{tpu_custom_call.1} parent=11 // pred_check
          %p571 = pneg %p318
        $region38: #{tpu_custom_call.1} parent=11 // pred_check_branch
          %573 = sbr.rel (%p571) target = $region40
        $region39: #{tpu_custom_call.1} parent=11 // pred_region
          _
        $region40: #{tpu_custom_call.1} parent=11 // pred_fallthru
          _
        // Predicated region
        $region41: #{tpu_custom_call.1} parent=11 // pred_check
          %p574 = pneg %p339
        $region42: #{tpu_custom_call.1} parent=11 // pred_check_branch
          %576 = sbr.rel (%p574) target = $region44
        $region43: #{tpu_custom_call.1} parent=11 // pred_region
          _
        $region44: #{tpu_custom_call.1} parent=11 // pred_fallthru
          _
        // Predicated region
        $region45: #{tpu_custom_call.1} parent=11 // pred_check
          %p577 = pneg %p360
        $region46: #{tpu_custom_call.1} parent=11 // pred_check_branch
          %579 = sbr.rel (%p577) target = $region48
        $region47: #{tpu_custom_call.1} parent=11 // pred_region
          _
        $region48: #{tpu_custom_call.1} parent=11 // pred_fallthru
          _
        // Predicated region
        $region49: #{tpu_custom_call.1} parent=11 // pred_check
          %p580 = pneg %p381
        $region50: #{tpu_custom_call.1} parent=11 // pred_check_branch
          %582 = sbr.rel (%p580) target = $region52
        $region51: #{tpu_custom_call.1} parent=11 // pred_region
          _
        $region52: #{tpu_custom_call.1} parent=11 // pred_fallthru
          _
        // Predicated region
        $region53: #{tpu_custom_call.1} parent=11 // pred_check
          %p583 = pneg %p402
        $region54: #{tpu_custom_call.1} parent=11 // pred_check_branch
          %585 = sbr.rel (%p583) target = $region56
        $region55: #{tpu_custom_call.1} parent=11 // pred_region
          _
        $region56: #{tpu_custom_call.1} parent=11 // pred_fallthru
          _
        // Predicated region
        $region57: #{tpu_custom_call.1} parent=11 // pred_check
          %p586 = pneg %p423
        $region58: #{tpu_custom_call.1} parent=11 // pred_check_branch
          %588 = sbr.rel (%p586) target = $region60
        $region59: #{tpu_custom_call.1} parent=11 // pred_region
          _
        $region60: #{tpu_custom_call.1} parent=11 // pred_fallthru
          _
        // Predicated region
        $region61: #{tpu_custom_call.1} parent=11 // pred_check
          %p589 = pneg %p444
        $region62: #{tpu_custom_call.1} parent=11 // pred_check_branch
          %591 = sbr.rel (%p589) target = $region64
        $region63: #{tpu_custom_call.1} parent=11 // pred_region
          _
        $region64: #{tpu_custom_call.1} parent=11 // pred_fallthru
          _
      $region12: #{tpu_custom_call.1} parent=5 // pred_fallthru
        _
      %p592 = scmp.lt.s32.totalorder %s41, 2
      // Predicated region
      $region65: #{tpu_custom_call.1} parent=5 // pred_check
        %p593 = pneg %p592
      $region66: #{tpu_custom_call.1} parent=5 // pred_check_branch
        %595 = sbr.rel (%p593) target = $region68
      $region67: #{tpu_custom_call.1} parent=5 // pred_region
        // Predicated region
        $region69: #{tpu_custom_call.1} parent=67 // pred_check
          %p596 = pneg %p61
        $region70: #{tpu_custom_call.1} parent=67 // pred_check_branch
          %598 = sbr.rel (%p596) target = $region72
        $region71: #{tpu_custom_call.1} parent=67 // pred_region
          %p599 = scmp.lt.s32.totalorder %s41, 1
          %s600 = scalar_select %p599, %s41, 1
          %s601 = smul.addr %s600, 4
          %s602 = smul.addr %s601, 8
          %s603 = scalar_lea.vmem %s0, %s602
        $region72: #{tpu_custom_call.1} parent=67 // pred_fallthru
          _
        // Predicated region
        $region73: #{tpu_custom_call.1} parent=67 // pred_check
          %p604 = pneg %p87
        $region74: #{tpu_custom_call.1} parent=67 // pred_check_branch
          %606 = sbr.rel (%p604) target = $region76
        $region75: #{tpu_custom_call.1} parent=67 // pred_region
          %s607 = sand.u32 %s77, 1
          %s608 = scalar_lea.sflag [#allocation3], %s607
          %s609 = sand.u32 %s77, 1
          %s610 = smul.addr %s609, 32
          %s611 = scalar_lea.vmem [#allocation2], %s610
          %s613 = ssub.s32 512, 512
          %614 = vsyncadd %s608, %s613
          %s615 = smul.addr %s41, 4
          %s616 = smul.addr %s615, 128
          %s617 = scalar_lea.hbm %s1, %s616
          %s618 = sshll.u32 %s611, 4
          %s619 = int_to_ptr.vmem [resolvable:$true] %s618
          %624 = dma.hbm_to_vmem [thread:$0]  %s617, 512, %s619, %s608, 128, 128, 8
        $region76: #{tpu_custom_call.1} parent=67 // pred_fallthru
          _
        // Predicated region
        $region77: #{tpu_custom_call.1} parent=67 // pred_check
          %p625 = pneg %p113
        $region78: #{tpu_custom_call.1} parent=67 // pred_check_branch
          %627 = sbr.rel (%p625) target = $region80
        $region79: #{tpu_custom_call.1} parent=67 // pred_region
          %s628 = sand.u32 %s41, 1
          %s629 = scalar_lea.sflag [#allocation6], %s628
          %s630 = sand.u32 %s103, 1
          %s631 = smul.addr %s630, 32
          %s632 = scalar_lea.vmem [#allocation5], %s631
          %s634 = ssub.s32 512, 512
          %635 = vsyncadd %s629, %s634
          %s636 = smul.addr %s41, 4
          %s637 = smul.addr %s636, 128
          %s638 = scalar_lea.hbm %s2, %s637
          %s639 = sshll.u32 %s632, 4
          %s640 = int_to_ptr.vmem [resolvable:$true] %s639
          %645 = dma.hbm_to_vmem [thread:$0]  %s638, 512, %s640, %s629, 128, 128, 8
        $region80: #{tpu_custom_call.1} parent=67 // pred_fallthru
          _
        // Predicated region
        $region81: #{tpu_custom_call.1} parent=67 // pred_check
          %p646 = pneg %p139
        $region82: #{tpu_custom_call.1} parent=67 // pred_check_branch
          %648 = sbr.rel (%p646) target = $region84
        $region83: #{tpu_custom_call.1} parent=67 // pred_region
          %p649 = scmp.lt.s32.totalorder %s41, 1
          %s650 = scalar_select %p649, %s41, 1
          %s651 = smul.addr %s650, 8
          %s652 = scalar_lea.vmem %s3, %s651
        $region84: #{tpu_custom_call.1} parent=67 // pred_fallthru
          _
        // Predicated region
        $region85: #{tpu_custom_call.1} parent=67 // pred_check
          %p653 = pneg %p165
        $region86: #{tpu_custom_call.1} parent=67 // pred_check_branch
          %655 = sbr.rel (%p653) target = $region88
        $region87: #{tpu_custom_call.1} parent=67 // pred_region
          %s656 = sand.u32 %s41, 1
          %s657 = scalar_lea.sflag [#allocation6], %s656
          %s658 = sand.u32 %s155, 1
          %s659 = smul.addr %s658, 8
          %s660 = scalar_lea.vmem [#allocation7], %s659
          %s662 = ssub.s32 128, 128
          %663 = vsyncadd %s657, %s662
          %s664 = smul.addr %s41, 128
          %s665 = scalar_lea.hbm %s4, %s664
          %s667 = sshll.u32 %s660, 4
          %s668 = int_to_ptr.vmem [resolvable:$true] %s667
          %670 = dma.hbm_to_vmem [thread:$0]  %s665, 128, %s668, %s657
        $region88: #{tpu_custom_call.1} parent=67 // pred_fallthru
          _
      $region68: #{tpu_custom_call.1} parent=5 // pred_fallthru
        _
      %p671 = scmp.le.s32.totalorder 1, %s41
      %p672 = scmp.lt.s32.totalorder %s41, 3
      %p673 = pnand %p671, %p672
      %p674 = pneg %p673
      // Predicated region
      $region89: #{tpu_custom_call.1} parent=5 // pred_check
        _
      $region90: #{tpu_custom_call.1} parent=5 // pred_check_branch
        %676 = sbr.rel (%p673) target = $region92
      $region91: #{tpu_custom_call.1} parent=5 // pred_region
        %s677 = ssub.s32 %s41, 1
        %s678 = sand.u32 %s80, 1
        %s679 = scalar_lea.sflag [#allocation3], %s678
        %s680 = sand.u32 %s80, 1
        %s681 = smul.addr %s680, 32
        %s682 = scalar_lea.vmem [#allocation2], %s681
        // Predicated region
        $region93: #{tpu_custom_call.1} parent=91 // pred_check
          %p683 = pneg %p93
        $region94: #{tpu_custom_call.1} parent=91 // pred_check_branch
          %685 = sbr.rel (%p683) target = $region96
        $region95: #{tpu_custom_call.1} parent=91 // pred_region
          %686 = dma.done %s679, 512
        $region96: #{tpu_custom_call.1} parent=91 // pred_fallthru
          _
        %s687 = sand.u32 %s46, 1
        %s688 = scalar_lea.sflag [#allocation6], %s687
        %s689 = sand.u32 %s106, 1
        %s690 = smul.addr %s689, 32
        %s691 = scalar_lea.vmem [#allocation5], %s690
        // Predicated region
        $region97: #{tpu_custom_call.1} parent=91 // pred_check
          %p692 = pneg %p119
        $region98: #{tpu_custom_call.1} parent=91 // pred_check_branch
          %694 = sbr.rel (%p692) target = $region100
        $region99: #{tpu_custom_call.1} parent=91 // pred_region
          %695 = dma.done %s688, 512
        $region100: #{tpu_custom_call.1} parent=91 // pred_fallthru
          _
        %s696 = sand.u32 %s46, 1
        %s697 = scalar_lea.sflag [#allocation6], %s696
        %s698 = sand.u32 %s158, 1
        %s699 = smul.addr %s698, 8
        %s700 = scalar_lea.vmem [#allocation7], %s699
        // Predicated region
        $region101: #{tpu_custom_call.1} parent=91 // pred_check
          %p701 = pneg %p171
        $region102: #{tpu_custom_call.1} parent=91 // pred_check_branch
          %703 = sbr.rel (%p701) target = $region104
        $region103: #{tpu_custom_call.1} parent=91 // pred_region
          %704 = dma.done %s697, 128
        $region104: #{tpu_custom_call.1} parent=91 // pred_fallthru
          _
        // Predicated region
        $region105: #{tpu_custom_call.1} parent=91 // pred_check
          %p705 = pneg %p192
        $region106: #{tpu_custom_call.1} parent=91 // pred_check_branch
          %707 = sbr.rel (%p705) target = $region108
        $region107: #{tpu_custom_call.1} parent=91 // pred_region
          %708 = dma.done [#allocation9], 64
        $region108: #{tpu_custom_call.1} parent=91 // pred_fallthru
          _
        // Predicated region
        $region109: #{tpu_custom_call.1} parent=91 // pred_check
          %p709 = pneg %p213
        $region110: #{tpu_custom_call.1} parent=91 // pred_check_branch
          %711 = sbr.rel (%p709) target = $region112
        $region111: #{tpu_custom_call.1} parent=91 // pred_region
          %712 = dma.done [#allocation9], 64
        $region112: #{tpu_custom_call.1} parent=91 // pred_fallthru
          _
        // Predicated region
        $region113: #{tpu_custom_call.1} parent=91 // pred_check
          %p713 = pneg %p234
        $region114: #{tpu_custom_call.1} parent=91 // pred_check_branch
          %715 = sbr.rel (%p713) target = $region116
        $region115: #{tpu_custom_call.1} parent=91 // pred_region
          %716 = dma.done [#allocation12], 64
        $region116: #{tpu_custom_call.1} parent=91 // pred_fallthru
          _
        // Predicated region
        $region117: #{tpu_custom_call.1} parent=91 // pred_check
          %p717 = pneg %p255
        $region118: #{tpu_custom_call.1} parent=91 // pred_check_branch
          %719 = sbr.rel (%p717) target = $region120
        $region119: #{tpu_custom_call.1} parent=91 // pred_region
          %720 = dma.done [#allocation12], 256
        $region120: #{tpu_custom_call.1} parent=91 // pred_fallthru
          _
        // Predicated region
        $region121: #{tpu_custom_call.1} parent=91 // pred_check
          %p721 = pneg %p276
        $region122: #{tpu_custom_call.1} parent=91 // pred_check_branch
          %723 = sbr.rel (%p721) target = $region124
        $region123: #{tpu_custom_call.1} parent=91 // pred_region
          %724 = dma.done [#allocation15], 16
        $region124: #{tpu_custom_call.1} parent=91 // pred_fallthru
          _
        %p725 = scmp.lt.s32.totalorder %s46, 1
        %s726 = scalar_select %p725, %s46, 1
        %s727 = smul.addr %s726, 4
        %s728 = smul.addr %s727, 8
        %s729 = scalar_lea.vmem %s0, %s728
        %p730 = pneg %p67
        %p731 = pneg %p64
        %s732 = sand.u32 %s80, 1
        %s733 = scalar_lea.sflag [#allocation3], %s732
        %s734 = sand.u32 %s80, 1
        %s735 = smul.addr %s734, 32
        %s736 = scalar_lea.vmem [#allocation2], %s735
        %p737 = pneg %p93
        %p738 = pneg %p90
        %s739 = sand.u32 %s46, 1
        %s740 = scalar_lea.sflag [#allocation6], %s739
        %s741 = sand.u32 %s106, 1
        %s742 = smul.addr %s741, 32
        %s743 = scalar_lea.vmem [#allocation5], %s742
        %p744 = pneg %p119
        %p745 = pneg %p116
        %p746 = scmp.lt.s32.totalorder %s46, 1
        %s747 = scalar_select %p746, %s46, 1
        %s748 = smul.addr %s747, 8
        %s749 = scalar_lea.vmem %s3, %s748
        %p750 = pneg %p145
        %p751 = pneg %p142
        %s752 = sand.u32 %s46, 1
        %s753 = scalar_lea.sflag [#allocation6], %s752
        %s754 = sand.u32 %s158, 1
        %s755 = smul.addr %s754, 8
        %s756 = scalar_lea.vmem [#allocation7], %s755
        %p757 = pneg %p171
        %p758 = pneg %p168
        %p759 = pneg %p192
        %p760 = pneg %p189
        %p761 = pneg %p213
        %p762 = pneg %p210
        %p763 = pneg %p234
        %p764 = pneg %p231
        %p765 = pneg %p255
        %p766 = pneg %p252
        %p767 = pneg %p276
        %p768 = pneg %p273
        %p769 = pneg %p297
        %p770 = pneg %p294
        %p771 = pneg %p318
        %p772 = pneg %p315
        %p773 = pneg %p339
        %p774 = pneg %p336
        %p775 = pneg %p360
        %p776 = pneg %p357
        %p777 = pneg %p381
        %p778 = pneg %p378
        %p779 = pneg %p402
        %p780 = pneg %p399
        %p781 = pneg %p423
        %p782 = pneg %p420
        %p783 = pneg %p444
        %p784 = pneg %p441
        %p785 = pneg %p470
        %p786 = pneg %p467
        %s787 = sand.u32 %s457, 1
        %s788 = scalar_lea.sflag [#allocation4], %s787
        %s789 = sand.u32 %s457, 1
        %s790 = smul.addr %s789, 8
        %s791 = scalar_lea.vmem [#allocation16], %s790
        %p792 = pneg %p496
        %p793 = pneg %p493
        %s794 = sand.u32 %s483, 1
        %s795 = scalar_lea.sflag [#allocation18], %s794
        %s796 = sand.u32 %s483, 1
        %s797 = smul.addr %s796, 32
        %s798 = scalar_lea.vmem [#allocation17], %s797
        %p799 = scmp.lt.s32.totalorder %s46, 1
        %s800 = scalar_select %p799, %s46, 1
        %s801 = smul.addr %s800, 4
        %s802 = smul.addr %s801, 8
        %s803 = scalar_lea.vmem %s0, %s802
        %p804 = scmp.lt.s32.totalorder %s46, 1
        %s805 = scalar_select %p804, %s46, 1
        %s806 = smul.addr %s805, 8
        %s807 = scalar_lea.vmem %s3, %s806
        %v809 = vld [vmem:[%s803] sm:$0xff]
        %v810 = vld [vmem:[%s803 + $0x8] sm:$0xff]
        %v811 = vld [vmem:[%s803 + $0x10] sm:$0xff]
        %v812 = vld [vmem:[%s803 + $0x18] sm:$0xff]
        %v813 = vpack.c.bf16 %v810, %v809
        %v814 = vpack.c.bf16 %v812, %v811
        %v815 = vld [vmem:[#allocation8] sm:$0xf]
        %vm816 = vcmask 64512
        %v818 = vsel %vm816, %v813, 0
        %v821 = vsel %vm816, %v814, 0
        %vm823 = vcmask 1043456
        %v825 = vsel %vm823, %v815, 0
        %827 = vmatprep.subr.bf16.mxu0 0
        %828 = vmatpush1.bf16.msra.mxu0 0
        %829 = vmatprep.subr.bf16.mxu0 0
        %830 = vmatpush1.bf16.msra.mxu0 0
        %831 = vmatprep.subr.bf16.mxu0 0
        %832 = vmatpush1.bf16.msra.mxu0 0
        %833 = vmatprep.subr.bf16.mxu0 0
        %834 = vmatpush1.bf16.msra.mxu0 0
        %835 = vmatprep.subr.bf16.mxu0 0
        %836 = vmatpush1.bf16.msra.mxu0 0
        %837 = vmatprep.subr.bf16.mxu0 0
        %838 = vmatpush1.bf16.msra.mxu0 0
        %839 = vmatprep.subr.bf16.mxu0 0
        %840 = vmatpush1.bf16.msra.mxu0 0
        %841 = vmatprep.subr.bf16.mxu0 0
        %842 = vmatpush1.bf16.msra.mxu0 %v825
        %843 = vmatprep.subr.bf16.mxu0 0
        %844 = vmatpush2.bf16.msra.mxu0 0
        %845 = vmatprep.subr.bf16.mxu0 0
        %846 = vmatpush2.bf16.msra.mxu0 0
        %847 = vmatprep.subr.bf16.mxu0 0
        %848 = vmatpush2.bf16.msra.mxu0 0
        %849 = vmatprep.subr.bf16.mxu0 0
        %850 = vmatpush2.bf16.msra.mxu0 0
        %851 = vmatprep.subr.bf16.mxu0 0
        %852 = vmatpush2.bf16.msra.mxu0 0
        %853 = vmatprep.subr.bf16.mxu0 0
        %854 = vmatpush2.bf16.msra.mxu0 0
        %855 = vmatprep.subr.bf16.mxu0 0
        %856 = vmatpush2.bf16.msra.mxu0 0
        %857 = vmatprep.subr.bf16.mxu0 0
        %858 = vmatpush2.bf16.msra.mxu0 0
        %859 = vmatprep.mubr.bf16.mxu0 0
        %860 = vmatmul.mubr.bf16.gmra.mxu0 %v818
        %v861 = vpop.f32.mrf.mxu0
        %v862 = vadd.f32 0.0, %v861
        %v863 = vpop.f32.mrf.mxu0
        %v864 = vpop.f32.mrf.mxu0
        %v865 = vadd.f32 0.0, %v864
        %v866 = vpop.f32.mrf.mxu0
        %867 = vmatprep.mubr.bf16.mxu0 0
        %868 = vmatmul.mubr.bf16.gmra.mxu0 %v821
        %v869 = vpop.f32.mrf.mxu0
        %v870 = vadd.f32 0.0, %v869
        %v871 = vpop.f32.mrf.mxu0
        %v872 = vpop.f32.mrf.mxu0
        %v873 = vadd.f32 0.0, %v872
        %v874 = vpop.f32.mrf.mxu0
        %875 = vdwg.mxu0
        %v876 = vpack.c.bf16 %v862, %v862
        %v877 = vpack.c.bf16 %v865, %v865
        %v878 = vpack.c.bf16 %v870, %v870
        %v879 = vpack.c.bf16 %v873, %v873
        %v880 = vld [vmem:[%s682] sm:$0xff]
        %v881 = vld [vmem:[%s682 + $0x8] sm:$0xff]
        %v882 = vld [vmem:[%s682 + $0x10] sm:$0xff]
        %v883 = vld [vmem:[%s682 + $0x18] sm:$0xff]
        %v884 = vpack.c.bf16 %v881, %v880
        %v885 = vpack.c.bf16 %v883, %v882
        %v886 = vld [vmem:[#allocation10] sm:$0xf]
        %v888 = vsel %vm816, %v884, 0
        %v891 = vsel %vm816, %v885, 0
        %v894 = vsel %vm823, %v886, 0
        %896 = vmatprep.subr.bf16.mxu0 0
        %897 = vmatpush1.bf16.msra.mxu0 0
        %898 = vmatprep.subr.bf16.mxu0 0
        %899 = vmatpush1.bf16.msra.mxu0 0
        %900 = vmatprep.subr.bf16.mxu0 0
        %901 = vmatpush1.bf16.msra.mxu0 0
        %902 = vmatprep.subr.bf16.mxu0 0
        %903 = vmatpush1.bf16.msra.mxu0 0
        %904 = vmatprep.subr.bf16.mxu0 0
        %905 = vmatpush1.bf16.msra.mxu0 0
        %906 = vmatprep.subr.bf16.mxu0 0
        %907 = vmatpush1.bf16.msra.mxu0 0
        %908 = vmatprep.subr.bf16.mxu0 0
        %909 = vmatpush1.bf16.msra.mxu0 0
        %910 = vmatprep.subr.bf16.mxu0 0
        %911 = vmatpush1.bf16.msra.mxu0 %v894
        %912 = vmatprep.subr.bf16.mxu0 0
        %913 = vmatpush2.bf16.msra.mxu0 0
        %914 = vmatprep.subr.bf16.mxu0 0
        %915 = vmatpush2.bf16.msra.mxu0 0
        %916 = vmatprep.subr.bf16.mxu0 0
        %917 = vmatpush2.bf16.msra.mxu0 0
        %918 = vmatprep.subr.bf16.mxu0 0
        %919 = vmatpush2.bf16.msra.mxu0 0
        %920 = vmatprep.subr.bf16.mxu0 0
        %921 = vmatpush2.bf16.msra.mxu0 0
        %922 = vmatprep.subr.bf16.mxu0 0
        %923 = vmatpush2.bf16.msra.mxu0 0
        %924 = vmatprep.subr.bf16.mxu0 0
        %925 = vmatpush2.bf16.msra.mxu0 0
        %926 = vmatprep.subr.bf16.mxu0 0
        %927 = vmatpush2.bf16.msra.mxu0 0
        %928 = vmatprep.mubr.bf16.mxu0 0
        %929 = vmatmul.mubr.bf16.gmra.mxu0 %v888
        %v930 = vpop.f32.mrf.mxu0
        %v931 = vadd.f32 0.0, %v930
        %v932 = vpop.f32.mrf.mxu0
        %v933 = vpop.f32.mrf.mxu0
        %v934 = vadd.f32 0.0, %v933
        %v935 = vpop.f32.mrf.mxu0
        %936 = vmatprep.mubr.bf16.mxu0 0
        %937 = vmatmul.mubr.bf16.gmra.mxu0 %v891
        %v938 = vpop.f32.mrf.mxu0
        %v939 = vadd.f32 0.0, %v938
        %v940 = vpop.f32.mrf.mxu0
        %v941 = vpop.f32.mrf.mxu0
        %v942 = vadd.f32 0.0, %v941
        %v943 = vpop.f32.mrf.mxu0
        %944 = vdwg.mxu0
        %v945 = vpack.c.bf16 %v931, %v931
        %v946 = vpack.c.bf16 %v934, %v934
        %v947 = vpack.c.bf16 %v939, %v939
        %v948 = vpack.c.bf16 %v942, %v942
        %v949 = vld [vmem:[%s691] sm:$0xff]
        %v950 = vld [vmem:[%s691 + $0x8] sm:$0xff]
        %v951 = vld [vmem:[%s691 + $0x10] sm:$0xff]
        %v952 = vld [vmem:[%s691 + $0x18] sm:$0xff]
        %v953 = vpack.c.bf16 %v950, %v949
        %v954 = vpack.c.bf16 %v952, %v951
        %v955 = vld [vmem:[#allocation11] sm:$0xf]
        %v957 = vsel %vm816, %v953, 0
        %v960 = vsel %vm816, %v954, 0
        %v963 = vsel %vm823, %v955, 0
        %965 = vmatprep.subr.bf16.mxu0 0
        %966 = vmatpush1.bf16.msra.mxu0 0
        %967 = vmatprep.subr.bf16.mxu0 0
        %968 = vmatpush1.bf16.msra.mxu0 0
        %969 = vmatprep.subr.bf16.mxu0 0
        %970 = vmatpush1.bf16.msra.mxu0 0
        %971 = vmatprep.subr.bf16.mxu0 0
        %972 = vmatpush1.bf16.msra.mxu0 0
        %973 = vmatprep.subr.bf16.mxu0 0
        %974 = vmatpush1.bf16.msra.mxu0 0
        %975 = vmatprep.subr.bf16.mxu0 0
        %976 = vmatpush1.bf16.msra.mxu0 0
        %977 = vmatprep.subr.bf16.mxu0 0
        %978 = vmatpush1.bf16.msra.mxu0 0
        %979 = vmatprep.subr.bf16.mxu0 0
        %980 = vmatpush1.bf16.msra.mxu0 %v963
        %981 = vmatprep.subr.bf16.mxu0 0
        %982 = vmatpush2.bf16.msra.mxu0 0
        %983 = vmatprep.subr.bf16.mxu0 0
        %984 = vmatpush2.bf16.msra.mxu0 0
        %985 = vmatprep.subr.bf16.mxu0 0
        %986 = vmatpush2.bf16.msra.mxu0 0
        %987 = vmatprep.subr.bf16.mxu0 0
        %988 = vmatpush2.bf16.msra.mxu0 0
        %989 = vmatprep.subr.bf16.mxu0 0
        %990 = vmatpush2.bf16.msra.mxu0 0
        %991 = vmatprep.subr.bf16.mxu0 0
        %992 = vmatpush2.bf16.msra.mxu0 0
        %993 = vmatprep.subr.bf16.mxu0 0
        %994 = vmatpush2.bf16.msra.mxu0 0
        %995 = vmatprep.subr.bf16.mxu0 0
        %996 = vmatpush2.bf16.msra.mxu0 0
        %997 = vmatprep.mubr.bf16.mxu0 0
        %998 = vmatmul.mubr.bf16.gmra.mxu0 %v957
        %v999 = vpop.f32.mrf.mxu0
        %v1000 = vadd.f32 0.0, %v999
        %v1001 = vpop.f32.mrf.mxu0
        %v1002 = vpop.f32.mrf.mxu0
        %v1003 = vadd.f32 0.0, %v1002
        %v1004 = vpop.f32.mrf.mxu0
        %1005 = vmatprep.mubr.bf16.mxu0 0
        %1006 = vmatmul.mubr.bf16.gmra.mxu0 %v960
        %v1007 = vpop.f32.mrf.mxu0
        %v1008 = vadd.f32 0.0, %v1007
        %v1009 = vpop.f32.mrf.mxu0
        %v1010 = vpop.f32.mrf.mxu0
        %v1011 = vadd.f32 0.0, %v1010
        %v1012 = vpop.f32.mrf.mxu0
        %1013 = vdwg.mxu0
        %v1014 = vpack.c.bf16 %v1000, %v1000
        %v1015 = vpack.c.bf16 %v1003, %v1003
        %v1016 = vpack.c.bf16 %v1008, %v1008
        %v1017 = vpack.c.bf16 %v1011, %v1011
        %v1019 = vsel %vm816, %v1014, 0
        %v1022 = vsel %vm816, %v945, 0
        %1024 = vmatprep.subr.bf16.mxu0 0
        %1025 = vmatpush1.bf16.xpose.msra.mxu0 0
        %1026 = vmatprep.subr.bf16.mxu0 0
        %1027 = vmatpush1.bf16.xpose.msra.mxu0 0
        %1028 = vmatprep.subr.bf16.mxu0 0
        %1029 = vmatpush1.bf16.xpose.msra.mxu0 0
        %1030 = vmatprep.subr.bf16.mxu0 0
        %1031 = vmatpush1.bf16.xpose.msra.mxu0 0
        %1032 = vmatprep.subr.bf16.mxu0 0
        %1033 = vmatpush1.bf16.xpose.msra.mxu0 0
        %1034 = vmatprep.subr.bf16.mxu0 0
        %1035 = vmatpush1.bf16.xpose.msra.mxu0 0
        %1036 = vmatprep.subr.bf16.mxu0 0
        %1037 = vmatpush1.bf16.xpose.msra.mxu0 0
        %1038 = vmatprep.subr.bf16.mxu0 0
        %1039 = vmatpush1.bf16.xpose.msra.mxu0 %v1022
        %1040 = vmatprep.subr.bf16.mxu0 0
        %1041 = vmatpush2.bf16.xpose.msra.mxu0 0
        %1042 = vmatprep.subr.bf16.mxu0 0
        %1043 = vmatpush2.bf16.xpose.msra.mxu0 0
        %1044 = vmatprep.subr.bf16.mxu0 0
        %1045 = vmatpush2.bf16.xpose.msra.mxu0 0
        %1046 = vmatprep.subr.bf16.mxu0 0
        %1047 = vmatpush2.bf16.xpose.msra.mxu0 0
        %1048 = vmatprep.subr.bf16.mxu0 0
        %1049 = vmatpush2.bf16.xpose.msra.mxu0 0
        %1050 = vmatprep.subr.bf16.mxu0 0
        %1051 = vmatpush2.bf16.xpose.msra.mxu0 0
        %1052 = vmatprep.subr.bf16.mxu0 0
        %1053 = vmatpush2.bf16.xpose.msra.mxu0 0
        %1054 = vmatprep.subr.bf16.mxu0 0
        %1055 = vmatpush2.bf16.xpose.msra.mxu0 0
        %1056 = vmatprep.mubr.bf16.mxu0 0
        %1057 = vmatmul.mubr.bf16.gmra.mxu0 %v1019
        %v1058 = vpop.f32.mrf.mxu0
        %v1059 = vadd.f32 0.0, %v1058
        %v1060 = vpop.f32.mrf.mxu0
        %v1061 = vpop.f32.mrf.mxu0
        %v1062 = vpop.f32.mrf.mxu0
        %1063 = vdwg.mxu0
        %v1065 = vsel %vm816, %v1015, 0
        %v1068 = vsel %vm816, %v946, 0
        %1070 = vmatprep.subr.bf16.mxu0 0
        %1071 = vmatpush1.bf16.xpose.msra.mxu0 0
        %1072 = vmatprep.subr.bf16.mxu0 0
        %1073 = vmatpush1.bf16.xpose.msra.mxu0 0
        %1074 = vmatprep.subr.bf16.mxu0 0
        %1075 = vmatpush1.bf16.xpose.msra.mxu0 0
        %1076 = vmatprep.subr.bf16.mxu0 0
        %1077 = vmatpush1.bf16.xpose.msra.mxu0 0
        %1078 = vmatprep.subr.bf16.mxu0 0
        %1079 = vmatpush1.bf16.xpose.msra.mxu0 0
        %1080 = vmatprep.subr.bf16.mxu0 0
        %1081 = vmatpush1.bf16.xpose.msra.mxu0 0
        %1082 = vmatprep.subr.bf16.mxu0 0
        %1083 = vmatpush1.bf16.xpose.msra.mxu0 0
        %1084 = vmatprep.subr.bf16.mxu0 0
        %1085 = vmatpush1.bf16.xpose.msra.mxu0 %v1068
        %1086 = vmatprep.subr.bf16.mxu0 0
        %1087 = vmatpush2.bf16.xpose.msra.mxu0 0
        %1088 = vmatprep.subr.bf16.mxu0 0
        %1089 = vmatpush2.bf16.xpose.msra.mxu0 0
        %1090 = vmatprep.subr.bf16.mxu0 0
        %1091 = vmatpush2.bf16.xpose.msra.mxu0 0
        %1092 = vmatprep.subr.bf16.mxu0 0
        %1093 = vmatpush2.bf16.xpose.msra.mxu0 0
        %1094 = vmatprep.subr.bf16.mxu0 0
        %1095 = vmatpush2.bf16.xpose.msra.mxu0 0
        %1096 = vmatprep.subr.bf16.mxu0 0
        %1097 = vmatpush2.bf16.xpose.msra.mxu0 0
        %1098 = vmatprep.subr.bf16.mxu0 0
        %1099 = vmatpush2.bf16.xpose.msra.mxu0 0
        %1100 = vmatprep.subr.bf16.mxu0 0
        %1101 = vmatpush2.bf16.xpose.msra.mxu0 0
        %1102 = vmatprep.mubr.bf16.mxu0 0
        %1103 = vmatmul.mubr.bf16.gmra.mxu0 %v1065
        %v1104 = vpop.f32.mrf.mxu0
        %v1105 = vadd.f32 0.0, %v1104
        %v1106 = vpop.f32.mrf.mxu0
        %v1107 = vpop.f32.mrf.mxu0
        %v1108 = vpop.f32.mrf.mxu0
        %1109 = vdwg.mxu0
        %v1111 = vsel %vm816, %v1016, 0
        %v1114 = vsel %vm816, %v947, 0
        %1116 = vmatprep.subr.bf16.mxu0 0
        %1117 = vmatpush1.bf16.xpose.msra.mxu0 0
        %1118 = vmatprep.subr.bf16.mxu0 0
        %1119 = vmatpush1.bf16.xpose.msra.mxu0 0
        %1120 = vmatprep.subr.bf16.mxu0 0
        %1121 = vmatpush1.bf16.xpose.msra.mxu0 0
        %1122 = vmatprep.subr.bf16.mxu0 0
        %1123 = vmatpush1.bf16.xpose.msra.mxu0 0
        %1124 = vmatprep.subr.bf16.mxu0 0
        %1125 = vmatpush1.bf16.xpose.msra.mxu0 0
        %1126 = vmatprep.subr.bf16.mxu0 0
        %1127 = vmatpush1.bf16.xpose.msra.mxu0 0
        %1128 = vmatprep.subr.bf16.mxu0 0
        %1129 = vmatpush1.bf16.xpose.msra.mxu0 0
        %1130 = vmatprep.subr.bf16.mxu0 0
        %1131 = vmatpush1.bf16.xpose.msra.mxu0 %v1114
        %1132 = vmatprep.subr.bf16.mxu0 0
        %1133 = vmatpush2.bf16.xpose.msra.mxu0 0
        %1134 = vmatprep.subr.bf16.mxu0 0
        %1135 = vmatpush2.bf16.xpose.msra.mxu0 0
        %1136 = vmatprep.subr.bf16.mxu0 0
        %1137 = vmatpush2.bf16.xpose.msra.mxu0 0
        %1138 = vmatprep.subr.bf16.mxu0 0
        %1139 = vmatpush2.bf16.xpose.msra.mxu0 0
        %1140 = vmatprep.subr.bf16.mxu0 0
        %1141 = vmatpush2.bf16.xpose.msra.mxu0 0
        %1142 = vmatprep.subr.bf16.mxu0 0
        %1143 = vmatpush2.bf16.xpose.msra.mxu0 0
        %1144 = vmatprep.subr.bf16.mxu0 0
        %1145 = vmatpush2.bf16.xpose.msra.mxu0 0
        %1146 = vmatprep.subr.bf16.mxu0 0
        %1147 = vmatpush2.bf16.xpose.msra.mxu0 0
        %1148 = vmatprep.mubr.bf16.mxu0 0
        %1149 = vmatmul.mubr.bf16.gmra.mxu0 %v1111
        %v1150 = vpop.f32.mrf.mxu0
        %v1151 = vadd.f32 0.0, %v1150
        %v1152 = vpop.f32.mrf.mxu0
        %v1153 = vpop.f32.mrf.mxu0
        %v1154 = vpop.f32.mrf.mxu0
        %1155 = vdwg.mxu0
        %v1157 = vsel %vm816, %v1017, 0
        %v1160 = vsel %vm816, %v948, 0
        %1162 = vmatprep.subr.bf16.mxu0 0
        %1163 = vmatpush1.bf16.xpose.msra.mxu0 0
        %1164 = vmatprep.subr.bf16.mxu0 0
        %1165 = vmatpush1.bf16.xpose.msra.mxu0 0
        %1166 = vmatprep.subr.bf16.mxu0 0
        %1167 = vmatpush1.bf16.xpose.msra.mxu0 0
        %1168 = vmatprep.subr.bf16.mxu0 0
        %1169 = vmatpush1.bf16.xpose.msra.mxu0 0
        %1170 = vmatprep.subr.bf16.mxu0 0
        %1171 = vmatpush1.bf16.xpose.msra.mxu0 0
        %1172 = vmatprep.subr.bf16.mxu0 0
        %1173 = vmatpush1.bf16.xpose.msra.mxu0 0
        %1174 = vmatprep.subr.bf16.mxu0 0
        %1175 = vmatpush1.bf16.xpose.msra.mxu0 0
        %1176 = vmatprep.subr.bf16.mxu0 0
        %1177 = vmatpush1.bf16.xpose.msra.mxu0 %v1160
        %1178 = vmatprep.subr.bf16.mxu0 0
        %1179 = vmatpush2.bf16.xpose.msra.mxu0 0
        %1180 = vmatprep.subr.bf16.mxu0 0
        %1181 = vmatpush2.bf16.xpose.msra.mxu0 0
        %1182 = vmatprep.subr.bf16.mxu0 0
        %1183 = vmatpush2.bf16.xpose.msra.mxu0 0
        %1184 = vmatprep.subr.bf16.mxu0 0
        %1185 = vmatpush2.bf16.xpose.msra.mxu0 0
        %1186 = vmatprep.subr.bf16.mxu0 0
        %1187 = vmatpush2.bf16.xpose.msra.mxu0 0
        %1188 = vmatprep.subr.bf16.mxu0 0
        %1189 = vmatpush2.bf16.xpose.msra.mxu0 0
        %1190 = vmatprep.subr.bf16.mxu0 0
        %1191 = vmatpush2.bf16.xpose.msra.mxu0 0
        %1192 = vmatprep.subr.bf16.mxu0 0
        %1193 = vmatpush2.bf16.xpose.msra.mxu0 0
        %1194 = vmatprep.mubr.bf16.mxu0 0
        %1195 = vmatmul.mubr.bf16.gmra.mxu0 %v1157
        %v1196 = vpop.f32.mrf.mxu0
        %v1197 = vadd.f32 0.0, %v1196
        %v1198 = vpop.f32.mrf.mxu0
        %v1199 = vpop.f32.mrf.mxu0
        %v1200 = vpop.f32.mrf.mxu0
        %1201 = vdwg.mxu0
        %v1202 = vld [vmem:[%s700] sm:$0xff]
        %vm1203 = vcmp.eq.f32.partialorder %v1202, 0.0
        %v1204 = vsel %vm1203, -1e+20, 0.0
        %v1205 = vadd.f32 %v1059, %v1204
        %v1206 = vadd.f32 %v1105, %v1204
        %v1207 = vadd.f32 %v1151, %v1204
        %v1208 = vadd.f32 %v1197, %v1204
        %v1209 = vsel %vm816, %v1205, -inf
        %1210 = vmax.xlane.f32.xlu0 %v1209
        %v1211 = vpop.xlane.xlu0 %1210
        %v1212 = vsel %vm816, %v1206, -inf
        %1213 = vmax.xlane.f32.xlu0 %v1212
        %v1214 = vpop.xlane.xlu0 %1213
        %v1215 = vsel %vm816, %v1207, -inf
        %1216 = vmax.xlane.f32.xlu0 %v1215
        %v1217 = vpop.xlane.xlu0 %1216
        %v1218 = vsel %vm816, %v1208, -inf
        %1219 = vmax.xlane.f32.xlu0 %v1218
        %v1220 = vpop.xlane.xlu0 %1219
        %v1221 = vsub.f32 %v1205, %v1211
        %v1222 = vsub.f32 %v1206, %v1214
        %v1223 = vsub.f32 %v1207, %v1217
        %v1224 = vsub.f32 %v1208, %v1220
        %v1225 = vmul.f32 %v1221, 1.442695
        %v1226 = vpow.pop %v1225
        %v1227 = vmul.f32 %v1222, 1.442695
        %v1228 = vpow.pop %v1227
        %v1229 = vmul.f32 %v1223, 1.442695
        %v1230 = vpow.pop %v1229
        %v1231 = vmul.f32 %v1224, 1.442695
        %v1232 = vpow.pop %v1231
        %v1233 = vsel %vm816, %v1226, 0.0
        %1234 = vadd.xlane.f32.xlu0 %v1233
        %v1235 = vpop.xlane.xlu0 %1234
        %v1236 = vsel %vm816, %v1228, 0.0
        %1237 = vadd.xlane.f32.xlu0 %v1236
        %v1238 = vpop.xlane.xlu0 %1237
        %v1239 = vsel %vm816, %v1230, 0.0
        %1240 = vadd.xlane.f32.xlu0 %v1239
        %v1241 = vpop.xlane.xlu0 %1240
        %v1242 = vsel %vm816, %v1232, 0.0
        %1243 = vadd.xlane.f32.xlu0 %v1242
        %v1244 = vpop.xlane.xlu0 %1243
        %v1245 = vrcp.pop %v1235
        %v1246 = vrcp.pop %v1238
        %v1247 = vrcp.pop %v1241
        %v1248 = vrcp.pop %v1244
        %v1249 = vmul.f32 %v1226, %v1245
        %v1250 = vmul.f32 %v1228, %v1246
        %v1251 = vmul.f32 %v1230, %v1247
        %v1252 = vmul.f32 %v1232, %v1248
        %1253 = vst.msk [vmem:[%s798] sm:$0xff] %vm816, %v1249
        %1254 = vst.msk [vmem:[%s798 + $0x8] sm:$0xff] %vm816, %v1250
        %1255 = vst.msk [vmem:[%s798 + $0x10] sm:$0xff] %vm816, %v1251
        %1256 = vst.msk [vmem:[%s798 + $0x18] sm:$0xff] %vm816, %v1252
        %v1257 = vpack.c.bf16 %v1249, %v1249
        %v1258 = vpack.c.bf16 %v1250, %v1250
        %v1259 = vpack.c.bf16 %v1251, %v1251
        %v1260 = vpack.c.bf16 %v1252, %v1252
        %v1262 = vsel %vm816, %v1257, 0
        %v1265 = vsel %vm823, %v876, 0
        %1267 = vmatprep.subr.bf16.mxu0 0
        %1268 = vmatpush1.bf16.msra.mxu0 0
        %1269 = vmatprep.subr.bf16.mxu0 0
        %1270 = vmatpush1.bf16.msra.mxu0 0
        %1271 = vmatprep.subr.bf16.mxu0 0
        %1272 = vmatpush1.bf16.msra.mxu0 0
        %1273 = vmatprep.subr.bf16.mxu0 0
        %1274 = vmatpush1.bf16.msra.mxu0 0
        %1275 = vmatprep.subr.bf16.mxu0 0
        %1276 = vmatpush1.bf16.msra.mxu0 0
        %1277 = vmatprep.subr.bf16.mxu0 0
        %1278 = vmatpush1.bf16.msra.mxu0 0
        %1279 = vmatprep.subr.bf16.mxu0 0
        %1280 = vmatpush1.bf16.msra.mxu0 0
        %1281 = vmatprep.subr.bf16.mxu0 0
        %1282 = vmatpush1.bf16.msra.mxu0 %v1265
        %1283 = vmatprep.subr.bf16.mxu0 0
        %1284 = vmatpush2.bf16.msra.mxu0 0
        %1285 = vmatprep.subr.bf16.mxu0 0
        %1286 = vmatpush2.bf16.msra.mxu0 0
        %1287 = vmatprep.subr.bf16.mxu0 0
        %1288 = vmatpush2.bf16.msra.mxu0 0
        %1289 = vmatprep.subr.bf16.mxu0 0
        %1290 = vmatpush2.bf16.msra.mxu0 0
        %1291 = vmatprep.subr.bf16.mxu0 0
        %1292 = vmatpush2.bf16.msra.mxu0 0
        %1293 = vmatprep.subr.bf16.mxu0 0
        %1294 = vmatpush2.bf16.msra.mxu0 0
        %1295 = vmatprep.subr.bf16.mxu0 0
        %1296 = vmatpush2.bf16.msra.mxu0 0
        %1297 = vmatprep.subr.bf16.mxu0 0
        %1298 = vmatpush2.bf16.msra.mxu0 0
        %1299 = vmatprep.mubr.bf16.mxu0 0
        %1300 = vmatmul.mubr.bf16.gmra.mxu0 %v1262
        %v1301 = vpop.f32.mrf.mxu0
        %v1302 = vadd.f32 0.0, %v1301
        %v1303 = vpop.f32.mrf.mxu0
        %v1304 = vpop.f32.mrf.mxu0
        %v1305 = vpop.f32.mrf.mxu0
        %1306 = vdwg.mxu0
        %v1308 = vsel %vm816, %v1258, 0
        %v1311 = vsel %vm823, %v877, 0
        %1313 = vmatprep.subr.bf16.mxu0 0
        %1314 = vmatpush1.bf16.msra.mxu0 0
        %1315 = vmatprep.subr.bf16.mxu0 0
        %1316 = vmatpush1.bf16.msra.mxu0 0
        %1317 = vmatprep.subr.bf16.mxu0 0
        %1318 = vmatpush1.bf16.msra.mxu0 0
        %1319 = vmatprep.subr.bf16.mxu0 0
        %1320 = vmatpush1.bf16.msra.mxu0 0
        %1321 = vmatprep.subr.bf16.mxu0 0
        %1322 = vmatpush1.bf16.msra.mxu0 0
        %1323 = vmatprep.subr.bf16.mxu0 0
        %1324 = vmatpush1.bf16.msra.mxu0 0
        %1325 = vmatprep.subr.bf16.mxu0 0
        %1326 = vmatpush1.bf16.msra.mxu0 0
        %1327 = vmatprep.subr.bf16.mxu0 0
        %1328 = vmatpush1.bf16.msra.mxu0 %v1311
        %1329 = vmatprep.subr.bf16.mxu0 0
        %1330 = vmatpush2.bf16.msra.mxu0 0
        %1331 = vmatprep.subr.bf16.mxu0 0
        %1332 = vmatpush2.bf16.msra.mxu0 0
        %1333 = vmatprep.subr.bf16.mxu0 0
        %1334 = vmatpush2.bf16.msra.mxu0 0
        %1335 = vmatprep.subr.bf16.mxu0 0
        %1336 = vmatpush2.bf16.msra.mxu0 0
        %1337 = vmatprep.subr.bf16.mxu0 0
        %1338 = vmatpush2.bf16.msra.mxu0 0
        %1339 = vmatprep.subr.bf16.mxu0 0
        %1340 = vmatpush2.bf16.msra.mxu0 0
        %1341 = vmatprep.subr.bf16.mxu0 0
        %1342 = vmatpush2.bf16.msra.mxu0 0
        %1343 = vmatprep.subr.bf16.mxu0 0
        %1344 = vmatpush2.bf16.msra.mxu0 0
        %1345 = vmatprep.mubr.bf16.mxu0 0
        %1346 = vmatmul.mubr.bf16.gmra.mxu0 %v1308
        %v1347 = vpop.f32.mrf.mxu0
        %v1348 = vadd.f32 0.0, %v1347
        %v1349 = vpop.f32.mrf.mxu0
        %v1350 = vpop.f32.mrf.mxu0
        %v1351 = vpop.f32.mrf.mxu0
        %1352 = vdwg.mxu0
        %v1354 = vsel %vm816, %v1259, 0
        %v1357 = vsel %vm823, %v878, 0
        %1359 = vmatprep.subr.bf16.mxu0 0
        %1360 = vmatpush1.bf16.msra.mxu0 0
        %1361 = vmatprep.subr.bf16.mxu0 0
        %1362 = vmatpush1.bf16.msra.mxu0 0
        %1363 = vmatprep.subr.bf16.mxu0 0
        %1364 = vmatpush1.bf16.msra.mxu0 0
        %1365 = vmatprep.subr.bf16.mxu0 0
        %1366 = vmatpush1.bf16.msra.mxu0 0
        %1367 = vmatprep.subr.bf16.mxu0 0
        %1368 = vmatpush1.bf16.msra.mxu0 0
        %1369 = vmatprep.subr.bf16.mxu0 0
        %1370 = vmatpush1.bf16.msra.mxu0 0
        %1371 = vmatprep.subr.bf16.mxu0 0
        %1372 = vmatpush1.bf16.msra.mxu0 0
        %1373 = vmatprep.subr.bf16.mxu0 0
        %1374 = vmatpush1.bf16.msra.mxu0 %v1357
        %1375 = vmatprep.subr.bf16.mxu0 0
        %1376 = vmatpush2.bf16.msra.mxu0 0
        %1377 = vmatprep.subr.bf16.mxu0 0
        %1378 = vmatpush2.bf16.msra.mxu0 0
        %1379 = vmatprep.subr.bf16.mxu0 0
        %1380 = vmatpush2.bf16.msra.mxu0 0
        %1381 = vmatprep.subr.bf16.mxu0 0
        %1382 = vmatpush2.bf16.msra.mxu0 0
        %1383 = vmatprep.subr.bf16.mxu0 0
        %1384 = vmatpush2.bf16.msra.mxu0 0
        %1385 = vmatprep.subr.bf16.mxu0 0
        %1386 = vmatpush2.bf16.msra.mxu0 0
        %1387 = vmatprep.subr.bf16.mxu0 0
        %1388 = vmatpush2.bf16.msra.mxu0 0
        %1389 = vmatprep.subr.bf16.mxu0 0
        %1390 = vmatpush2.bf16.msra.mxu0 0
        %1391 = vmatprep.mubr.bf16.mxu0 0
        %1392 = vmatmul.mubr.bf16.gmra.mxu0 %v1354
        %v1393 = vpop.f32.mrf.mxu0
        %v1394 = vadd.f32 0.0, %v1393
        %v1395 = vpop.f32.mrf.mxu0
        %v1396 = vpop.f32.mrf.mxu0
        %v1397 = vpop.f32.mrf.mxu0
        %1398 = vdwg.mxu0
        %v1400 = vsel %vm816, %v1260, 0
        %v1403 = vsel %vm823, %v879, 0
        %1405 = vmatprep.subr.bf16.mxu0 0
        %1406 = vmatpush1.bf16.msra.mxu0 0
        %1407 = vmatprep.subr.bf16.mxu0 0
        %1408 = vmatpush1.bf16.msra.mxu0 0
        %1409 = vmatprep.subr.bf16.mxu0 0
        %1410 = vmatpush1.bf16.msra.mxu0 0
        %1411 = vmatprep.subr.bf16.mxu0 0
        %1412 = vmatpush1.bf16.msra.mxu0 0
        %1413 = vmatprep.subr.bf16.mxu0 0
        %1414 = vmatpush1.bf16.msra.mxu0 0
        %1415 = vmatprep.subr.bf16.mxu0 0
        %1416 = vmatpush1.bf16.msra.mxu0 0
        %1417 = vmatprep.subr.bf16.mxu0 0
        %1418 = vmatpush1.bf16.msra.mxu0 0
        %1419 = vmatprep.subr.bf16.mxu0 0
        %1420 = vmatpush1.bf16.msra.mxu0 %v1403
        %1421 = vmatprep.subr.bf16.mxu0 0
        %1422 = vmatpush2.bf16.msra.mxu0 0
        %1423 = vmatprep.subr.bf16.mxu0 0
        %1424 = vmatpush2.bf16.msra.mxu0 0
        %1425 = vmatprep.subr.bf16.mxu0 0
        %1426 = vmatpush2.bf16.msra.mxu0 0
        %1427 = vmatprep.subr.bf16.mxu0 0
        %1428 = vmatpush2.bf16.msra.mxu0 0
        %1429 = vmatprep.subr.bf16.mxu0 0
        %1430 = vmatpush2.bf16.msra.mxu0 0
        %1431 = vmatprep.subr.bf16.mxu0 0
        %1432 = vmatpush2.bf16.msra.mxu0 0
        %1433 = vmatprep.subr.bf16.mxu0 0
        %1434 = vmatpush2.bf16.msra.mxu0 0
        %1435 = vmatprep.subr.bf16.mxu0 0
        %1436 = vmatpush2.bf16.msra.mxu0 0
        %1437 = vmatprep.mubr.bf16.mxu0 0
        %1438 = vmatmul.mubr.bf16.gmra.mxu0 %v1400
        %v1439 = vpop.f32.mrf.mxu0
        %v1440 = vadd.f32 0.0, %v1439
        %v1441 = vpop.f32.mrf.mxu0
        %v1442 = vpop.f32.mrf.mxu0
        %v1443 = vpop.f32.mrf.mxu0
        %1444 = vdwg.mxu0
        %v1445 = vpack.c.bf16 %v1302, %v1302
        %v1446 = vpack.c.bf16 %v1348, %v1348
        %v1447 = vpack.c.bf16 %v1394, %v1394
        %v1448 = vpack.c.bf16 %v1440, %v1440
        %v1449 = vld [vmem:[#allocation13] sm:$0xf]
        %s1450 = scalar_lea.vmem [#allocation13], 4
        %v1451 = vld [vmem:[%s1450] sm:$0xf]
        %v1453 = vsel %vm816, %v1446, 0
        %v1456 = vsel %vm823, %v1451, 0
        %1458 = vmatprep.subr.bf16.mxu0 0
        %1459 = vmatpush1.bf16.msra.mxu0 0
        %1460 = vmatprep.subr.bf16.mxu0 0
        %1461 = vmatpush1.bf16.msra.mxu0 0
        %1462 = vmatprep.subr.bf16.mxu0 0
        %1463 = vmatpush1.bf16.msra.mxu0 0
        %1464 = vmatprep.subr.bf16.mxu0 0
        %1465 = vmatpush1.bf16.msra.mxu0 0
        %1466 = vmatprep.subr.bf16.mxu0 0
        %1467 = vmatpush1.bf16.msra.mxu0 0
        %1468 = vmatprep.subr.bf16.mxu0 0
        %1469 = vmatpush1.bf16.msra.mxu0 0
        %1470 = vmatprep.subr.bf16.mxu0 0
        %1471 = vmatpush1.bf16.msra.mxu0 0
        %1472 = vmatprep.subr.bf16.mxu0 0
        %1473 = vmatpush1.bf16.msra.mxu0 %v1456
        %1474 = vmatprep.subr.bf16.mxu0 0
        %1475 = vmatpush2.bf16.msra.mxu0 0
        %1476 = vmatprep.subr.bf16.mxu0 0
        %1477 = vmatpush2.bf16.msra.mxu0 0
        %1478 = vmatprep.subr.bf16.mxu0 0
        %1479 = vmatpush2.bf16.msra.mxu0 0
        %1480 = vmatprep.subr.bf16.mxu0 0
        %1481 = vmatpush2.bf16.msra.mxu0 0
        %1482 = vmatprep.subr.bf16.mxu0 0
        %1483 = vmatpush2.bf16.msra.mxu0 0
        %1484 = vmatprep.subr.bf16.mxu0 0
        %1485 = vmatpush2.bf16.msra.mxu0 0
        %1486 = vmatprep.subr.bf16.mxu0 0
        %1487 = vmatpush2.bf16.msra.mxu0 0
        %1488 = vmatprep.subr.bf16.mxu0 0
        %1489 = vmatpush2.bf16.msra.mxu0 0
        %1490 = vmatprep.mubr.bf16.mxu0 0
        %1491 = vmatmul.mubr.bf16.gmra.mxu0 %v1453
        %v1492 = vpop.f32.mrf.mxu0
        %v1493 = vadd.f32 0.0, %v1492
        %v1494 = vpop.f32.mrf.mxu0
        %v1495 = vpop.f32.mrf.mxu0
        %v1496 = vpop.f32.mrf.mxu0
        %1497 = vdwg.mxu0
        %v1499 = vsel %vm816, %v1445, 0
        %v1502 = vsel %vm823, %v1449, 0
        %1504 = vmatprep.subr.bf16.mxu0 0
        %1505 = vmatpush1.bf16.msra.mxu0 0
        %1506 = vmatprep.subr.bf16.mxu0 0
        %1507 = vmatpush1.bf16.msra.mxu0 0
        %1508 = vmatprep.subr.bf16.mxu0 0
        %1509 = vmatpush1.bf16.msra.mxu0 0
        %1510 = vmatprep.subr.bf16.mxu0 0
        %1511 = vmatpush1.bf16.msra.mxu0 0
        %1512 = vmatprep.subr.bf16.mxu0 0
        %1513 = vmatpush1.bf16.msra.mxu0 0
        %1514 = vmatprep.subr.bf16.mxu0 0
        %1515 = vmatpush1.bf16.msra.mxu0 0
        %1516 = vmatprep.subr.bf16.mxu0 0
        %1517 = vmatpush1.bf16.msra.mxu0 0
        %1518 = vmatprep.subr.bf16.mxu0 0
        %1519 = vmatpush1.bf16.msra.mxu0 %v1502
        %1520 = vmatprep.subr.bf16.mxu0 0
        %1521 = vmatpush2.bf16.msra.mxu0 0
        %1522 = vmatprep.subr.bf16.mxu0 0
        %1523 = vmatpush2.bf16.msra.mxu0 0
        %1524 = vmatprep.subr.bf16.mxu0 0
        %1525 = vmatpush2.bf16.msra.mxu0 0
        %1526 = vmatprep.subr.bf16.mxu0 0
        %1527 = vmatpush2.bf16.msra.mxu0 0
        %1528 = vmatprep.subr.bf16.mxu0 0
        %1529 = vmatpush2.bf16.msra.mxu0 0
        %1530 = vmatprep.subr.bf16.mxu0 0
        %1531 = vmatpush2.bf16.msra.mxu0 0
        %1532 = vmatprep.subr.bf16.mxu0 0
        %1533 = vmatpush2.bf16.msra.mxu0 0
        %1534 = vmatprep.subr.bf16.mxu0 0
        %1535 = vmatpush2.bf16.msra.mxu0 0
        %1536 = vmatprep.mubr.bf16.mxu0 0
        %1537 = vmatmul.mubr.bf16.gmra.mxu0 %v1499
        %v1538 = vpop.f32.mrf.mxu0
        %v1539 = vadd.f32 %v1493, %v1538
        %v1540 = vpop.f32.mrf.mxu0
        %v1541 = vpop.f32.mrf.mxu0
        %v1542 = vpop.f32.mrf.mxu0
        %1543 = vdwg.mxu0
        %s1544 = scalar_lea.vmem [#allocation13], 8
        %v1545 = vld [vmem:[%s1544] sm:$0xf]
        %v1547 = vsel %vm816, %v1447, 0
        %v1550 = vsel %vm823, %v1545, 0
        %1552 = vmatprep.subr.bf16.mxu0 0
        %1553 = vmatpush1.bf16.msra.mxu0 0
        %1554 = vmatprep.subr.bf16.mxu0 0
        %1555 = vmatpush1.bf16.msra.mxu0 0
        %1556 = vmatprep.subr.bf16.mxu0 0
        %1557 = vmatpush1.bf16.msra.mxu0 0
        %1558 = vmatprep.subr.bf16.mxu0 0
        %1559 = vmatpush1.bf16.msra.mxu0 0
        %1560 = vmatprep.subr.bf16.mxu0 0
        %1561 = vmatpush1.bf16.msra.mxu0 0
        %1562 = vmatprep.subr.bf16.mxu0 0
        %1563 = vmatpush1.bf16.msra.mxu0 0
        %1564 = vmatprep.subr.bf16.mxu0 0
        %1565 = vmatpush1.bf16.msra.mxu0 0
        %1566 = vmatprep.subr.bf16.mxu0 0
        %1567 = vmatpush1.bf16.msra.mxu0 %v1550
        %1568 = vmatprep.subr.bf16.mxu0 0
        %1569 = vmatpush2.bf16.msra.mxu0 0
        %1570 = vmatprep.subr.bf16.mxu0 0
        %1571 = vmatpush2.bf16.msra.mxu0 0
        %1572 = vmatprep.subr.bf16.mxu0 0
        %1573 = vmatpush2.bf16.msra.mxu0 0
        %1574 = vmatprep.subr.bf16.mxu0 0
        %1575 = vmatpush2.bf16.msra.mxu0 0
        %1576 = vmatprep.subr.bf16.mxu0 0
        %1577 = vmatpush2.bf16.msra.mxu0 0
        %1578 = vmatprep.subr.bf16.mxu0 0
        %1579 = vmatpush2.bf16.msra.mxu0 0
        %1580 = vmatprep.subr.bf16.mxu0 0
        %1581 = vmatpush2.bf16.msra.mxu0 0
        %1582 = vmatprep.subr.bf16.mxu0 0
        %1583 = vmatpush2.bf16.msra.mxu0 0
        %1584 = vmatprep.mubr.bf16.mxu0 0
        %1585 = vmatmul.mubr.bf16.gmra.mxu0 %v1547
        %v1586 = vpop.f32.mrf.mxu0
        %v1587 = vadd.f32 0.0, %v1586
        %v1588 = vpop.f32.mrf.mxu0
        %v1589 = vpop.f32.mrf.mxu0
        %v1590 = vpop.f32.mrf.mxu0
        %1591 = vdwg.mxu0
        %v1592 = vadd.f32 %v1539, %v1587
        %s1593 = scalar_lea.vmem [#allocation13], 12
        %v1594 = vld [vmem:[%s1593] sm:$0xf]
        %v1596 = vsel %vm816, %v1448, 0
        %v1599 = vsel %vm823, %v1594, 0
        %1601 = vmatprep.subr.bf16.mxu0 0
        %1602 = vmatpush1.bf16.msra.mxu0 0
        %1603 = vmatprep.subr.bf16.mxu0 0
        %1604 = vmatpush1.bf16.msra.mxu0 0
        %1605 = vmatprep.subr.bf16.mxu0 0
        %1606 = vmatpush1.bf16.msra.mxu0 0
        %1607 = vmatprep.subr.bf16.mxu0 0
        %1608 = vmatpush1.bf16.msra.mxu0 0
        %1609 = vmatprep.subr.bf16.mxu0 0
        %1610 = vmatpush1.bf16.msra.mxu0 0
        %1611 = vmatprep.subr.bf16.mxu0 0
        %1612 = vmatpush1.bf16.msra.mxu0 0
        %1613 = vmatprep.subr.bf16.mxu0 0
        %1614 = vmatpush1.bf16.msra.mxu0 0
        %1615 = vmatprep.subr.bf16.mxu0 0
        %1616 = vmatpush1.bf16.msra.mxu0 %v1599
        %1617 = vmatprep.subr.bf16.mxu0 0
        %1618 = vmatpush2.bf16.msra.mxu0 0
        %1619 = vmatprep.subr.bf16.mxu0 0
        %1620 = vmatpush2.bf16.msra.mxu0 0
        %1621 = vmatprep.subr.bf16.mxu0 0
        %1622 = vmatpush2.bf16.msra.mxu0 0
        %1623 = vmatprep.subr.bf16.mxu0 0
        %1624 = vmatpush2.bf16.msra.mxu0 0
        %1625 = vmatprep.subr.bf16.mxu0 0
        %1626 = vmatpush2.bf16.msra.mxu0 0
        %1627 = vmatprep.subr.bf16.mxu0 0
        %1628 = vmatpush2.bf16.msra.mxu0 0
        %1629 = vmatprep.subr.bf16.mxu0 0
        %1630 = vmatpush2.bf16.msra.mxu0 0
        %1631 = vmatprep.subr.bf16.mxu0 0
        %1632 = vmatpush2.bf16.msra.mxu0 0
        %1633 = vmatprep.mubr.bf16.mxu0 0
        %1634 = vmatmul.mubr.bf16.gmra.mxu0 %v1596
        %v1635 = vpop.f32.mrf.mxu0
        %v1636 = vadd.f32 0.0, %v1635
        %v1637 = vpop.f32.mrf.mxu0
        %v1638 = vpop.f32.mrf.mxu0
        %v1639 = vpop.f32.mrf.mxu0
        %1640 = vdwg.mxu0
        %v1641 = vadd.f32 %v1592, %v1636
        %v1642 = vld [vmem:[#allocation14] sm:$0x1]
        %v1644 = vlaneseq
        %v1645 = vshrl.u32 %v1644, 7
        %v1646 = vsub.s32 0, %v1645
        %v1647 = vrot.slane %v1642, %v1646
        %v1649 = vadd.f32 %v1641, %v1647
        %v1650 = vld [vmem:[%s807] sm:$0xff]
        %v1651 = vadd.f32 %v1649, %v1650
        %v1652 = vld [vmem:[%s10] sm:$0x1]
        %v1653 = vld [vmem:[%s11] sm:$0x1]
        %vm1654 = vcmask 261120
        %v1655 = vsel %vm1654, %v1651, 0.0
        %1656 = vadd.xlane.f32.xlu0 %v1655
        %v1657 = vpop.xlane.xlu0 %1656
        %v1658 = vrcp.pop 32.0
        %v1659 = vmul.f32 %v1657, %v1658
        %v1660 = vsub.f32 %v1651, %v1659
        %v1661 = vmul.f32 %v1660, %v1660
        %v1662 = vsel %vm1654, %v1661, 0.0
        %1663 = vadd.xlane.f32.xlu0 %v1662
        %v1664 = vpop.xlane.xlu0 %1663
        %v1665 = vmul.f32 %v1664, %v1658
        %v1666 = vadd.f32 %v1665, 1e-05
        %v1667 = vrsqrt.pop %v1666
        %v1668 = vmul.f32 %v1660, %v1667
        %v1670 = vlaneseq
        %v1671 = vshrl.u32 %v1670, 7
        %v1672 = vsub.s32 0, %v1671
        %v1673 = vrot.slane %v1652, %v1672
        %v1675 = vmul.f32 %v1668, %v1673
        %v1677 = vlaneseq
        %v1678 = vshrl.u32 %v1677, 7
        %v1679 = vsub.s32 0, %v1678
        %v1680 = vrot.slane %v1653, %v1679
        %v1682 = vadd.f32 %v1675, %v1680
        %v1683 = vpack.c.bf16 %v1682, %v1682
        %v1684 = vld [vmem:[%s12] sm:$0xf]
        %v1685 = vld [vmem:[%s12 + $0x4] sm:$0xf]
        %v1686 = vld [vmem:[%s12 + $0x8] sm:$0xf]
        %v1687 = vld [vmem:[%s12 + $0xc] sm:$0xf]
        %v1688 = vld [vmem:[%s13] sm:$0x1]
        %v1690 = vlaneseq
        %v1691 = vshrl.u32 %v1690, 7
        %v1692 = vsub.s32 0, %v1691
        %v1693 = vrot.slane %v1688, %v1692
        %v1699 = vunpack.c.l.b16 %v1684
        %v1700 = vunpack.c.l.b16 %v1685
        %v1701 = vunpack.c.l.b16 %v1686
        %v1702 = vunpack.c.l.b16 %v1687
        %v1703 = vpack.c.b16 %v1700, %v1699
        %v1704 = vpack.c.b16 %v1702, %v1701
        %v1708 = vsel %vm1654, %v1683, 0
        %1710 = vmatprep.subr.bf16.mxu0 0
        %1711 = vmatpush1.bf16.msra.mxu0 0
        %1712 = vmatprep.subr.bf16.mxu0 0
        %1713 = vmatpush1.bf16.msra.mxu0 0
        %1714 = vmatprep.subr.bf16.mxu0 0
        %1715 = vmatpush1.bf16.msra.mxu0 0
        %1716 = vmatprep.subr.bf16.mxu0 0
        %1717 = vmatpush1.bf16.msra.mxu0 0
        %1718 = vmatprep.subr.bf16.mxu0 0
        %1719 = vmatpush1.bf16.msra.mxu0 0
        %1720 = vmatprep.subr.bf16.mxu0 0
        %1721 = vmatpush1.bf16.msra.mxu0 0
        %1722 = vmatprep.subr.bf16.mxu0 0
        %1723 = vmatpush1.bf16.msra.mxu0 %v1704
        %1724 = vmatprep.subr.bf16.mxu0 0
        %1725 = vmatpush1.bf16.msra.mxu0 %v1703
        %1726 = vmatprep.subr.bf16.mxu0 0
        %1727 = vmatpush2.bf16.msra.mxu0 0
        %1728 = vmatprep.subr.bf16.mxu0 0
        %1729 = vmatpush2.bf16.msra.mxu0 0
        %1730 = vmatprep.subr.bf16.mxu0 0
        %1731 = vmatpush2.bf16.msra.mxu0 0
        %1732 = vmatprep.subr.bf16.mxu0 0
        %1733 = vmatpush2.bf16.msra.mxu0 0
        %1734 = vmatprep.subr.bf16.mxu0 0
        %1735 = vmatpush2.bf16.msra.mxu0 0
        %1736 = vmatprep.subr.bf16.mxu0 0
        %1737 = vmatpush2.bf16.msra.mxu0 0
        %1738 = vmatprep.subr.bf16.mxu0 0
        %1739 = vmatpush2.bf16.msra.mxu0 0
        %1740 = vmatprep.subr.bf16.mxu0 0
        %1741 = vmatpush2.bf16.msra.mxu0 0
        %1742 = vmatprep.mubr.bf16.mxu0 0
        %1743 = vmatmul.mubr.bf16.gmra.mxu0 %v1708
        %v1744 = vpop.f32.mrf.mxu0
        %v1745 = vadd.f32 %v1693, %v1744
        %v1746 = vpop.f32.mrf.mxu0
        %v1747 = vpop.f32.mrf.mxu0
        %v1748 = vpop.f32.mrf.mxu0
        %1749 = vdwg.mxu0
        %v1750 = vmax.f32 %v1745, 0.0
        %v1751 = vpack.c.bf16 %v1750, %v1750
        %v1752 = vld [vmem:[%s14] sm:$0xf]
        %v1753 = vld [vmem:[%s14 + $0x4] sm:$0xf]
        %v1754 = vld [vmem:[%s14 + $0x8] sm:$0xf]
        %v1755 = vld [vmem:[%s14 + $0xc] sm:$0xf]
        %v1756 = vld [vmem:[%s14 + $0x10] sm:$0xf]
        %v1757 = vld [vmem:[%s14 + $0x14] sm:$0xf]
        %v1758 = vld [vmem:[%s14 + $0x18] sm:$0xf]
        %v1759 = vld [vmem:[%s14 + $0x1c] sm:$0xf]
        %v1760 = vld [vmem:[%s14 + $0x20] sm:$0xf]
        %v1761 = vld [vmem:[%s14 + $0x24] sm:$0xf]
        %v1762 = vld [vmem:[%s14 + $0x28] sm:$0xf]
        %v1763 = vld [vmem:[%s14 + $0x2c] sm:$0xf]
        %v1764 = vld [vmem:[%s14 + $0x30] sm:$0xf]
        %v1765 = vld [vmem:[%s14 + $0x34] sm:$0xf]
        %v1766 = vld [vmem:[%s14 + $0x38] sm:$0xf]
        %v1767 = vld [vmem:[%s14 + $0x3c] sm:$0xf]
        %v1768 = vld [vmem:[%s15] sm:$0x1]
        %v1770 = vlaneseq
        %v1771 = vshrl.u32 %v1770, 7
        %v1772 = vsub.s32 0, %v1771
        %v1773 = vrot.slane %v1768, %v1772
        %v1791 = vunpack.c.l.b16 %v1752
        %v1792 = vunpack.c.l.b16 %v1753
        %v1793 = vunpack.c.l.b16 %v1754
        %v1794 = vunpack.c.l.b16 %v1755
        %v1795 = vunpack.c.l.b16 %v1756
        %v1796 = vunpack.c.l.b16 %v1757
        %v1797 = vunpack.c.l.b16 %v1758
        %v1798 = vunpack.c.l.b16 %v1759
        %v1799 = vunpack.c.l.b16 %v1760
        %v1800 = vunpack.c.l.b16 %v1761
        %v1801 = vunpack.c.l.b16 %v1762
        %v1802 = vunpack.c.l.b16 %v1763
        %v1803 = vunpack.c.l.b16 %v1764
        %v1804 = vunpack.c.l.b16 %v1765
        %v1805 = vunpack.c.l.b16 %v1766
        %v1806 = vunpack.c.l.b16 %v1767
        %v1807 = vpack.c.b16 %v1792, %v1791
        %v1808 = vpack.c.b16 %v1794, %v1793
        %v1809 = vpack.c.b16 %v1796, %v1795
        %v1810 = vpack.c.b16 %v1798, %v1797
        %v1811 = vpack.c.b16 %v1800, %v1799
        %v1812 = vpack.c.b16 %v1802, %v1801
        %v1813 = vpack.c.b16 %v1804, %v1803
        %v1814 = vpack.c.b16 %v1806, %v1805
        %1823 = vmatprep.subr.bf16.mxu0 0
        %1824 = vmatpush1.bf16.msra.mxu0 %v1814
        %1825 = vmatprep.subr.bf16.mxu0 0
        %1826 = vmatpush1.bf16.msra.mxu0 %v1813
        %1827 = vmatprep.subr.bf16.mxu0 0
        %1828 = vmatpush1.bf16.msra.mxu0 %v1812
        %1829 = vmatprep.subr.bf16.mxu0 0
        %1830 = vmatpush1.bf16.msra.mxu0 %v1811
        %1831 = vmatprep.subr.bf16.mxu0 0
        %1832 = vmatpush1.bf16.msra.mxu0 %v1810
        %1833 = vmatprep.subr.bf16.mxu0 0
        %1834 = vmatpush1.bf16.msra.mxu0 %v1809
        %1835 = vmatprep.subr.bf16.mxu0 0
        %1836 = vmatpush1.bf16.msra.mxu0 %v1808
        %1837 = vmatprep.subr.bf16.mxu0 0
        %1838 = vmatpush1.bf16.msra.mxu0 %v1807
        %1839 = vmatprep.subr.bf16.mxu0 0
        %1840 = vmatpush2.bf16.msra.mxu0 0
        %1841 = vmatprep.subr.bf16.mxu0 0
        %1842 = vmatpush2.bf16.msra.mxu0 0
        %1843 = vmatprep.subr.bf16.mxu0 0
        %1844 = vmatpush2.bf16.msra.mxu0 0
        %1845 = vmatprep.subr.bf16.mxu0 0
        %1846 = vmatpush2.bf16.msra.mxu0 0
        %1847 = vmatprep.subr.bf16.mxu0 0
        %1848 = vmatpush2.bf16.msra.mxu0 0
        %1849 = vmatprep.subr.bf16.mxu0 0
        %1850 = vmatpush2.bf16.msra.mxu0 0
        %1851 = vmatprep.subr.bf16.mxu0 0
        %1852 = vmatpush2.bf16.msra.mxu0 0
        %1853 = vmatprep.subr.bf16.mxu0 0
        %1854 = vmatpush2.bf16.msra.mxu0 0
        %1855 = vmatprep.mubr.bf16.mxu0 0
        %1856 = vmatmul.mubr.bf16.gmra.mxu0 %v1751
        %v1857 = vpop.f32.mrf.mxu0
        %v1858 = vadd.f32 %v1773, %v1857
        %v1859 = vpop.f32.mrf.mxu0
        %v1860 = vpop.f32.mrf.mxu0
        %v1861 = vpop.f32.mrf.mxu0
        %1862 = vdwg.mxu0
        %v1863 = vadd.f32 %v1858, %v1682
        %v1864 = vld [vmem:[%s16] sm:$0x1]
        %v1865 = vld [vmem:[%s17] sm:$0x1]
        %v1866 = vsel %vm1654, %v1863, 0.0
        %1867 = vadd.xlane.f32.xlu0 %v1866
        %v1868 = vpop.xlane.xlu0 %1867
        %v1869 = vmul.f32 %v1868, %v1658
        %v1870 = vsub.f32 %v1863, %v1869
        %v1871 = vmul.f32 %v1870, %v1870
        %v1872 = vsel %vm1654, %v1871, 0.0
        %1873 = vadd.xlane.f32.xlu0 %v1872
        %v1874 = vpop.xlane.xlu0 %1873
        %v1875 = vmul.f32 %v1874, %v1658
        %v1876 = vadd.f32 %v1875, 1e-05
        %v1877 = vrsqrt.pop %v1876
        %v1878 = vmul.f32 %v1870, %v1877
        %v1880 = vlaneseq
        %v1881 = vshrl.u32 %v1880, 7
        %v1882 = vsub.s32 0, %v1881
        %v1883 = vrot.slane %v1864, %v1882
        %v1885 = vmul.f32 %v1878, %v1883
        %v1887 = vlaneseq
        %v1888 = vshrl.u32 %v1887, 7
        %v1889 = vsub.s32 0, %v1888
        %v1890 = vrot.slane %v1865, %v1889
        %v1892 = vadd.f32 %v1885, %v1890
        %1893 = vst.msk [vmem:[%s791] sm:$0xff] %vm1654, %v1892
        %s1894 = sand.u32 %s457, 1
        %s1895 = scalar_lea.sflag [#allocation4], %s1894
        %s1896 = sand.u32 %s457, 1
        %s1897 = smul.addr %s1896, 8
        %s1898 = scalar_lea.vmem [#allocation16], %s1897
        %s1899 = sand.u32 %s483, 1
        %s1900 = scalar_lea.sflag [#allocation18], %s1899
        %s1901 = sand.u32 %s483, 1
        %s1902 = smul.addr %s1901, 32
        %s1903 = scalar_lea.vmem [#allocation17], %s1902
        // Predicated region
        $region125: #{tpu_custom_call.1} parent=91 // pred_check
          %p1904 = pneg %p467
        $region126: #{tpu_custom_call.1} parent=91 // pred_check_branch
          %1906 = sbr.rel (%p1904) target = $region128
        $region127: #{tpu_custom_call.1} parent=91 // pred_region
          %s1908 = ssub.s32 128, 128
          %1909 = vsyncadd %s1895, %s1908
          %s1910 = smul.addr %s46, 128
          %s1911 = scalar_lea.hbm %s18, %s1910
          %s1913 = sshll.u32 %s1898, 4
          %s1914 = int_to_ptr.vmem [resolvable:$true] %s1913
          %1916 = dma.vmem_to_hbm [thread:$0]  %s1914, 128, %s1911, %s1895
        $region128: #{tpu_custom_call.1} parent=91 // pred_fallthru
          _
        // Predicated region
        $region129: #{tpu_custom_call.1} parent=91 // pred_check
          %p1917 = pneg %p493
        $region130: #{tpu_custom_call.1} parent=91 // pred_check_branch
          %1919 = sbr.rel (%p1917) target = $region132
        $region131: #{tpu_custom_call.1} parent=91 // pred_region
          %s1921 = ssub.s32 512, 512
          %1922 = vsyncadd %s1900, %s1921
          %s1923 = smul.addr %s46, 4
          %s1924 = smul.addr %s1923, 128
          %s1925 = scalar_lea.hbm %s19, %s1924
          %s1926 = sshll.u32 %s1903, 4
          %s1927 = int_to_ptr.vmem [resolvable:$true] %s1926
          %1932 = dma.vmem_to_hbm [thread:$0]  %s1927, 512, %s1925, %s1900, 128, 128, 8
        $region132: #{tpu_custom_call.1} parent=91 // pred_fallthru
          _
      $region92: #{tpu_custom_call.1} parent=5 // pred_fallthru
        _
      %p1933 = scmp.le.s32.totalorder 2, %s41
      // Predicated region
      $region133: #{tpu_custom_call.1} parent=5 // pred_check
        %p1934 = pneg %p1933
      $region134: #{tpu_custom_call.1} parent=5 // pred_check_branch
        %1936 = sbr.rel (%p1934) target = $region136
      $region135: #{tpu_custom_call.1} parent=5 // pred_region
        %s1937 = ssub.s32 %s41, 2
        // Predicated region
        $region137: #{tpu_custom_call.1} parent=135 // pred_check
          %p1938 = pneg %p473
        $region138: #{tpu_custom_call.1} parent=135 // pred_check_branch
          %1940 = sbr.rel (%p1938) target = $region140
        $region139: #{tpu_custom_call.1} parent=135 // pred_region
          %s1941 = sand.u32 %s458, 1
          %s1942 = scalar_lea.sflag [#allocation4], %s1941
          %s1943 = sand.u32 %s458, 1
          %s1944 = smul.addr %s1943, 8
          %s1945 = scalar_lea.vmem [#allocation16], %s1944
          %1946 = dma.done %s1942, 128
        $region140: #{tpu_custom_call.1} parent=135 // pred_fallthru
          _
        // Predicated region
        $region141: #{tpu_custom_call.1} parent=135 // pred_check
          %p1947 = pneg %p499
        $region142: #{tpu_custom_call.1} parent=135 // pred_check_branch
          %1949 = sbr.rel (%p1947) target = $region144
        $region143: #{tpu_custom_call.1} parent=135 // pred_region
          %s1950 = sand.u32 %s484, 1
          %s1951 = scalar_lea.sflag [#allocation18], %s1950
          %s1952 = sand.u32 %s484, 1
          %s1953 = smul.addr %s1952, 32
          %s1954 = scalar_lea.vmem [#allocation17], %s1953
          %1955 = dma.done %s1951, 512
        $region144: #{tpu_custom_call.1} parent=135 // pred_fallthru
          _
      $region136: #{tpu_custom_call.1} parent=5 // pred_fallthru
        _
    $region6: #{tpu_custom_call.1} parent=1 // loop_footer
      %s45 = sadd.s32 1, %s41
    $region7: #{tpu_custom_call.1} parent=1 // loop_footer_branch
      %40 = sbr.rel target = $region3
    $region8: #{tpu_custom_call.1} parent=1 // loop_exit
      _
    %1956 = vsyncpa [#allocation3], 1
    %s1957 = scalar_lea.sflag [#allocation3], 1
    %1958 = vsyncpa %s1957, 1
    %1959 = vsyncpa [#allocation6], 1
    %s1960 = scalar_lea.sflag [#allocation6], 1
    %1961 = vsyncpa %s1960, 1
    %1962 = vsyncpa [#allocation9], 1
    %1963 = vsyncpa [#allocation12], 1
    %1964 = vsyncpa [#allocation15], 1
    %1965 = vsyncpa [#allocation4], 1
    %s1966 = scalar_lea.sflag [#allocation4], 1
    %1967 = vsyncpa %s1966, 1
    %1968 = vsyncpa [#allocation18], 1
    %s1969 = scalar_lea.sflag [#allocation18], 1
    %1970 = vsyncpa %s1969, 1

// kernel: tpu_custom_call.1
$region0: #{tpu_custom_call.1}
  #allocation0 [shape = 'u32[]', space=smem, size = 0x4, offset = 0x4, fixed_abs, tag = 'smem constant byte address 0x4 - core index']
  #allocation1 [shape = 'u32[144,128]{1,0:T(1,128)}', space=vmem, size = 0x12000, scoped, tag = 'internal scratch']
  %s0 = inlined_call_operand.vmem [shape: f32[2,4,8,8], index: 0, kind: input, shape index: {}]
  %s1 = inlined_call_operand.hbm [shape: f32[2,4,8,8], index: 1, kind: input, shape index: {}]
  %s2 = inlined_call_operand.hbm [shape: f32[2,4,8,8], index: 2, kind: input, shape index: {}]
  %s3 = inlined_call_operand.vmem [shape: f32[2,8,32], index: 3, kind: input, shape index: {}]
  %s4 = inlined_call_operand.hbm [shape: f32[2,8,8], index: 4, kind: input, shape index: {}]
  %s5 = inlined_call_operand.hbm [shape: bf16[8,8], index: 5, kind: input, shape index: {}]
  %s6 = inlined_call_operand.hbm [shape: bf16[8,8], index: 6, kind: input, shape index: {}]
  %s7 = inlined_call_operand.hbm [shape: bf16[8,8], index: 7, kind: input, shape index: {}]
  %s8 = inlined_call_operand.hbm [shape: bf16[4,8,32], index: 8, kind: input, shape index: {}]
  %s9 = inlined_call_operand.hbm [shape: f32[1,32], index: 9, kind: input, shape index: {}]
  %s10 = inlined_call_operand.vmem [shape: f32[1,32], index: 10, kind: input, shape index: {}]
  %s11 = inlined_call_operand.vmem [shape: f32[1,32], index: 11, kind: input, shape index: {}]
  %s12 = inlined_call_operand.vmem [shape: bf16[32,128], index: 12, kind: input, shape index: {}]
  %s13 = inlined_call_operand.vmem [shape: f32[1,128], index: 13, kind: input, shape index: {}]
  %s14 = inlined_call_operand.vmem [shape: bf16[128,32], index: 14, kind: input, shape index: {}]
  %s15 = inlined_call_operand.vmem [shape: f32[1,32], index: 15, kind: input, shape index: {}]
  %s16 = inlined_call_operand.vmem [shape: f32[1,32], index: 16, kind: input, shape index: {}]
  %s17 = inlined_call_operand.vmem [shape: f32[1,32], index: 17, kind: input, shape index: {}]
  %s18 = inlined_call_operand.hbm [shape: f32[2,8,32], index: 18, kind: output, shape index: {0}]
  %s19 = inlined_call_operand.hbm [shape: f32[2,4,8,8], index: 19, kind: output, shape index: {1}]
  %20 = xla_tuple %s18, %s19
  %s21 = sld [smem:[#allocation0]]
  $region145: #{tpu_custom_call.1} parent=0
    _
  %s23 = ssub.s32 1, %s21
  %s24 = scalar_select 0, %s23, %s21
  $region1: #{tpu_custom_call.1} parent=0
    #allocation2 [shape = 'u8[32768]{0}', space=vmem, size = 0x8000, scoped, tag = 'input window, operand 1']
    #allocation3 [shape = 's32[2]{0}', space=sflag, size = 0x8, scoped, tag = 'scoped memory for tpu_custom_call.1']
    #allocation4 [shape = 's32[2]{0}', space=sflag, size = 0x8, scoped, tag = 'scoped memory for tpu_custom_call.1']
    #allocation5 [shape = 'u8[32768]{0}', space=vmem, size = 0x8000, scoped, tag = 'input window, operand 2']
    #allocation6 [shape = 's32[2]{0}', space=sflag, size = 0x8, scoped, tag = 'scoped memory for tpu_custom_call.1']
    #allocation7 [shape = 'u8[8192]{0}', space=vmem, size = 0x2000, scoped, tag = 'input window, operand 4']
    #allocation8 [shape = 'u8[2048]{0}', space=vmem, size = 0x800, scoped, tag = 'input window, operand 5, single buffered']
    #allocation9 [shape = 's32[1]{0}', space=sflag, size = 0x4, scoped, tag = 'scoped memory for tpu_custom_call.1']
    #allocation10 [shape = 'u8[2048]{0}', space=vmem, size = 0x800, scoped, tag = 'input window, operand 6, single buffered']
    #allocation11 [shape = 'u8[2048]{0}', space=vmem, size = 0x800, scoped, tag = 'input window, operand 7, single buffered']
    #allocation12 [shape = 's32[1]{0}', space=sflag, size = 0x4, scoped, tag = 'scoped memory for tpu_custom_call.1']
    #allocation13 [shape = 'u8[8192]{0}', space=vmem, size = 0x2000, scoped, tag = 'input window, operand 8, single buffered']
    #allocation14 [shape = 'u8[512]{0}', space=vmem, size = 0x400, scoped, tag = 'input window, operand 9, single buffered']
    #allocation15 [shape = 's32[1]{0}', space=sflag, size = 0x4, scoped, tag = 'scoped memory for tpu_custom_call.1']
    #allocation16 [shape = 'u8[8192]{0}', space=vmem, size = 0x2000, scoped, tag = 'output window, operand 0']
    #allocation17 [shape = 'u8[32768]{0}', space=vmem, size = 0x8000, scoped, tag = 'output window, operand 1']
    #allocation18 [shape = 's32[2]{0}', space=sflag, size = 0x8, scoped, tag = 'scoped memory for tpu_custom_call.1']
    %25 = vsyncpa [#allocation3], 0
    %s26 = scalar_lea.sflag [#allocation3], 1
    %27 = vsyncpa %s26, 0
    %28 = vsyncpa [#allocation6], 0
    %s29 = scalar_lea.sflag [#allocation6], 1
    %30 = vsyncpa %s29, 0
    %31 = vsyncpa [#allocation9], 0
    %32 = vsyncpa [#allocation12], 0
    %33 = vsyncpa [#allocation15], 0
    %34 = vsyncpa [#allocation4], 0
    %s35 = scalar_lea.sflag [#allocation4], 1
    %36 = vsyncpa %s35, 0
    %37 = vsyncpa [#allocation18], 0
    %s38 = scalar_lea.sflag [#allocation18], 1
    %39 = vsyncpa %s38, 0
    loop: start=0, step=1, limit=4
    $region2: #{tpu_custom_call.1} parent=1 // loop_pre_header
      _
    $region3: #{tpu_custom_call.1} parent=1 // loop_header
      %s41 = sphi 0, %s45
      %p42 = scmp.ge.s32.totalorder %s41, 4
      %s51 = sphi 0, %s53
      %s54 = sphi 0, %s51
      %s55 = sphi 0, %s54
      %s71 = sphi 0, %s55
      %s77 = sphi 0, %s79
      %s80 = sphi 0, %s77
      %s81 = sphi 0, %s80
      %s97 = sphi 0, %s81
      %s103 = sphi 0, %s105
      %s106 = sphi 0, %s103
      %s107 = sphi 0, %s106
      %s123 = sphi 0, %s107
      %s129 = sphi 0, %s131
      %s132 = sphi 0, %s129
      %s133 = sphi 0, %s132
      %s149 = sphi 0, %s133
      %s155 = sphi 0, %s157
      %s158 = sphi 0, %s155
      %s159 = sphi 0, %s158
      %s175 = sphi 0, %s159
      %s179 = sphi 0, %s179
      %s181 = sphi 0, %s179
      %s182 = sphi 0, %s181
      %s196 = sphi 0, %s182
      %s200 = sphi 0, %s200
      %s202 = sphi 0, %s200
      %s203 = sphi 0, %s202
      %s217 = sphi 0, %s203
      %s221 = sphi 0, %s221
      %s223 = sphi 0, %s221
      %s224 = sphi 0, %s223
      %s238 = sphi 0, %s224
      %s242 = sphi 0, %s242
      %s244 = sphi 0, %s242
      %s245 = sphi 0, %s244
      %s259 = sphi 0, %s245
      %s263 = sphi 0, %s263
      %s265 = sphi 0, %s263
      %s266 = sphi 0, %s265
      %s280 = sphi 0, %s266
      %s284 = sphi 0, %s284
      %s286 = sphi 0, %s284
      %s287 = sphi 0, %s286
      %s301 = sphi 0, %s287
      %s305 = sphi 0, %s305
      %s307 = sphi 0, %s305
      %s308 = sphi 0, %s307
      %s322 = sphi 0, %s308
      %s326 = sphi 0, %s326
      %s328 = sphi 0, %s326
      %s329 = sphi 0, %s328
      %s343 = sphi 0, %s329
      %s347 = sphi 0, %s347
      %s349 = sphi 0, %s347
      %s350 = sphi 0, %s349
      %s364 = sphi 0, %s350
      %s368 = sphi 0, %s368
      %s370 = sphi 0, %s368
      %s371 = sphi 0, %s370
      %s385 = sphi 0, %s371
      %s389 = sphi 0, %s389
      %s391 = sphi 0, %s389
      %s392 = sphi 0, %s391
      %s406 = sphi 0, %s392
      %s410 = sphi 0, %s410
      %s412 = sphi 0, %s410
      %s413 = sphi 0, %s412
      %s427 = sphi 0, %s413
      %s431 = sphi 0, %s431
      %s433 = sphi 0, %s431
      %s434 = sphi 0, %s433
      %s448 = sphi 0, %s434
      %s454 = sphi 0, %s456
      %s457 = sphi 0, %s454
      %s458 = sphi 0, %s457
      %s474 = sphi 0, %s458
      %s480 = sphi 0, %s482
      %s483 = sphi 0, %s480
      %s484 = sphi 0, %s483
      %s500 = sphi 0, %s484
    $region4: #{tpu_custom_call.1} parent=1 // loop_header_branch
      %44 = sbr.rel (%p42) target = $region8
    $region5: #{tpu_custom_call.1} parent=1 // loop_body
      %s46 = ssub.s32 %s41, 1
      %s47 = ssub.s32 %s41, 2
      %s48 = sadd.s32 %s41, 1
      %s49 = ssub.s32 %s41, %s48
      %p50 = scmp.eq.s32.totalorder %s49, 0
      %s52 = sadd.s32 %s51, 1
      %s53 = scalar_select %p50, %s51, %s52
      %p56 = pneg %p50
      %p57 = scmp.eq.s32.totalorder %s41, 1
      %p58 = por %p56, %p57
      %p59 = scmp.ne.s32.totalorder %s51, %s54
      %p60 = scmp.eq.s32.totalorder %s41, 0
      %p61 = por %p59, %p60
      %p62 = scmp.ne.s32.totalorder %s51, %s54
      %p63 = scmp.eq.s32.totalorder %s46, 1
      %p64 = por %p62, %p63
      %p65 = scmp.ne.s32.totalorder %s54, %s55
      %p66 = scmp.eq.s32.totalorder %s46, 0
      %p67 = por %p65, %p66
      %p68 = scmp.ne.s32.totalorder %s54, %s55
      %p69 = scmp.eq.s32.totalorder %s47, 1
      %p70 = por %p68, %p69
      %p72 = scmp.ne.s32.totalorder %s55, %s71
      %p73 = scmp.eq.s32.totalorder %s47, 0
      %p74 = por %p72, %p73
      %s75 = ssub.s32 %s41, %s48
      %p76 = scmp.eq.s32.totalorder %s75, 0
      %s78 = sadd.s32 %s77, 1
      %s79 = scalar_select %p76, %s77, %s78
      %p82 = pneg %p76
      %p83 = scmp.eq.s32.totalorder %s41, 1
      %p84 = por %p82, %p83
      %p85 = scmp.ne.s32.totalorder %s77, %s80
      %p86 = scmp.eq.s32.totalorder %s41, 0
      %p87 = por %p85, %p86
      %p88 = scmp.ne.s32.totalorder %s77, %s80
      %p89 = scmp.eq.s32.totalorder %s46, 1
      %p90 = por %p88, %p89
      %p91 = scmp.ne.s32.totalorder %s80, %s81
      %p92 = scmp.eq.s32.totalorder %s46, 0
      %p93 = por %p91, %p92
      %p94 = scmp.ne.s32.totalorder %s80, %s81
      %p95 = scmp.eq.s32.totalorder %s47, 1
      %p96 = por %p94, %p95
      %p98 = scmp.ne.s32.totalorder %s81, %s97
      %p99 = scmp.eq.s32.totalorder %s47, 0
      %p100 = por %p98, %p99
      %s101 = ssub.s32 %s41, %s48
      %p102 = scmp.eq.s32.totalorder %s101, 0
      %s104 = sadd.s32 %s103, 1
      %s105 = scalar_select %p102, %s103, %s104
      %p108 = pneg %p102
      %p109 = scmp.eq.s32.totalorder %s41, 1
      %p110 = por %p108, %p109
      %p111 = scmp.ne.s32.totalorder %s103, %s106
      %p112 = scmp.eq.s32.totalorder %s41, 0
      %p113 = por %p111, %p112
      %p114 = scmp.ne.s32.totalorder %s103, %s106
      %p115 = scmp.eq.s32.totalorder %s46, 1
      %p116 = por %p114, %p115
      %p117 = scmp.ne.s32.totalorder %s106, %s107
      %p118 = scmp.eq.s32.totalorder %s46, 0
      %p119 = por %p117, %p118
      %p120 = scmp.ne.s32.totalorder %s106, %s107
      %p121 = scmp.eq.s32.totalorder %s47, 1
      %p122 = por %p120, %p121
      %p124 = scmp.ne.s32.totalorder %s107, %s123
      %p125 = scmp.eq.s32.totalorder %s47, 0
      %p126 = por %p124, %p125
      %s127 = ssub.s32 %s41, %s48
      %p128 = scmp.eq.s32.totalorder %s127, 0
      %s130 = sadd.s32 %s129, 1
      %s131 = scalar_select %p128, %s129, %s130
      %p134 = pneg %p128
      %p135 = scmp.eq.s32.totalorder %s41, 1
      %p136 = por %p134, %p135
      %p137 = scmp.ne.s32.totalorder %s129, %s132
      %p138 = scmp.eq.s32.totalorder %s41, 0
      %p139 = por %p137, %p138
      %p140 = scmp.ne.s32.totalorder %s129, %s132
      %p141 = scmp.eq.s32.totalorder %s46, 1
      %p142 = por %p140, %p141
      %p143 = scmp.ne.s32.totalorder %s132, %s133
      %p144 = scmp.eq.s32.totalorder %s46, 0
      %p145 = por %p143, %p144
      %p146 = scmp.ne.s32.totalorder %s132, %s133
      %p147 = scmp.eq.s32.totalorder %s47, 1
      %p148 = por %p146, %p147
      %p150 = scmp.ne.s32.totalorder %s133, %s149
      %p151 = scmp.eq.s32.totalorder %s47, 0
      %p152 = por %p150, %p151
      %s153 = ssub.s32 %s41, %s48
      %p154 = scmp.eq.s32.totalorder %s153, 0
      %s156 = sadd.s32 %s155, 1
      %s157 = scalar_select %p154, %s155, %s156
      %p160 = pneg %p154
      %p161 = scmp.eq.s32.totalorder %s41, 1
      %p162 = por %p160, %p161
      %p163 = scmp.ne.s32.totalorder %s155, %s158
      %p164 = scmp.eq.s32.totalorder %s41, 0
      %p165 = por %p163, %p164
      %p166 = scmp.ne.s32.totalorder %s155, %s158
      %p167 = scmp.eq.s32.totalorder %s46, 1
      %p168 = por %p166, %p167
      %p169 = scmp.ne.s32.totalorder %s158, %s159
      %p170 = scmp.eq.s32.totalorder %s46, 0
      %p171 = por %p169, %p170
      %p172 = scmp.ne.s32.totalorder %s158, %s159
      %p173 = scmp.eq.s32.totalorder %s47, 1
      %p174 = por %p172, %p173
      %p176 = scmp.ne.s32.totalorder %s159, %s175
      %p177 = scmp.eq.s32.totalorder %s47, 0
      %p178 = por %p176, %p177
      %s180 = sadd.s32 %s179, 1
      %p183 = scmp.eq.s32.totalorder %s41, 1
      %p184 = scmp.ne.s32.totalorder %s179, %s181
      %p185 = scmp.eq.s32.totalorder %s41, 0
      %p186 = por %p184, %p185
      %p187 = scmp.ne.s32.totalorder %s179, %s181
      %p188 = scmp.eq.s32.totalorder %s46, 1
      %p189 = por %p187, %p188
      %p190 = scmp.ne.s32.totalorder %s181, %s182
      %p191 = scmp.eq.s32.totalorder %s46, 0
      %p192 = por %p190, %p191
      %p193 = scmp.ne.s32.totalorder %s181, %s182
      %p194 = scmp.eq.s32.totalorder %s47, 1
      %p195 = por %p193, %p194
      %p197 = scmp.ne.s32.totalorder %s182, %s196
      %p198 = scmp.eq.s32.totalorder %s47, 0
      %p199 = por %p197, %p198
      %s201 = sadd.s32 %s200, 1
      %p204 = scmp.eq.s32.totalorder %s41, 1
      %p205 = scmp.ne.s32.totalorder %s200, %s202
      %p206 = scmp.eq.s32.totalorder %s41, 0
      %p207 = por %p205, %p206
      %p208 = scmp.ne.s32.totalorder %s200, %s202
      %p209 = scmp.eq.s32.totalorder %s46, 1
      %p210 = por %p208, %p209
      %p211 = scmp.ne.s32.totalorder %s202, %s203
      %p212 = scmp.eq.s32.totalorder %s46, 0
      %p213 = por %p211, %p212
      %p214 = scmp.ne.s32.totalorder %s202, %s203
      %p215 = scmp.eq.s32.totalorder %s47, 1
      %p216 = por %p214, %p215
      %p218 = scmp.ne.s32.totalorder %s203, %s217
      %p219 = scmp.eq.s32.totalorder %s47, 0
      %p220 = por %p218, %p219
      %s222 = sadd.s32 %s221, 1
      %p225 = scmp.eq.s32.totalorder %s41, 1
      %p226 = scmp.ne.s32.totalorder %s221, %s223
      %p227 = scmp.eq.s32.totalorder %s41, 0
      %p228 = por %p226, %p227
      %p229 = scmp.ne.s32.totalorder %s221, %s223
      %p230 = scmp.eq.s32.totalorder %s46, 1
      %p231 = por %p229, %p230
      %p232 = scmp.ne.s32.totalorder %s223, %s224
      %p233 = scmp.eq.s32.totalorder %s46, 0
      %p234 = por %p232, %p233
      %p235 = scmp.ne.s32.totalorder %s223, %s224
      %p236 = scmp.eq.s32.totalorder %s47, 1
      %p237 = por %p235, %p236
      %p239 = scmp.ne.s32.totalorder %s224, %s238
      %p240 = scmp.eq.s32.totalorder %s47, 0
      %p241 = por %p239, %p240
      %s243 = sadd.s32 %s242, 1
      %p246 = scmp.eq.s32.totalorder %s41, 1
      %p247 = scmp.ne.s32.totalorder %s242, %s244
      %p248 = scmp.eq.s32.totalorder %s41, 0
      %p249 = por %p247, %p248
      %p250 = scmp.ne.s32.totalorder %s242, %s244
      %p251 = scmp.eq.s32.totalorder %s46, 1
      %p252 = por %p250, %p251
      %p253 = scmp.ne.s32.totalorder %s244, %s245
      %p254 = scmp.eq.s32.totalorder %s46, 0
      %p255 = por %p253, %p254
      %p256 = scmp.ne.s32.totalorder %s244, %s245
      %p257 = scmp.eq.s32.totalorder %s47, 1
      %p258 = por %p256, %p257
      %p260 = scmp.ne.s32.totalorder %s245, %s259
      %p261 = scmp.eq.s32.totalorder %s47, 0
      %p262 = por %p260, %p261
      %s264 = sadd.s32 %s263, 1
      %p267 = scmp.eq.s32.totalorder %s41, 1
      %p268 = scmp.ne.s32.totalorder %s263, %s265
      %p269 = scmp.eq.s32.totalorder %s41, 0
      %p270 = por %p268, %p269
      %p271 = scmp.ne.s32.totalorder %s263, %s265
      %p272 = scmp.eq.s32.totalorder %s46, 1
      %p273 = por %p271, %p272
      %p274 = scmp.ne.s32.totalorder %s265, %s266
      %p275 = scmp.eq.s32.totalorder %s46, 0
      %p276 = por %p274, %p275
      %p277 = scmp.ne.s32.totalorder %s265, %s266
      %p278 = scmp.eq.s32.totalorder %s47, 1
      %p279 = por %p277, %p278
      %p281 = scmp.ne.s32.totalorder %s266, %s280
      %p282 = scmp.eq.s32.totalorder %s47, 0
      %p283 = por %p281, %p282
      %s285 = sadd.s32 %s284, 1
      %p288 = scmp.eq.s32.totalorder %s41, 1
      %p289 = scmp.ne.s32.totalorder %s284, %s286
      %p290 = scmp.eq.s32.totalorder %s41, 0
      %p291 = por %p289, %p290
      %p292 = scmp.ne.s32.totalorder %s284, %s286
      %p293 = scmp.eq.s32.totalorder %s46, 1
      %p294 = por %p292, %p293
      %p295 = scmp.ne.s32.totalorder %s286, %s287
      %p296 = scmp.eq.s32.totalorder %s46, 0
      %p297 = por %p295, %p296
      %p298 = scmp.ne.s32.totalorder %s286, %s287
      %p299 = scmp.eq.s32.totalorder %s47, 1
      %p300 = por %p298, %p299
      %p302 = scmp.ne.s32.totalorder %s287, %s301
      %p303 = scmp.eq.s32.totalorder %s47, 0
      %p304 = por %p302, %p303
      %s306 = sadd.s32 %s305, 1
      %p309 = scmp.eq.s32.totalorder %s41, 1
      %p310 = scmp.ne.s32.totalorder %s305, %s307
      %p311 = scmp.eq.s32.totalorder %s41, 0
      %p312 = por %p310, %p311
      %p313 = scmp.ne.s32.totalorder %s305, %s307
      %p314 = scmp.eq.s32.totalorder %s46, 1
      %p315 = por %p313, %p314
      %p316 = scmp.ne.s32.totalorder %s307, %s308
      %p317 = scmp.eq.s32.totalorder %s46, 0
      %p318 = por %p316, %p317
      %p319 = scmp.ne.s32.totalorder %s307, %s308
      %p320 = scmp.eq.s32.totalorder %s47, 1
      %p321 = por %p319, %p320
      %p323 = scmp.ne.s32.totalorder %s308, %s322
      %p324 = scmp.eq.s32.totalorder %s47, 0
      %p325 = por %p323, %p324
      %s327 = sadd.s32 %s326, 1
      %p330 = scmp.eq.s32.totalorder %s41, 1
      %p331 = scmp.ne.s32.totalorder %s326, %s328
      %p332 = scmp.eq.s32.totalorder %s41, 0
      %p333 = por %p331, %p332
      %p334 = scmp.ne.s32.totalorder %s326, %s328
      %p335 = scmp.eq.s32.totalorder %s46, 1
      %p336 = por %p334, %p335
      %p337 = scmp.ne.s32.totalorder %s328, %s329
      %p338 = scmp.eq.s32.totalorder %s46, 0
      %p339 = por %p337, %p338
      %p340 = scmp.ne.s32.totalorder %s328, %s329
      %p341 = scmp.eq.s32.totalorder %s47, 1
      %p342 = por %p340, %p341
      %p344 = scmp.ne.s32.totalorder %s329, %s343
      %p345 = scmp.eq.s32.totalorder %s47, 0
      %p346 = por %p344, %p345
      %s348 = sadd.s32 %s347, 1
      %p351 = scmp.eq.s32.totalorder %s41, 1
      %p352 = scmp.ne.s32.totalorder %s347, %s349
      %p353 = scmp.eq.s32.totalorder %s41, 0
      %p354 = por %p352, %p353
      %p355 = scmp.ne.s32.totalorder %s347, %s349
      %p356 = scmp.eq.s32.totalorder %s46, 1
      %p357 = por %p355, %p356
      %p358 = scmp.ne.s32.totalorder %s349, %s350
      %p359 = scmp.eq.s32.totalorder %s46, 0
      %p360 = por %p358, %p359
      %p361 = scmp.ne.s32.totalorder %s349, %s350
      %p362 = scmp.eq.s32.totalorder %s47, 1
      %p363 = por %p361, %p362
      %p365 = scmp.ne.s32.totalorder %s350, %s364
      %p366 = scmp.eq.s32.totalorder %s47, 0
      %p367 = por %p365, %p366
      %s369 = sadd.s32 %s368, 1
      %p372 = scmp.eq.s32.totalorder %s41, 1
      %p373 = scmp.ne.s32.totalorder %s368, %s370
      %p374 = scmp.eq.s32.totalorder %s41, 0
      %p375 = por %p373, %p374
      %p376 = scmp.ne.s32.totalorder %s368, %s370
      %p377 = scmp.eq.s32.totalorder %s46, 1
      %p378 = por %p376, %p377
      %p379 = scmp.ne.s32.totalorder %s370, %s371
      %p380 = scmp.eq.s32.totalorder %s46, 0
      %p381 = por %p379, %p380
      %p382 = scmp.ne.s32.totalorder %s370, %s371
      %p383 = scmp.eq.s32.totalorder %s47, 1
      %p384 = por %p382, %p383
      %p386 = scmp.ne.s32.totalorder %s371, %s385
      %p387 = scmp.eq.s32.totalorder %s47, 0
      %p388 = por %p386, %p387
      %s390 = sadd.s32 %s389, 1
      %p393 = scmp.eq.s32.totalorder %s41, 1
      %p394 = scmp.ne.s32.totalorder %s389, %s391
      %p395 = scmp.eq.s32.totalorder %s41, 0
      %p396 = por %p394, %p395
      %p397 = scmp.ne.s32.totalorder %s389, %s391
      %p398 = scmp.eq.s32.totalorder %s46, 1
      %p399 = por %p397, %p398
      %p400 = scmp.ne.s32.totalorder %s391, %s392
      %p401 = scmp.eq.s32.totalorder %s46, 0
      %p402 = por %p400, %p401
      %p403 = scmp.ne.s32.totalorder %s391, %s392
      %p404 = scmp.eq.s32.totalorder %s47, 1
      %p405 = por %p403, %p404
      %p407 = scmp.ne.s32.totalorder %s392, %s406
      %p408 = scmp.eq.s32.totalorder %s47, 0
      %p409 = por %p407, %p408
      %s411 = sadd.s32 %s410, 1
      %p414 = scmp.eq.s32.totalorder %s41, 1
      %p415 = scmp.ne.s32.totalorder %s410, %s412
      %p416 = scmp.eq.s32.totalorder %s41, 0
      %p417 = por %p415, %p416
      %p418 = scmp.ne.s32.totalorder %s410, %s412
      %p419 = scmp.eq.s32.totalorder %s46, 1
      %p420 = por %p418, %p419
      %p421 = scmp.ne.s32.totalorder %s412, %s413
      %p422 = scmp.eq.s32.totalorder %s46, 0
      %p423 = por %p421, %p422
      %p424 = scmp.ne.s32.totalorder %s412, %s413
      %p425 = scmp.eq.s32.totalorder %s47, 1
      %p426 = por %p424, %p425
      %p428 = scmp.ne.s32.totalorder %s413, %s427
      %p429 = scmp.eq.s32.totalorder %s47, 0
      %p430 = por %p428, %p429
      %s432 = sadd.s32 %s431, 1
      %p435 = scmp.eq.s32.totalorder %s41, 1
      %p436 = scmp.ne.s32.totalorder %s431, %s433
      %p437 = scmp.eq.s32.totalorder %s41, 0
      %p438 = por %p436, %p437
      %p439 = scmp.ne.s32.totalorder %s431, %s433
      %p440 = scmp.eq.s32.totalorder %s46, 1
      %p441 = por %p439, %p440
      %p442 = scmp.ne.s32.totalorder %s433, %s434
      %p443 = scmp.eq.s32.totalorder %s46, 0
      %p444 = por %p442, %p443
      %p445 = scmp.ne.s32.totalorder %s433, %s434
      %p446 = scmp.eq.s32.totalorder %s47, 1
      %p447 = por %p445, %p446
      %p449 = scmp.ne.s32.totalorder %s434, %s448
      %p450 = scmp.eq.s32.totalorder %s47, 0
      %p451 = por %p449, %p450
      %s452 = ssub.s32 %s41, %s48
      %p453 = scmp.eq.s32.totalorder %s452, 0
      %s455 = sadd.s32 %s454, 1
      %s456 = scalar_select %p453, %s454, %s455
      %p459 = pneg %p453
      %p460 = scmp.eq.s32.totalorder %s41, 1
      %p461 = por %p459, %p460
      %p462 = scmp.ne.s32.totalorder %s454, %s457
      %p463 = scmp.eq.s32.totalorder %s41, 0
      %p464 = por %p462, %p463
      %p465 = scmp.ne.s32.totalorder %s454, %s457
      %p466 = scmp.eq.s32.totalorder %s46, 1
      %p467 = por %p465, %p466
      %p468 = scmp.ne.s32.totalorder %s457, %s458
      %p469 = scmp.eq.s32.totalorder %s46, 0
      %p470 = por %p468, %p469
      %p471 = scmp.ne.s32.totalorder %s457, %s458
      %p472 = scmp.eq.s32.totalorder %s47, 1
      %p473 = por %p471, %p472
      %p475 = scmp.ne.s32.totalorder %s458, %s474
      %p476 = scmp.eq.s32.totalorder %s47, 0
      %p477 = por %p475, %p476
      %s478 = ssub.s32 %s41, %s48
      %p479 = scmp.eq.s32.totalorder %s478, 0
      %s481 = sadd.s32 %s480, 1
      %s482 = scalar_select %p479, %s480, %s481
      %p485 = pneg %p479
      %p486 = scmp.eq.s32.totalorder %s41, 1
      %p487 = por %p485, %p486
      %p488 = scmp.ne.s32.totalorder %s480, %s483
      %p489 = scmp.eq.s32.totalorder %s41, 0
      %p490 = por %p488, %p489
      %p491 = scmp.ne.s32.totalorder %s480, %s483
      %p492 = scmp.eq.s32.totalorder %s46, 1
      %p493 = por %p491, %p492
      %p494 = scmp.ne.s32.totalorder %s483, %s484
      %p495 = scmp.eq.s32.totalorder %s46, 0
      %p496 = por %p494, %p495
      %p497 = scmp.ne.s32.totalorder %s483, %s484
      %p498 = scmp.eq.s32.totalorder %s47, 1
      %p499 = por %p497, %p498
      %p501 = scmp.ne.s32.totalorder %s484, %s500
      %p502 = scmp.eq.s32.totalorder %s47, 0
      %p503 = por %p501, %p502
      %p504 = scmp.le.s32.totalorder 1, %s41
      %p505 = scmp.lt.s32.totalorder %s41, 3
      %p506 = pnand %p504, %p505
      %p507 = pneg %p506
      // Predicated region
      $region9: #{tpu_custom_call.1} parent=5 // pred_check
        _
      $region10: #{tpu_custom_call.1} parent=5 // pred_check_branch
        %509 = sbr.rel (%p506) target = $region12
      $region11: #{tpu_custom_call.1} parent=5 // pred_region
        %s510 = ssub.s32 %s41, 1
        // Predicated region
        $region13: #{tpu_custom_call.1} parent=11 // pred_check
          %p511 = pneg %p192
        $region14: #{tpu_custom_call.1} parent=11 // pred_check_branch
          %513 = sbr.rel (%p511) target = $region16
        $region15: #{tpu_custom_call.1} parent=11 // pred_region
          %s515 = ssub.s32 64, 64
          %516 = vsyncadd [#allocation9], %s515
          %s518 = sshll.u32 [#allocation8], 4
          %s519 = int_to_ptr.vmem [resolvable:$true] %s518
          %521 = dma.hbm_to_vmem [thread:$0]  %s5, 64, %s519, [#allocation9]
        $region16: #{tpu_custom_call.1} parent=11 // pred_fallthru
          _
        // Predicated region
        $region17: #{tpu_custom_call.1} parent=11 // pred_check
          %p522 = pneg %p213
        $region18: #{tpu_custom_call.1} parent=11 // pred_check_branch
          %524 = sbr.rel (%p522) target = $region20
        $region19: #{tpu_custom_call.1} parent=11 // pred_region
          %s526 = ssub.s32 64, 64
          %527 = vsyncadd [#allocation9], %s526
          %s529 = sshll.u32 [#allocation10], 4
          %s530 = int_to_ptr.vmem [resolvable:$true] %s529
          %532 = dma.hbm_to_vmem [thread:$0]  %s6, 64, %s530, [#allocation9]
        $region20: #{tpu_custom_call.1} parent=11 // pred_fallthru
          _
        // Predicated region
        $region21: #{tpu_custom_call.1} parent=11 // pred_check
          %p533 = pneg %p234
        $region22: #{tpu_custom_call.1} parent=11 // pred_check_branch
          %535 = sbr.rel (%p533) target = $region24
        $region23: #{tpu_custom_call.1} parent=11 // pred_region
          %s537 = ssub.s32 64, 64
          %538 = vsyncadd [#allocation12], %s537
          %s540 = sshll.u32 [#allocation11], 4
          %s541 = int_to_ptr.vmem [resolvable:$true] %s540
          %543 = dma.hbm_to_vmem [thread:$0]  %s7, 64, %s541, [#allocation12]
        $region24: #{tpu_custom_call.1} parent=11 // pred_fallthru
          _
        // Predicated region
        $region25: #{tpu_custom_call.1} parent=11 // pred_check
          %p544 = pneg %p255
        $region26: #{tpu_custom_call.1} parent=11 // pred_check_branch
          %546 = sbr.rel (%p544) target = $region28
        $region27: #{tpu_custom_call.1} parent=11 // pred_region
          %s548 = ssub.s32 256, 256
          %549 = vsyncadd [#allocation12], %s548
          %s550 = sshll.u32 [#allocation13], 4
          %s551 = int_to_ptr.vmem [resolvable:$true] %s550
          %556 = dma.hbm_to_vmem [thread:$0]  %s8, 256, %s551, [#allocation12], 64, 64, 4
        $region28: #{tpu_custom_call.1} parent=11 // pred_fallthru
          _
        // Predicated region
        $region29: #{tpu_custom_call.1} parent=11 // pred_check
          %p557 = pneg %p276
        $region30: #{tpu_custom_call.1} parent=11 // pred_check_branch
          %559 = sbr.rel (%p557) target = $region32
        $region31: #{tpu_custom_call.1} parent=11 // pred_region
          %s561 = ssub.s32 16, 16
          %562 = vsyncadd [#allocation15], %s561
          %s564 = sshll.u32 [#allocation14], 4
          %s565 = int_to_ptr.vmem [resolvable:$true] %s564
          %567 = dma.hbm_to_vmem [thread:$0]  %s9, 16, %s565, [#allocation15]
        $region32: #{tpu_custom_call.1} parent=11 // pred_fallthru
          _
        // Predicated region
        $region33: #{tpu_custom_call.1} parent=11 // pred_check
          %p568 = pneg %p297
        $region34: #{tpu_custom_call.1} parent=11 // pred_check_branch
          %570 = sbr.rel (%p568) target = $region36
        $region35: #{tpu_custom_call.1} parent=11 // pred_region
          _
        $region36: #{tpu_custom_call.1} parent=11 // pred_fallthru
          _
        // Predicated region
        $region37: #{tpu_custom_call.1} parent=11 // pred_check
          %p571 = pneg %p318
        $region38: #{tpu_custom_call.1} parent=11 // pred_check_branch
          %573 = sbr.rel (%p571) target = $region40
        $region39: #{tpu_custom_call.1} parent=11 // pred_region
          _
        $region40: #{tpu_custom_call.1} parent=11 // pred_fallthru
          _
        // Predicated region
        $region41: #{tpu_custom_call.1} parent=11 // pred_check
          %p574 = pneg %p339
        $region42: #{tpu_custom_call.1} parent=11 // pred_check_branch
          %576 = sbr.rel (%p574) target = $region44
        $region43: #{tpu_custom_call.1} parent=11 // pred_region
          _
        $region44: #{tpu_custom_call.1} parent=11 // pred_fallthru
          _
        // Predicated region
        $region45: #{tpu_custom_call.1} parent=11 // pred_check
          %p577 = pneg %p360
        $region46: #{tpu_custom_call.1} parent=11 // pred_check_branch
          %579 = sbr.rel (%p577) target = $region48
        $region47: #{tpu_custom_call.1} parent=11 // pred_region
          _
        $region48: #{tpu_custom_call.1} parent=11 // pred_fallthru
          _
        // Predicated region
        $region49: #{tpu_custom_call.1} parent=11 // pred_check
          %p580 = pneg %p381
        $region50: #{tpu_custom_call.1} parent=11 // pred_check_branch
          %582 = sbr.rel (%p580) target = $region52
        $region51: #{tpu_custom_call.1} parent=11 // pred_region
          _
        $region52: #{tpu_custom_call.1} parent=11 // pred_fallthru
          _
        // Predicated region
        $region53: #{tpu_custom_call.1} parent=11 // pred_check
          %p583 = pneg %p402
        $region54: #{tpu_custom_call.1} parent=11 // pred_check_branch
          %585 = sbr.rel (%p583) target = $region56
        $region55: #{tpu_custom_call.1} parent=11 // pred_region
          _
        $region56: #{tpu_custom_call.1} parent=11 // pred_fallthru
          _
        // Predicated region
        $region57: #{tpu_custom_call.1} parent=11 // pred_check
          %p586 = pneg %p423
        $region58: #{tpu_custom_call.1} parent=11 // pred_check_branch
          %588 = sbr.rel (%p586) target = $region60
        $region59: #{tpu_custom_call.1} parent=11 // pred_region
          _
        $region60: #{tpu_custom_call.1} parent=11 // pred_fallthru
          _
        // Predicated region
        $region61: #{tpu_custom_call.1} parent=11 // pred_check
          %p589 = pneg %p444
        $region62: #{tpu_custom_call.1} parent=11 // pred_check_branch
          %591 = sbr.rel (%p589) target = $region64
        $region63: #{tpu_custom_call.1} parent=11 // pred_region
          _
        $region64: #{tpu_custom_call.1} parent=11 // pred_fallthru
          _
      $region12: #{tpu_custom_call.1} parent=5 // pred_fallthru
        _
      %p592 = scmp.lt.s32.totalorder %s41, 2
      // Predicated region
      $region65: #{tpu_custom_call.1} parent=5 // pred_check
        %p593 = pneg %p592
      $region66: #{tpu_custom_call.1} parent=5 // pred_check_branch
        %595 = sbr.rel (%p593) target = $region68
      $region67: #{tpu_custom_call.1} parent=5 // pred_region
        // Predicated region
        $region69: #{tpu_custom_call.1} parent=67 // pred_check
          %p596 = pneg %p61
        $region70: #{tpu_custom_call.1} parent=67 // pred_check_branch
          %598 = sbr.rel (%p596) target = $region72
        $region71: #{tpu_custom_call.1} parent=67 // pred_region
          %p599 = scmp.lt.s32.totalorder %s41, 1
          %s600 = scalar_select %p599, %s41, 1
          %s601 = smul.addr %s600, 4
          %s602 = smul.addr %s601, 8
          %s603 = scalar_lea.vmem %s0, %s602
        $region72: #{tpu_custom_call.1} parent=67 // pred_fallthru
          _
        // Predicated region
        $region73: #{tpu_custom_call.1} parent=67 // pred_check
          %p604 = pneg %p87
        $region74: #{tpu_custom_call.1} parent=67 // pred_check_branch
          %606 = sbr.rel (%p604) target = $region76
        $region75: #{tpu_custom_call.1} parent=67 // pred_region
          %s607 = sand.u32 %s77, 1
          %s608 = scalar_lea.sflag [#allocation3], %s607
          %s609 = sand.u32 %s77, 1
          %s610 = smul.addr %s609, 32
          %s611 = scalar_lea.vmem [#allocation2], %s610
          %s613 = ssub.s32 512, 512
          %614 = vsyncadd %s608, %s613
          %s615 = smul.addr %s41, 4
          %s616 = smul.addr %s615, 128
          %s617 = scalar_lea.hbm %s1, %s616
          %s618 = sshll.u32 %s611, 4
          %s619 = int_to_ptr.vmem [resolvable:$true] %s618
          %624 = dma.hbm_to_vmem [thread:$0]  %s617, 512, %s619, %s608, 128, 128, 8
        $region76: #{tpu_custom_call.1} parent=67 // pred_fallthru
          _
        // Predicated region
        $region77: #{tpu_custom_call.1} parent=67 // pred_check
          %p625 = pneg %p113
        $region78: #{tpu_custom_call.1} parent=67 // pred_check_branch
          %627 = sbr.rel (%p625) target = $region80
        $region79: #{tpu_custom_call.1} parent=67 // pred_region
          %s628 = sand.u32 %s41, 1
          %s629 = scalar_lea.sflag [#allocation6], %s628
          %s630 = sand.u32 %s103, 1
          %s631 = smul.addr %s630, 32
          %s632 = scalar_lea.vmem [#allocation5], %s631
          %s634 = ssub.s32 512, 512
          %635 = vsyncadd %s629, %s634
          %s636 = smul.addr %s41, 4
          %s637 = smul.addr %s636, 128
          %s638 = scalar_lea.hbm %s2, %s637
          %s639 = sshll.u32 %s632, 4
          %s640 = int_to_ptr.vmem [resolvable:$true] %s639
          %645 = dma.hbm_to_vmem [thread:$0]  %s638, 512, %s640, %s629, 128, 128, 8
        $region80: #{tpu_custom_call.1} parent=67 // pred_fallthru
          _
        // Predicated region
        $region81: #{tpu_custom_call.1} parent=67 // pred_check
          %p646 = pneg %p139
        $region82: #{tpu_custom_call.1} parent=67 // pred_check_branch
          %648 = sbr.rel (%p646) target = $region84
        $region83: #{tpu_custom_call.1} parent=67 // pred_region
          %p649 = scmp.lt.s32.totalorder %s41, 1
          %s650 = scalar_select %p649, %s41, 1
          %s651 = smul.addr %s650, 8
          %s652 = scalar_lea.vmem %s3, %s651
        $region84: #{tpu_custom_call.1} parent=67 // pred_fallthru
          _
        // Predicated region
        $region85: #{tpu_custom_call.1} parent=67 // pred_check
          %p653 = pneg %p165
        $region86: #{tpu_custom_call.1} parent=67 // pred_check_branch
          %655 = sbr.rel (%p653) target = $region88
        $region87: #{tpu_custom_call.1} parent=67 // pred_region
          %s656 = sand.u32 %s41, 1
          %s657 = scalar_lea.sflag [#allocation6], %s656
          %s658 = sand.u32 %s155, 1
          %s659 = smul.addr %s658, 8
          %s660 = scalar_lea.vmem [#allocation7], %s659
          %s662 = ssub.s32 128, 128
          %663 = vsyncadd %s657, %s662
          %s664 = smul.addr %s41, 128
          %s665 = scalar_lea.hbm %s4, %s664
          %s667 = sshll.u32 %s660, 4
          %s668 = int_to_ptr.vmem [resolvable:$true] %s667
          %670 = dma.hbm_to_vmem [thread:$0]  %s665, 128, %s668, %s657
        $region88: #{tpu_custom_call.1} parent=67 // pred_fallthru
          _
      $region68: #{tpu_custom_call.1} parent=5 // pred_fallthru
        _
      %p671 = scmp.le.s32.totalorder 1, %s41
      %p672 = scmp.lt.s32.totalorder %s41, 3
      %p673 = pnand %p671, %p672
      %p674 = pneg %p673
      // Predicated region
      $region89: #{tpu_custom_call.1} parent=5 // pred_check
        _
      $region90: #{tpu_custom_call.1} parent=5 // pred_check_branch
        %676 = sbr.rel (%p673) target = $region92
      $region91: #{tpu_custom_call.1} parent=5 // pred_region
        %s677 = ssub.s32 %s41, 1
        %s678 = sand.u32 %s80, 1
        %s679 = scalar_lea.sflag [#allocation3], %s678
        %s680 = sand.u32 %s80, 1
        %s681 = smul.addr %s680, 32
        %s682 = scalar_lea.vmem [#allocation2], %s681
        // Predicated region
        $region93: #{tpu_custom_call.1} parent=91 // pred_check
          %p683 = pneg %p93
        $region94: #{tpu_custom_call.1} parent=91 // pred_check_branch
          %685 = sbr.rel (%p683) target = $region96
        $region95: #{tpu_custom_call.1} parent=91 // pred_region
          %686 = dma.done %s679, 512
        $region96: #{tpu_custom_call.1} parent=91 // pred_fallthru
          _
        %s687 = sand.u32 %s46, 1
        %s688 = scalar_lea.sflag [#allocation6], %s687
        %s689 = sand.u32 %s106, 1
        %s690 = smul.addr %s689, 32
        %s691 = scalar_lea.vmem [#allocation5], %s690
        // Predicated region
        $region97: #{tpu_custom_call.1} parent=91 // pred_check
          %p692 = pneg %p119
        $region98: #{tpu_custom_call.1} parent=91 // pred_check_branch
          %694 = sbr.rel (%p692) target = $region100
        $region99: #{tpu_custom_call.1} parent=91 // pred_region
          %695 = dma.done %s688, 512
        $region100: #{tpu_custom_call.1} parent=91 // pred_fallthru
          _
        %s696 = sand.u32 %s46, 1
        %s697 = scalar_lea.sflag [#allocation6], %s696
        %s698 = sand.u32 %s158, 1
        %s699 = smul.addr %s698, 8
        %s700 = scalar_lea.vmem [#allocation7], %s699
        // Predicated region
        $region101: #{tpu_custom_call.1} parent=91 // pred_check
          %p701 = pneg %p171
        $region102: #{tpu_custom_call.1} parent=91 // pred_check_branch
          %703 = sbr.rel (%p701) target = $region104
        $region103: #{tpu_custom_call.1} parent=91 // pred_region
          %704 = dma.done %s697, 128
        $region104: #{tpu_custom_call.1} parent=91 // pred_fallthru
          _
        // Predicated region
        $region105: #{tpu_custom_call.1} parent=91 // pred_check
          %p705 = pneg %p192
        $region106: #{tpu_custom_call.1} parent=91 // pred_check_branch
          %707 = sbr.rel (%p705) target = $region108
        $region107: #{tpu_custom_call.1} parent=91 // pred_region
          %708 = dma.done [#allocation9], 64
        $region108: #{tpu_custom_call.1} parent=91 // pred_fallthru
          _
        // Predicated region
        $region109: #{tpu_custom_call.1} parent=91 // pred_check
          %p709 = pneg %p213
        $region110: #{tpu_custom_call.1} parent=91 // pred_check_branch
          %711 = sbr.rel (%p709) target = $region112
        $region111: #{tpu_custom_call.1} parent=91 // pred_region
          %712 = dma.done [#allocation9], 64
        $region112: #{tpu_custom_call.1} parent=91 // pred_fallthru
          _
        // Predicated region
        $region113: #{tpu_custom_call.1} parent=91 // pred_check
          %p713 = pneg %p234
        $region114: #{tpu_custom_call.1} parent=91 // pred_check_branch
          %715 = sbr.rel (%p713) target = $region116
        $region115: #{tpu_custom_call.1} parent=91 // pred_region
          %716 = dma.done [#allocation12], 64
        $region116: #{tpu_custom_call.1} parent=91 // pred_fallthru
          _
        // Predicated region
        $region117: #{tpu_custom_call.1} parent=91 // pred_check
          %p717 = pneg %p255
        $region118: #{tpu_custom_call.1} parent=91 // pred_check_branch
          %719 = sbr.rel (%p717) target = $region120
        $region119: #{tpu_custom_call.1} parent=91 // pred_region
          %720 = dma.done [#allocation12], 256
        $region120: #{tpu_custom_call.1} parent=91 // pred_fallthru
          _
        // Predicated region
        $region121: #{tpu_custom_call.1} parent=91 // pred_check
          %p721 = pneg %p276
        $region122: #{tpu_custom_call.1} parent=91 // pred_check_branch
          %723 = sbr.rel (%p721) target = $region124
        $region123: #{tpu_custom_call.1} parent=91 // pred_region
          %724 = dma.done [#allocation15], 16
        $region124: #{tpu_custom_call.1} parent=91 // pred_fallthru
          _
        %p725 = scmp.lt.s32.totalorder %s46, 1
        %s726 = scalar_select %p725, %s46, 1
        %s727 = smul.addr %s726, 4
        %s728 = smul.addr %s727, 8
        %s729 = scalar_lea.vmem %s0, %s728
        %p730 = pneg %p67
        %p731 = pneg %p64
        %s732 = sand.u32 %s80, 1
        %s733 = scalar_lea.sflag [#allocation3], %s732
        %s734 = sand.u32 %s80, 1
        %s735 = smul.addr %s734, 32
        %s736 = scalar_lea.vmem [#allocation2], %s735
        %p737 = pneg %p93
        %p738 = pneg %p90
        %s739 = sand.u32 %s46, 1
        %s740 = scalar_lea.sflag [#allocation6], %s739
        %s741 = sand.u32 %s106, 1
        %s742 = smul.addr %s741, 32
        %s743 = scalar_lea.vmem [#allocation5], %s742
        %p744 = pneg %p119
        %p745 = pneg %p116
        %p746 = scmp.lt.s32.totalorder %s46, 1
        %s747 = scalar_select %p746, %s46, 1
        %s748 = smul.addr %s747, 8
        %s749 = scalar_lea.vmem %s3, %s748
        %p750 = pneg %p145
        %p751 = pneg %p142
        %s752 = sand.u32 %s46, 1
        %s753 = scalar_lea.sflag [#allocation6], %s752
        %s754 = sand.u32 %s158, 1
        %s755 = smul.addr %s754, 8
        %s756 = scalar_lea.vmem [#allocation7], %s755
        %p757 = pneg %p171
        %p758 = pneg %p168
        %p759 = pneg %p192
        %p760 = pneg %p189
        %p761 = pneg %p213
        %p762 = pneg %p210
        %p763 = pneg %p234
        %p764 = pneg %p231
        %p765 = pneg %p255
        %p766 = pneg %p252
        %p767 = pneg %p276
        %p768 = pneg %p273
        %p769 = pneg %p297
        %p770 = pneg %p294
        %p771 = pneg %p318
        %p772 = pneg %p315
        %p773 = pneg %p339
        %p774 = pneg %p336
        %p775 = pneg %p360
        %p776 = pneg %p357
        %p777 = pneg %p381
        %p778 = pneg %p378
        %p779 = pneg %p402
        %p780 = pneg %p399
        %p781 = pneg %p423
        %p782 = pneg %p420
        %p783 = pneg %p444
        %p784 = pneg %p441
        %p785 = pneg %p470
        %p786 = pneg %p467
        %s787 = sand.u32 %s457, 1
        %s788 = scalar_lea.sflag [#allocation4], %s787
        %s789 = sand.u32 %s457, 1
        %s790 = smul.addr %s789, 8
        %s791 = scalar_lea.vmem [#allocation16], %s790
        %p792 = pneg %p496
        %p793 = pneg %p493
        %s794 = sand.u32 %s483, 1
        %s795 = scalar_lea.sflag [#allocation18], %s794
        %s796 = sand.u32 %s483, 1
        %s797 = smul.addr %s796, 32
        %s798 = scalar_lea.vmem [#allocation17], %s797
        %p799 = scmp.lt.s32.totalorder %s46, 1
        %s800 = scalar_select %p799, %s46, 1
        %s801 = smul.addr %s800, 4
        %s802 = smul.addr %s801, 8
        %s803 = scalar_lea.vmem %s0, %s802
        %p804 = scmp.lt.s32.totalorder %s46, 1
        %s805 = scalar_select %p804, %s46, 1
        %s806 = smul.addr %s805, 8
        %s807 = scalar_lea.vmem %s3, %s806
        %v809 = vld [vmem:[%s803] sm:$0xff]
        %v810 = vld [vmem:[%s803 + $0x8] sm:$0xff]
        %v811 = vld [vmem:[%s803 + $0x10] sm:$0xff]
        %v812 = vld [vmem:[%s803 + $0x18] sm:$0xff]
        %v813 = vpack.c.bf16 %v810, %v809
        %v814 = vpack.c.bf16 %v812, %v811
        %v815 = vld [vmem:[#allocation8] sm:$0xf]
        %vm816 = vcmask 64512
        %v818 = vsel %vm816, %v813, 0
        %v821 = vsel %vm816, %v814, 0
        %vm823 = vcmask 1043456
        %v825 = vsel %vm823, %v815, 0
        %827 = vmatprep.subr.bf16.mxu0 0
        %828 = vmatpush1.bf16.msra.mxu0 0
        %829 = vmatprep.subr.bf16.mxu0 0
        %830 = vmatpush1.bf16.msra.mxu0 0
        %831 = vmatprep.subr.bf16.mxu0 0
        %832 = vmatpush1.bf16.msra.mxu0 0
        %833 = vmatprep.subr.bf16.mxu0 0
        %834 = vmatpush1.bf16.msra.mxu0 0
        %835 = vmatprep.subr.bf16.mxu0 0
        %836 = vmatpush1.bf16.msra.mxu0 0
        %837 = vmatprep.subr.bf16.mxu0 0
        %838 = vmatpush1.bf16.msra.mxu0 0
        %839 = vmatprep.subr.bf16.mxu0 0
        %840 = vmatpush1.bf16.msra.mxu0 0
        %841 = vmatprep.subr.bf16.mxu0 0
        %842 = vmatpush1.bf16.msra.mxu0 %v825
        %843 = vmatprep.subr.bf16.mxu0 0
        %844 = vmatpush2.bf16.msra.mxu0 0
        %845 = vmatprep.subr.bf16.mxu0 0
        %846 = vmatpush2.bf16.msra.mxu0 0
        %847 = vmatprep.subr.bf16.mxu0 0
        %848 = vmatpush2.bf16.msra.mxu0 0
        %849 = vmatprep.subr.bf16.mxu0 0
        %850 = vmatpush2.bf16.msra.mxu0 0
        %851 = vmatprep.subr.bf16.mxu0 0
        %852 = vmatpush2.bf16.msra.mxu0 0
        %853 = vmatprep.subr.bf16.mxu0 0
        %854 = vmatpush2.bf16.msra.mxu0 0
        %855 = vmatprep.subr.bf16.mxu0 0
        %856 = vmatpush2.bf16.msra.mxu0 0
        %857 = vmatprep.subr.bf16.mxu0 0
        %858 = vmatpush2.bf16.msra.mxu0 0
        %859 = vmatprep.mubr.bf16.mxu0 0
        %860 = vmatmul.mubr.bf16.gmra.mxu0 %v818
        %v861 = vpop.f32.mrf.mxu0
        %v862 = vadd.f32 0.0, %v861
        %v863 = vpop.f32.mrf.mxu0
        %v864 = vpop.f32.mrf.mxu0
        %v865 = vadd.f32 0.0, %v864
        %v866 = vpop.f32.mrf.mxu0
        %867 = vmatprep.mubr.bf16.mxu0 0
        %868 = vmatmul.mubr.bf16.gmra.mxu0 %v821
        %v869 = vpop.f32.mrf.mxu0
        %v870 = vadd.f32 0.0, %v869
        %v871 = vpop.f32.mrf.mxu0
        %v872 = vpop.f32.mrf.mxu0
        %v873 = vadd.f32 0.0, %v872
        %v874 = vpop.f32.mrf.mxu0
        %875 = vdwg.mxu0
        %v876 = vpack.c.bf16 %v862, %v862
        %v877 = vpack.c.bf16 %v865, %v865
        %v878 = vpack.c.bf16 %v870, %v870
        %v879 = vpack.c.bf16 %v873, %v873
        %v880 = vld [vmem:[%s682] sm:$0xff]
        %v881 = vld [vmem:[%s682 + $0x8] sm:$0xff]
        %v882 = vld [vmem:[%s682 + $0x10] sm:$0xff]
        %v883 = vld [vmem:[%s682 + $0x18] sm:$0xff]
        %v884 = vpack.c.bf16 %v881, %v880
        %v885 = vpack.c.bf16 %v883, %v882
        %v886 = vld [vmem:[#allocation10] sm:$0xf]
        %v888 = vsel %vm816, %v884, 0
        %v891 = vsel %vm816, %v885, 0
        %v894 = vsel %vm823, %v886, 0
        %896 = vmatprep.subr.bf16.mxu0 0
        %897 = vmatpush1.bf16.msra.mxu0 0
        %898 = vmatprep.subr.bf16.mxu0 0
        %899 = vmatpush1.bf16.msra.mxu0 0
        %900 = vmatprep.subr.bf16.mxu0 0
        %901 = vmatpush1.bf16.msra.mxu0 0
        %902 = vmatprep.subr.bf16.mxu0 0
        %903 = vmatpush1.bf16.msra.mxu0 0
        %904 = vmatprep.subr.bf16.mxu0 0
        %905 = vmatpush1.bf16.msra.mxu0 0
        %906 = vmatprep.subr.bf16.mxu0 0
        %907 = vmatpush1.bf16.msra.mxu0 0
        %908 = vmatprep.subr.bf16.mxu0 0
        %909 = vmatpush1.bf16.msra.mxu0 0
        %910 = vmatprep.subr.bf16.mxu0 0
        %911 = vmatpush1.bf16.msra.mxu0 %v894
        %912 = vmatprep.subr.bf16.mxu0 0
        %913 = vmatpush2.bf16.msra.mxu0 0
        %914 = vmatprep.subr.bf16.mxu0 0
        %915 = vmatpush2.bf16.msra.mxu0 0
        %916 = vmatprep.subr.bf16.mxu0 0
        %917 = vmatpush2.bf16.msra.mxu0 0
        %918 = vmatprep.subr.bf16.mxu0 0
        %919 = vmatpush2.bf16.msra.mxu0 0
        %920 = vmatprep.subr.bf16.mxu0 0
        %921 = vmatpush2.bf16.msra.mxu0 0
        %922 = vmatprep.subr.bf16.mxu0 0
        %923 = vmatpush2.bf16.msra.mxu0 0
        %924 = vmatprep.subr.bf16.mxu0 0
        %925 = vmatpush2.bf16.msra.mxu0 0
        %926 = vmatprep.subr.bf16.mxu0 0
        %927 = vmatpush2.bf16.msra.mxu0 0
        %928 = vmatprep.mubr.bf16.mxu0 0
        %929 = vmatmul.mubr.bf16.gmra.mxu0 %v888
        %v930 = vpop.f32.mrf.mxu0
        %v931 = vadd.f32 0.0, %v930
        %v932 = vpop.f32.mrf.mxu0
        %v933 = vpop.f32.mrf.mxu0
        %v934 = vadd.f32 0.0, %v933
        %v935 = vpop.f32.mrf.mxu0
        %936 = vmatprep.mubr.bf16.mxu0 0
        %937 = vmatmul.mubr.bf16.gmra.mxu0 %v891
        %v938 = vpop.f32.mrf.mxu0
        %v939 = vadd.f32 0.0, %v938
        %v940 = vpop.f32.mrf.mxu0
        %v941 = vpop.f32.mrf.mxu0
        %v942 = vadd.f32 0.0, %v941
        %v943 = vpop.f32.mrf.mxu0
        %944 = vdwg.mxu0
        %v945 = vpack.c.bf16 %v931, %v931
        %v946 = vpack.c.bf16 %v934, %v934
        %v947 = vpack.c.bf16 %v939, %v939
        %v948 = vpack.c.bf16 %v942, %v942
        %v949 = vld [vmem:[%s691] sm:$0xff]
        %v950 = vld [vmem:[%s691 + $0x8] sm:$0xff]
        %v951 = vld [vmem:[%s691 + $0x10] sm:$0xff]
        %v952 = vld [vmem:[%s691 + $0x18] sm:$0xff]
        %v953 = vpack.c.bf16 %v950, %v949
        %v954 = vpack.c.bf16 %v952, %v951
        %v955 = vld [vmem:[#allocation11] sm:$0xf]
        %v957 = vsel %vm816, %v953, 0
        %v960 = vsel %vm816, %v954, 0
        %v963 = vsel %vm823, %v955, 0
        %965 = vmatprep.subr.bf16.mxu0 0
        %966 = vmatpush1.bf16.msra.mxu0 0
        %967 = vmatprep.subr.bf16.mxu0 0
        %968 = vmatpush1.bf16.msra.mxu0 0
        %969 = vmatprep.subr.bf16.mxu0 0
        %970 = vmatpush1.bf16.msra.mxu0 0
        %971 = vmatprep.subr.bf16.mxu0 0
        %972 = vmatpush1.bf16.msra.mxu0 0
        %973 = vmatprep.subr.bf16.mxu0 0
        %974 = vmatpush1.bf16.msra.mxu0 0
        %975 = vmatprep.subr.bf16.mxu0 0
        %976 = vmatpush1.bf16.msra.mxu0 0
        %977 = vmatprep.subr.bf16.mxu0 0
        %978 = vmatpush1.bf16.msra.mxu0 0
        %979 = vmatprep.subr.bf16.mxu0 0
        %980 = vmatpush1.bf16.msra.mxu0 %v963
        %981 = vmatprep.subr.bf16.mxu0 0
        %982 = vmatpush2.bf16.msra.mxu0 0
        %983 = vmatprep.subr.bf16.mxu0 0
        %984 = vmatpush2.bf16.msra.mxu0 0
        %985 = vmatprep.subr.bf16.mxu0 0
        %986 = vmatpush2.bf16.msra.mxu0 0
        %987 = vmatprep.subr.bf16.mxu0 0
        %988 = vmatpush2.bf16.msra.mxu0 0
        %989 = vmatprep.subr.bf16.mxu0 0
        %990 = vmatpush2.bf16.msra.mxu0 0
        %991 = vmatprep.subr.bf16.mxu0 0
        %992 = vmatpush2.bf16.msra.mxu0 0
        %993 = vmatprep.subr.bf16.mxu0 0
        %994 = vmatpush2.bf16.msra.mxu0 0
        %995 = vmatprep.subr.bf16.mxu0 0
        %996 = vmatpush2.bf16.msra.mxu0 0
        %997 = vmatprep.mubr.bf16.mxu0 0
        %998 = vmatmul.mubr.bf16.gmra.mxu0 %v957
        %v999 = vpop.f32.mrf.mxu0
        %v1000 = vadd.f32 0.0, %v999
        %v1001 = vpop.f32.mrf.mxu0
        %v1002 = vpop.f32.mrf.mxu0
        %v1003 = vadd.f32 0.0, %v1002
        %v1004 = vpop.f32.mrf.mxu0
        %1005 = vmatprep.mubr.bf16.mxu0 0
        %1006 = vmatmul.mubr.bf16.gmra.mxu0 %v960
        %v1007 = vpop.f32.mrf.mxu0
        %v1008 = vadd.f32 0.0, %v1007
        %v1009 = vpop.f32.mrf.mxu0
        %v1010 = vpop.f32.mrf.mxu0
        %v1011 = vadd.f32 0.0, %v1010
        %v1012 = vpop.f32.mrf.mxu0
        %1013 = vdwg.mxu0
        %v1014 = vpack.c.bf16 %v1000, %v1000
        %v1015 = vpack.c.bf16 %v1003, %v1003
        %v1016 = vpack.c.bf16 %v1008, %v1008
        %v1017 = vpack.c.bf16 %v1011, %v1011
        %v1019 = vsel %vm816, %v1014, 0
        %v1022 = vsel %vm816, %v945, 0
        %1024 = vmatprep.subr.bf16.mxu0 0
        %1025 = vmatpush1.bf16.xpose.msra.mxu0 0
        %1026 = vmatprep.subr.bf16.mxu0 0
        %1027 = vmatpush1.bf16.xpose.msra.mxu0 0
        %1028 = vmatprep.subr.bf16.mxu0 0
        %1029 = vmatpush1.bf16.xpose.msra.mxu0 0
        %1030 = vmatprep.subr.bf16.mxu0 0
        %1031 = vmatpush1.bf16.xpose.msra.mxu0 0
        %1032 = vmatprep.subr.bf16.mxu0 0
        %1033 = vmatpush1.bf16.xpose.msra.mxu0 0
        %1034 = vmatprep.subr.bf16.mxu0 0
        %1035 = vmatpush1.bf16.xpose.msra.mxu0 0
        %1036 = vmatprep.subr.bf16.mxu0 0
        %1037 = vmatpush1.bf16.xpose.msra.mxu0 0
        %1038 = vmatprep.subr.bf16.mxu0 0
        %1039 = vmatpush1.bf16.xpose.msra.mxu0 %v1022
        %1040 = vmatprep.subr.bf16.mxu0 0
        %1041 = vmatpush2.bf16.xpose.msra.mxu0 0
        %1042 = vmatprep.subr.bf16.mxu0 0
        %1043 = vmatpush2.bf16.xpose.msra.mxu0 0
        %1044 = vmatprep.subr.bf16.mxu0 0
        %1045 = vmatpush2.bf16.xpose.msra.mxu0 0
        %1046 = vmatprep.subr.bf16.mxu0 0
        %1047 = vmatpush2.bf16.xpose.msra.mxu0 0
        %1048 = vmatprep.subr.bf16.mxu0 0
        %1049 = vmatpush2.bf16.xpose.msra.mxu0 0
        %1050 = vmatprep.subr.bf16.mxu0 0
        %1051 = vmatpush2.bf16.xpose.msra.mxu0 0
        %1052 = vmatprep.subr.bf16.mxu0 0
        %1053 = vmatpush2.bf16.xpose.msra.mxu0 0
        %1054 = vmatprep.subr.bf16.mxu0 0
        %1055 = vmatpush2.bf16.xpose.msra.mxu0 0
        %1056 = vmatprep.mubr.bf16.mxu0 0
        %1057 = vmatmul.mubr.bf16.gmra.mxu0 %v1019
        %v1058 = vpop.f32.mrf.mxu0
        %v1059 = vadd.f32 0.0, %v1058
        %v1060 = vpop.f32.mrf.mxu0
        %v1061 = vpop.f32.mrf.mxu0
        %v1062 = vpop.f32.mrf.mxu0
        %1063 = vdwg.mxu0
        %v1065 = vsel %vm816, %v1015, 0
        %v1068 = vsel %vm816, %v946, 0
        %1070 = vmatprep.subr.bf16.mxu0 0
        %1071 = vmatpush1.bf16.xpose.msra.mxu0 0
        %1072 = vmatprep.subr.bf16.mxu0 0
        %1073 = vmatpush1.bf16.xpose.msra.mxu0 0
        %1074 = vmatprep.subr.bf16.mxu0 0
        %1075 = vmatpush1.bf16.xpose.msra.mxu0 0
        %1076 = vmatprep.subr.bf16.mxu0 0
        %1077 = vmatpush1.bf16.xpose.msra.mxu0 0
        %1078 = vmatprep.subr.bf16.mxu0 0
        %1079 = vmatpush1.bf16.xpose.msra.mxu0 0
        %1080 = vmatprep.subr.bf16.mxu0 0
        %1081 = vmatpush1.bf16.xpose.msra.mxu0 0
        %1082 = vmatprep.subr.bf16.mxu0 0
        %1083 = vmatpush1.bf16.xpose.msra.mxu0 0
        %1084 = vmatprep.subr.bf16.mxu0 0
        %1085 = vmatpush1.bf16.xpose.msra.mxu0 %v1068
        %1086 = vmatprep.subr.bf16.mxu0 0
        %1087 = vmatpush2.bf16.xpose.msra.mxu0 0
        %1088 = vmatprep.subr.bf16.mxu0 0
        %1089 = vmatpush2.bf16.xpose.msra.mxu0 0
        %1090 = vmatprep.subr.bf16.mxu0 0
        %1091 = vmatpush2.bf16.xpose.msra.mxu0 0
        %1092 = vmatprep.subr.bf16.mxu0 0
        %1093 = vmatpush2.bf16.xpose.msra.mxu0 0
        %1094 = vmatprep.subr.bf16.mxu0 0
        %1095 = vmatpush2.bf16.xpose.msra.mxu0 0
        %1096 = vmatprep.subr.bf16.mxu0 0
        %1097 = vmatpush2.bf16.xpose.msra.mxu0 0
        %1098 = vmatprep.subr.bf16.mxu0 0
        %1099 = vmatpush2.bf16.xpose.msra.mxu0 0
        %1100 = vmatprep.subr.bf16.mxu0 0
        %1101 = vmatpush2.bf16.xpose.msra.mxu0 0
        %1102 = vmatprep.mubr.bf16.mxu0 0
        %1103 = vmatmul.mubr.bf16.gmra.mxu0 %v1065
        %v1104 = vpop.f32.mrf.mxu0
        %v1105 = vadd.f32 0.0, %v1104
        %v1106 = vpop.f32.mrf.mxu0
        %v1107 = vpop.f32.mrf.mxu0
        %v1108 = vpop.f32.mrf.mxu0
        %1109 = vdwg.mxu0
        %v1111 = vsel %vm816, %v1016, 0
        %v1114 = vsel %vm816, %v947, 0
        %1116 = vmatprep.subr.bf16.mxu0 0
        %1117 = vmatpush1.bf16.xpose.msra.mxu0 0
        %1118 = vmatprep.subr.bf16.mxu0 0
        %1119 = vmatpush1.bf16.xpose.msra.mxu0 0
        %1120 = vmatprep.subr.bf16.mxu0 0
        %1121 = vmatpush1.bf16.xpose.msra.mxu0 0
        %1122 = vmatprep.subr.bf16.mxu0 0
        %1123 = vmatpush1.bf16.xpose.msra.mxu0 0
        %1124 = vmatprep.subr.bf16.mxu0 0
        %1125 = vmatpush1.bf16.xpose.msra.mxu0 0
        %1126 = vmatprep.subr.bf16.mxu0 0
        %1127 = vmatpush1.bf16.xpose.msra.mxu0 0
        %1128 = vmatprep.subr.bf16.mxu0 0
        %1129 = vmatpush1.bf16.xpose.msra.mxu0 0
        %1130 = vmatprep.subr.bf16.mxu0 0
        %1131 = vmatpush1.bf16.xpose.msra.mxu0 %v1114
        %1132 = vmatprep.subr.bf16.mxu0 0
        %1133 = vmatpush2.bf16.xpose.msra.mxu0 0
        %1134 = vmatprep.subr.bf16.mxu0 0
        %1135 = vmatpush2.bf16.xpose.msra.mxu0 0
        %1136 = vmatprep.subr.bf16.mxu0 0
        %1137 = vmatpush2.bf16.xpose.msra.mxu0 0
        %1138 = vmatprep.subr.bf16.mxu0 0
        %1139 = vmatpush2.bf16.xpose.msra.mxu0 0
        %1140 = vmatprep.subr.bf16.mxu0 0
        %1141 = vmatpush2.bf16.xpose.msra.mxu0 0
        %1142 = vmatprep.subr.bf16.mxu0 0
        %1143 = vmatpush2.bf16.xpose.msra.mxu0 0
        %1144 = vmatprep.subr.bf16.mxu0 0
        %1145 = vmatpush2.bf16.xpose.msra.mxu0 0
        %1146 = vmatprep.subr.bf16.mxu0 0
        %1147 = vmatpush2.bf16.xpose.msra.mxu0 0
        %1148 = vmatprep.mubr.bf16.mxu0 0
        %1149 = vmatmul.mubr.bf16.gmra.mxu0 %v1111
        %v1150 = vpop.f32.mrf.mxu0
        %v1151 = vadd.f32 0.0, %v1150
        %v1152 = vpop.f32.mrf.mxu0
        %v1153 = vpop.f32.mrf.mxu0
        %v1154 = vpop.f32.mrf.mxu0
        %1155 = vdwg.mxu0
        %v1157 = vsel %vm816, %v1017, 0
        %v1160 = vsel %vm816, %v948, 0
        %1162 = vmatprep.subr.bf16.mxu0 0
        %1163 = vmatpush1.bf16.xpose.msra.mxu0 0
        %1164 = vmatprep.subr.bf16.mxu0 0
        %1165 = vmatpush1.bf16.xpose.msra.mxu0 0
        %1166 = vmatprep.subr.bf16.mxu0 0
        %1167 = vmatpush1.bf16.xpose.msra.mxu0 0
        %1168 = vmatprep.subr.bf16.mxu0 0
        %1169 = vmatpush1.bf16.xpose.msra.mxu0 0
        %1170 = vmatprep.subr.bf16.mxu0 0
        %1171 = vmatpush1.bf16.xpose.msra.mxu0 0
        %1172 = vmatprep.subr.bf16.mxu0 0
        %1173 = vmatpush1.bf16.xpose.msra.mxu0 0
        %1174 = vmatprep.subr.bf16.mxu0 0
        %1175 = vmatpush1.bf16.xpose.msra.mxu0 0
        %1176 = vmatprep.subr.bf16.mxu0 0
        %1177 = vmatpush1.bf16.xpose.msra.mxu0 %v1160
        %1178 = vmatprep.subr.bf16.mxu0 0
        %1179 = vmatpush2.bf16.xpose.msra.mxu0 0
        %1180 = vmatprep.subr.bf16.mxu0 0
        %1181 = vmatpush2.bf16.xpose.msra.mxu0 0
        %1182 = vmatprep.subr.bf16.mxu0 0
        %1183 = vmatpush2.bf16.xpose.msra.mxu0 0
        %1184 = vmatprep.subr.bf16.mxu0 0
        %1185 = vmatpush2.bf16.xpose.msra.mxu0 0
        %1186 = vmatprep.subr.bf16.mxu0 0
        %1187 = vmatpush2.bf16.xpose.msra.mxu0 0
        %1188 = vmatprep.subr.bf16.mxu0 0
        %1189 = vmatpush2.bf16.xpose.msra.mxu0 0
        %1190 = vmatprep.subr.bf16.mxu0 0
        %1191 = vmatpush2.bf16.xpose.msra.mxu0 0
        %1192 = vmatprep.subr.bf16.mxu0 0
        %1193 = vmatpush2.bf16.xpose.msra.mxu0 0
        %1194 = vmatprep.mubr.bf16.mxu0 0
        %1195 = vmatmul.mubr.bf16.gmra.mxu0 %v1157
        %v1196 = vpop.f32.mrf.mxu0
        %v1197 = vadd.f32 0.0, %v1196
        %v1198 = vpop.f32.mrf.mxu0
        %v1199 = vpop.f32.mrf.mxu0
        %v1200 = vpop.f32.mrf.mxu0
        %1201 = vdwg.mxu0
        %v1202 = vld [vmem:[%s700] sm:$0xff]
        %vm1203 = vcmp.eq.f32.partialorder %v1202, 0.0
        %v1204 = vsel %vm1203, -1e+20, 0.0
        %v1205 = vadd.f32 %v1059, %v1204
        %v1206 = vadd.f32 %v1105, %v1204
        %v1207 = vadd.f32 %v1151, %v1204
        %v1208 = vadd.f32 %v1197, %v1204
        %v1209 = vsel %vm816, %v1205, -inf
        %1210 = vmax.xlane.f32.xlu0 %v1209
        %v1211 = vpop.xlane.xlu0 %1210
        %v1212 = vsel %vm816, %v1206, -inf
        %1213 = vmax.xlane.f32.xlu0 %v1212
        %v1214 = vpop.xlane.xlu0 %1213
        %v1215 = vsel %vm816, %v1207, -inf
        %1216 = vmax.xlane.f32.xlu0 %v1215
        %v1217 = vpop.xlane.xlu0 %1216
        %v1218 = vsel %vm816, %v1208, -inf
        %1219 = vmax.xlane.f32.xlu0 %v1218
        %v1220 = vpop.xlane.xlu0 %1219
        %v1221 = vsub.f32 %v1205, %v1211
        %v1222 = vsub.f32 %v1206, %v1214
        %v1223 = vsub.f32 %v1207, %v1217
        %v1224 = vsub.f32 %v1208, %v1220
        %v1225 = vmul.f32 %v1221, 1.442695
        %v1226 = vpow.pop %v1225
        %v1227 = vmul.f32 %v1222, 1.442695
        %v1228 = vpow.pop %v1227
        %v1229 = vmul.f32 %v1223, 1.442695
        %v1230 = vpow.pop %v1229
        %v1231 = vmul.f32 %v1224, 1.442695
        %v1232 = vpow.pop %v1231
        %v1233 = vsel %vm816, %v1226, 0.0
        %1234 = vadd.xlane.f32.xlu0 %v1233
        %v1235 = vpop.xlane.xlu0 %1234
        %v1236 = vsel %vm816, %v1228, 0.0
        %1237 = vadd.xlane.f32.xlu0 %v1236
        %v1238 = vpop.xlane.xlu0 %1237
        %v1239 = vsel %vm816, %v1230, 0.0
        %1240 = vadd.xlane.f32.xlu0 %v1239
        %v1241 = vpop.xlane.xlu0 %1240
        %v1242 = vsel %vm816, %v1232, 0.0
        %1243 = vadd.xlane.f32.xlu0 %v1242
        %v1244 = vpop.xlane.xlu0 %1243
        %v1245 = vrcp.pop %v1235
        %v1246 = vrcp.pop %v1238
        %v1247 = vrcp.pop %v1241
        %v1248 = vrcp.pop %v1244
        %v1249 = vmul.f32 %v1226, %v1245
        %v1250 = vmul.f32 %v1228, %v1246
        %v1251 = vmul.f32 %v1230, %v1247
        %v1252 = vmul.f32 %v1232, %v1248
        %1253 = vst.msk [vmem:[%s798] sm:$0xff] %vm816, %v1249
        %1254 = vst.msk [vmem:[%s798 + $0x8] sm:$0xff] %vm816, %v1250
        %1255 = vst.msk [vmem:[%s798 + $0x10] sm:$0xff] %vm816, %v1251
        %1256 = vst.msk [vmem:[%s798 + $0x18] sm:$0xff] %vm816, %v1252
        %v1257 = vpack.c.bf16 %v1249, %v1249
        %v1258 = vpack.c.bf16 %v1250, %v1250
        %v1259 = vpack.c.bf16 %v1251, %v1251
        %v1260 = vpack.c.bf16 %v1252, %v1252
        %v1262 = vsel %vm816, %v1257, 0
        %v1265 = vsel %vm823, %v876, 0
        %1267 = vmatprep.subr.bf16.mxu0 0
        %1268 = vmatpush1.bf16.msra.mxu0 0
        %1269 = vmatprep.subr.bf16.mxu0 0
        %1270 = vmatpush1.bf16.msra.mxu0 0
        %1271 = vmatprep.subr.bf16.mxu0 0
        %1272 = vmatpush1.bf16.msra.mxu0 0
        %1273 = vmatprep.subr.bf16.mxu0 0
        %1274 = vmatpush1.bf16.msra.mxu0 0
        %1275 = vmatprep.subr.bf16.mxu0 0
        %1276 = vmatpush1.bf16.msra.mxu0 0
        %1277 = vmatprep.subr.bf16.mxu0 0
        %1278 = vmatpush1.bf16.msra.mxu0 0
        %1279 = vmatprep.subr.bf16.mxu0 0
        %1280 = vmatpush1.bf16.msra.mxu0 0
        %1281 = vmatprep.subr.bf16.mxu0 0
        %1282 = vmatpush1.bf16.msra.mxu0 %v1265
        %1283 = vmatprep.subr.bf16.mxu0 0
        %1284 = vmatpush2.bf16.msra.mxu0 0
        %1285 = vmatprep.subr.bf16.mxu0 0
        %1286 = vmatpush2.bf16.msra.mxu0 0
        %1287 = vmatprep.subr.bf16.mxu0 0
        %1288 = vmatpush2.bf16.msra.mxu0 0
        %1289 = vmatprep.subr.bf16.mxu0 0
        %1290 = vmatpush2.bf16.msra.mxu0 0
        %1291 = vmatprep.subr.bf16.mxu0 0
        %1292 = vmatpush2.bf16.msra.mxu0 0
        %1293 = vmatprep.subr.bf16.mxu0 0
        %1294 = vmatpush2.bf16.msra.mxu0 0
        %1295 = vmatprep.subr.bf16.mxu0 0
        %1296 = vmatpush2.bf16.msra.mxu0 0
        %1297 = vmatprep.subr.bf16.mxu0 0
        %1298 = vmatpush2.bf16.msra.mxu0 0
        %1299 = vmatprep.mubr.bf16.mxu0 0
        %1300 = vmatmul.mubr.bf16.gmra.mxu0 %v1262
        %v1301 = vpop.f32.mrf.mxu0
        %v1302 = vadd.f32 0.0, %v1301
        %v1303 = vpop.f32.mrf.mxu0
        %v1304 = vpop.f32.mrf.mxu0
        %v1305 = vpop.f32.mrf.mxu0
        %1306 = vdwg.mxu0
        %v1308 = vsel %vm816, %v1258, 0
        %v1311 = vsel %vm823, %v877, 0
        %1313 = vmatprep.subr.bf16.mxu0 0
        %1314 = vmatpush1.bf16.msra.mxu0 0
        %1315 = vmatprep.subr.bf16.mxu0 0
        %1316 = vmatpush1.bf16.msra.mxu0 0
        %1317 = vmatprep.subr.bf16.mxu0 0
        %1318 = vmatpush1.bf16.msra.mxu0 0
        %1319 = vmatprep.subr.bf16.mxu0 0
        %1320 = vmatpush1.bf16.msra.mxu0 0
        %1321 = vmatprep.subr.bf16.mxu0 0
        %1322 = vmatpush1.bf16.msra.mxu0 0
        %1323 = vmatprep.subr.bf16.mxu0 0
        %1324 = vmatpush1.bf16.msra.mxu0 0
        %1325 = vmatprep.subr.bf16.mxu0 0
        %1326 = vmatpush1.bf16.msra.mxu0 0
        %1327 = vmatprep.subr.bf16.mxu0 0
        %1328 = vmatpush1.bf16.msra.mxu0 %v1311
        %1329 = vmatprep.subr.bf16.mxu0 0
        %1330 = vmatpush2.bf16.msra.mxu0 0
        %1331 = vmatprep.subr.bf16.mxu0 0
        %1332 = vmatpush2.bf16.msra.mxu0 0
        %1333 = vmatprep.subr.bf16.mxu0 0
        %1334 = vmatpush2.bf16.msra.mxu0 0
        %1335 = vmatprep.subr.bf16.mxu0 0
        %1336 = vmatpush2.bf16.msra.mxu0 0
        %1337 = vmatprep.subr.bf16.mxu0 0
        %1338 = vmatpush2.bf16.msra.mxu0 0
        %1339 = vmatprep.subr.bf16.mxu0 0
        %1340 = vmatpush2.bf16.msra.mxu0 0
        %1341 = vmatprep.subr.bf16.mxu0 0
        %1342 = vmatpush2.bf16.msra.mxu0 0
        %1343 = vmatprep.subr.bf16.mxu0 0
        %1344 = vmatpush2.bf16.msra.mxu0 0
        %1345 = vmatprep.mubr.bf16.mxu0 0
        %1346 = vmatmul.mubr.bf16.gmra.mxu0 %v1308
        %v1347 = vpop.f32.mrf.mxu0
        %v1348 = vadd.f32 0.0, %v1347
        %v1349 = vpop.f32.mrf.mxu0
        %v1350 = vpop.f32.mrf.mxu0
        %v1351 = vpop.f32.mrf.mxu0
        %1352 = vdwg.mxu0
        %v1354 = vsel %vm816, %v1259, 0
        %v1357 = vsel %vm823, %v878, 0
        %1359 = vmatprep.subr.bf16.mxu0 0
        %1360 = vmatpush1.bf16.msra.mxu0 0
        %1361 = vmatprep.subr.bf16.mxu0 0
        %1362 = vmatpush1.bf16.msra.mxu0 0
        %1363 = vmatprep.subr.bf16.mxu0 0
        %1364 = vmatpush1.bf16.msra.mxu0 0
        %1365 = vmatprep.subr.bf16.mxu0 0
        %1366 = vmatpush1.bf16.msra.mxu0 0
        %1367 = vmatprep.subr.bf16.mxu0 0
        %1368 = vmatpush1.bf16.msra.mxu0 0
        %1369 = vmatprep.subr.bf16.mxu0 0
        %1370 = vmatpush1.bf16.msra.mxu0 0
        %1371 = vmatprep.subr.bf16.mxu0 0
        %1372 = vmatpush1.bf16.msra.mxu0 0
        %1373 = vmatprep.subr.bf16.mxu0 0
        %1374 = vmatpush1.bf16.msra.mxu0 %v1357
        %1375 = vmatprep.subr.bf16.mxu0 0
        %1376 = vmatpush2.bf16.msra.mxu0 0
        %1377 = vmatprep.subr.bf16.mxu0 0
        %1378 = vmatpush2.bf16.msra.mxu0 0
        %1379 = vmatprep.subr.bf16.mxu0 0
        %1380 = vmatpush2.bf16.msra.mxu0 0
        %1381 = vmatprep.subr.bf16.mxu0 0
        %1382 = vmatpush2.bf16.msra.mxu0 0
        %1383 = vmatprep.subr.bf16.mxu0 0
        %1384 = vmatpush2.bf16.msra.mxu0 0
        %1385 = vmatprep.subr.bf16.mxu0 0
        %1386 = vmatpush2.bf16.msra.mxu0 0
        %1387 = vmatprep.subr.bf16.mxu0 0
        %1388 = vmatpush2.bf16.msra.mxu0 0
        %1389 = vmatprep.subr.bf16.mxu0 0
        %1390 = vmatpush2.bf16.msra.mxu0 0
        %1391 = vmatprep.mubr.bf16.mxu0 0
        %1392 = vmatmul.mubr.bf16.gmra.mxu0 %v1354
        %v1393 = vpop.f32.mrf.mxu0
        %v1394 = vadd.f32 0.0, %v1393
        %v1395 = vpop.f32.mrf.mxu0
        %v1396 = vpop.f32.mrf.mxu0
        %v1397 = vpop.f32.mrf.mxu0
        %1398 = vdwg.mxu0
        %v1400 = vsel %vm816, %v1260, 0
        %v1403 = vsel %vm823, %v879, 0
        %1405 = vmatprep.subr.bf16.mxu0 0
        %1406 = vmatpush1.bf16.msra.mxu0 0
        %1407 = vmatprep.subr.bf16.mxu0 0
        %1408 = vmatpush1.bf16.msra.mxu0 0
        %1409 = vmatprep.subr.bf16.mxu0 0
        %1410 = vmatpush1.bf16.msra.mxu0 0
        %1411 = vmatprep.subr.bf16.mxu0 0
        %1412 = vmatpush1.bf16.msra.mxu0 0
        %1413 = vmatprep.subr.bf16.mxu0 0
        %1414 = vmatpush1.bf16.msra.mxu0 0
        %1415 = vmatprep.subr.bf16.mxu0 0
        %1416 = vmatpush1.bf16.msra.mxu0 0
        %1417 = vmatprep.subr.bf16.mxu0 0
        %1418 = vmatpush1.bf16.msra.mxu0 0
        %1419 = vmatprep.subr.bf16.mxu0 0
        %1420 = vmatpush1.bf16.msra.mxu0 %v1403
        %1421 = vmatprep.subr.bf16.mxu0 0
        %1422 = vmatpush2.bf16.msra.mxu0 0
        %1423 = vmatprep.subr.bf16.mxu0 0
        %1424 = vmatpush2.bf16.msra.mxu0 0
        %1425 = vmatprep.subr.bf16.mxu0 0
        %1426 = vmatpush2.bf16.msra.mxu0 0
        %1427 = vmatprep.subr.bf16.mxu0 0
        %1428 = vmatpush2.bf16.msra.mxu0 0
        %1429 = vmatprep.subr.bf16.mxu0 0
        %1430 = vmatpush2.bf16.msra.mxu0 0
        %1431 = vmatprep.subr.bf16.mxu0 0
        %1432 = vmatpush2.bf16.msra.mxu0 0
        %1433 = vmatprep.subr.bf16.mxu0 0
        %1434 = vmatpush2.bf16.msra.mxu0 0
        %1435 = vmatprep.subr.bf16.mxu0 0
        %1436 = vmatpush2.bf16.msra.mxu0 0
        %1437 = vmatprep.mubr.bf16.mxu0 0
        %1438 = vmatmul.mubr.bf16.gmra.mxu0 %v1400
        %v1439 = vpop.f32.mrf.mxu0
        %v1440 = vadd.f32 0.0, %v1439
        %v1441 = vpop.f32.mrf.mxu0
        %v1442 = vpop.f32.mrf.mxu0
        %v1443 = vpop.f32.mrf.mxu0
        %1444 = vdwg.mxu0
        %v1445 = vpack.c.bf16 %v1302, %v1302
        %v1446 = vpack.c.bf16 %v1348, %v1348
        %v1447 = vpack.c.bf16 %v1394, %v1394
        %v1448 = vpack.c.bf16 %v1440, %v1440
        %v1449 = vld [vmem:[#allocation13] sm:$0xf]
        %s1450 = scalar_lea.vmem [#allocation13], 4
        %v1451 = vld [vmem:[%s1450] sm:$0xf]
        %v1453 = vsel %vm816, %v1446, 0
        %v1456 = vsel %vm823, %v1451, 0
        %1458 = vmatprep.subr.bf16.mxu0 0
        %1459 = vmatpush1.bf16.msra.mxu0 0
        %1460 = vmatprep.subr.bf16.mxu0 0
        %1461 = vmatpush1.bf16.msra.mxu0 0
        %1462 = vmatprep.subr.bf16.mxu0 0
        %1463 = vmatpush1.bf16.msra.mxu0 0
        %1464 = vmatprep.subr.bf16.mxu0 0
        %1465 = vmatpush1.bf16.msra.mxu0 0
        %1466 = vmatprep.subr.bf16.mxu0 0
        %1467 = vmatpush1.bf16.msra.mxu0 0
        %1468 = vmatprep.subr.bf16.mxu0 0
        %1469 = vmatpush1.bf16.msra.mxu0 0
        %1470 = vmatprep.subr.bf16.mxu0 0
        %1471 = vmatpush1.bf16.msra.mxu0 0
        %1472 = vmatprep.subr.bf16.mxu0 0
        %1473 = vmatpush1.bf16.msra.mxu0 %v1456
        %1474 = vmatprep.subr.bf16.mxu0 0
        %1475 = vmatpush2.bf16.msra.mxu0 0
        %1476 = vmatprep.subr.bf16.mxu0 0
        %1477 = vmatpush2.bf16.msra.mxu0 0
        %1478 = vmatprep.subr.bf16.mxu0 0
        %1479 = vmatpush2.bf16.msra.mxu0 0
        %1480 = vmatprep.subr.bf16.mxu0 0
        %1481 = vmatpush2.bf16.msra.mxu0 0
        %1482 = vmatprep.subr.bf16.mxu0 0
        %1483 = vmatpush2.bf16.msra.mxu0 0
        %1484 = vmatprep.subr.bf16.mxu0 0
        %1485 = vmatpush2.bf16.msra.mxu0 0
        %1486 = vmatprep.subr.bf16.mxu0 0
        %1487 = vmatpush2.bf16.msra.mxu0 0
        %1488 = vmatprep.subr.bf16.mxu0 0
        %1489 = vmatpush2.bf16.msra.mxu0 0
        %1490 = vmatprep.mubr.bf16.mxu0 0
        %1491 = vmatmul.mubr.bf16.gmra.mxu0 %v1453
        %v1492 = vpop.f32.mrf.mxu0
        %v1493 = vadd.f32 0.0, %v1492
        %v1494 = vpop.f32.mrf.mxu0
        %v1495 = vpop.f32.mrf.mxu0
        %v1496 = vpop.f32.mrf.mxu0
        %1497 = vdwg.mxu0
        %v1499 = vsel %vm816, %v1445, 0
        %v1502 = vsel %vm823, %v1449, 0
        %1504 = vmatprep.subr.bf16.mxu0 0
        %1505 = vmatpush1.bf16.msra.mxu0 0
        %1506 = vmatprep.subr.bf16.mxu0 0
        %1507 = vmatpush1.bf16.msra.mxu0 0
        %1508 = vmatprep.subr.bf16.mxu0 0
        %1509 = vmatpush1.bf16.msra.mxu0 0
        %1510 = vmatprep.subr.bf16.mxu0 0
        %1511 = vmatpush1.bf16.msra.mxu0 0
        %1512 = vmatprep.subr.bf16.mxu0 0
        %1513 = vmatpush1.bf16.msra.mxu0 0
        %1514 = vmatprep.subr.bf16.mxu0 0
        %1515 = vmatpush1.bf16.msra.mxu0 0
        %1516 = vmatprep.subr.bf16.mxu0 0
        %1517 = vmatpush1.bf16.msra.mxu0 0
        %1518 = vmatprep.subr.bf16.mxu0 0
        %1519 = vmatpush1.bf16.msra.mxu0 %v1502
        %1520 = vmatprep.subr.bf16.mxu0 0
        %1521 = vmatpush2.bf16.msra.mxu0 0
        %1522 = vmatprep.subr.bf16.mxu0 0
        %1523 = vmatpush2.bf16.msra.mxu0 0
        %1524 = vmatprep.subr.bf16.mxu0 0
        %1525 = vmatpush2.bf16.msra.mxu0 0
        %1526 = vmatprep.subr.bf16.mxu0 0
        %1527 = vmatpush2.bf16.msra.mxu0 0
        %1528 = vmatprep.subr.bf16.mxu0 0
        %1529 = vmatpush2.bf16.msra.mxu0 0
        %1530 = vmatprep.subr.bf16.mxu0 0
        %1531 = vmatpush2.bf16.msra.mxu0 0
        %1532 = vmatprep.subr.bf16.mxu0 0
        %1533 = vmatpush2.bf16.msra.mxu0 0
        %1534 = vmatprep.subr.bf16.mxu0 0
        %1535 = vmatpush2.bf16.msra.mxu0 0
        %1536 = vmatprep.mubr.bf16.mxu0 0
        %1537 = vmatmul.mubr.bf16.gmra.mxu0 %v1499
        %v1538 = vpop.f32.mrf.mxu0
        %v1539 = vadd.f32 %v1493, %v1538
        %v1540 = vpop.f32.mrf.mxu0
        %v1541 = vpop.f32.mrf.mxu0
        %v1542 = vpop.f32.mrf.mxu0
        %1543 = vdwg.mxu0
        %s1544 = scalar_lea.vmem [#allocation13], 8
        %v1545 = vld [vmem:[%s1544] sm:$0xf]
        %v1547 = vsel %vm816, %v1447, 0
        %v1550 = vsel %vm823, %v1545, 0
        %1552 = vmatprep.subr.bf16.mxu0 0
        %1553 = vmatpush1.bf16.msra.mxu0 0
        %1554 = vmatprep.subr.bf16.mxu0 0
        %1555 = vmatpush1.bf16.msra.mxu0 0
        %1556 = vmatprep.subr.bf16.mxu0 0
        %1557 = vmatpush1.bf16.msra.mxu0 0
        %1558 = vmatprep.subr.bf16.mxu0 0
        %1559 = vmatpush1.bf16.msra.mxu0 0
        %1560 = vmatprep.subr.bf16.mxu0 0
        %1561 = vmatpush1.bf16.msra.mxu0 0
        %1562 = vmatprep.subr.bf16.mxu0 0
        %1563 = vmatpush1.bf16.msra.mxu0 0
        %1564 = vmatprep.subr.bf16.mxu0 0
        %1565 = vmatpush1.bf16.msra.mxu0 0
        %1566 = vmatprep.subr.bf16.mxu0 0
        %1567 = vmatpush1.bf16.msra.mxu0 %v1550
        %1568 = vmatprep.subr.bf16.mxu0 0
        %1569 = vmatpush2.bf16.msra.mxu0 0
        %1570 = vmatprep.subr.bf16.mxu0 0
        %1571 = vmatpush2.bf16.msra.mxu0 0
        %1572 = vmatprep.subr.bf16.mxu0 0
        %1573 = vmatpush2.bf16.msra.mxu0 0
        %1574 = vmatprep.subr.bf16.mxu0 0
        %1575 = vmatpush2.bf16.msra.mxu0 0
        %1576 = vmatprep.subr.bf16.mxu0 0
        %1577 = vmatpush2.bf16.msra.mxu0 0
        %1578 = vmatprep.subr.bf16.mxu0 0
        %1579 = vmatpush2.bf16.msra.mxu0 0
        %1580 = vmatprep.subr.bf16.mxu0 0
        %1581 = vmatpush2.bf16.msra.mxu0 0
        %1582 = vmatprep.subr.bf16.mxu0 0
        %1583 = vmatpush2.bf16.msra.mxu0 0
        %1584 = vmatprep.mubr.bf16.mxu0 0
        %1585 = vmatmul.mubr.bf16.gmra.mxu0 %v1547
        %v1586 = vpop.f32.mrf.mxu0
        %v1587 = vadd.f32 0.0, %v1586
        %v1588 = vpop.f32.mrf.mxu0
        %v1589 = vpop.f32.mrf.mxu0
        %v1590 = vpop.f32.mrf.mxu0
        %1591 = vdwg.mxu0
        %v1592 = vadd.f32 %v1539, %v1587
        %s1593 = scalar_lea.vmem [#allocation13], 12
        %v1594 = vld [vmem:[%s1593] sm:$0xf]
        %v1596 = vsel %vm816, %v1448, 0
        %v1599 = vsel %vm823, %v1594, 0
        %1601 = vmatprep.subr.bf16.mxu0 0
        %1602 = vmatpush1.bf16.msra.mxu0 0
        %1603 = vmatprep.subr.bf16.mxu0 0
        %1604 = vmatpush1.bf16.msra.mxu0 0
        %1605 = vmatprep.subr.bf16.mxu0 0
        %1606 = vmatpush1.bf16.msra.mxu0 0
        %1607 = vmatprep.subr.bf16.mxu0 0
        %1608 = vmatpush1.bf16.msra.mxu0 0
        %1609 = vmatprep.subr.bf16.mxu0 0
        %1610 = vmatpush1.bf16.msra.mxu0 0
        %1611 = vmatprep.subr.bf16.mxu0 0
        %1612 = vmatpush1.bf16.msra.mxu0 0
        %1613 = vmatprep.subr.bf16.mxu0 0
        %1614 = vmatpush1.bf16.msra.mxu0 0
        %1615 = vmatprep.subr.bf16.mxu0 0
        %1616 = vmatpush1.bf16.msra.mxu0 %v1599
        %1617 = vmatprep.subr.bf16.mxu0 0
        %1618 = vmatpush2.bf16.msra.mxu0 0
        %1619 = vmatprep.subr.bf16.mxu0 0
        %1620 = vmatpush2.bf16.msra.mxu0 0
        %1621 = vmatprep.subr.bf16.mxu0 0
        %1622 = vmatpush2.bf16.msra.mxu0 0
        %1623 = vmatprep.subr.bf16.mxu0 0
        %1624 = vmatpush2.bf16.msra.mxu0 0
        %1625 = vmatprep.subr.bf16.mxu0 0
        %1626 = vmatpush2.bf16.msra.mxu0 0
        %1627 = vmatprep.subr.bf16.mxu0 0
        %1628 = vmatpush2.bf16.msra.mxu0 0
        %1629 = vmatprep.subr.bf16.mxu0 0
        %1630 = vmatpush2.bf16.msra.mxu0 0
        %1631 = vmatprep.subr.bf16.mxu0 0
        %1632 = vmatpush2.bf16.msra.mxu0 0
        %1633 = vmatprep.mubr.bf16.mxu0 0
        %1634 = vmatmul.mubr.bf16.gmra.mxu0 %v1596
        %v1635 = vpop.f32.mrf.mxu0
        %v1636 = vadd.f32 0.0, %v1635
        %v1637 = vpop.f32.mrf.mxu0
        %v1638 = vpop.f32.mrf.mxu0
        %v1639 = vpop.f32.mrf.mxu0
        %1640 = vdwg.mxu0
        %v1641 = vadd.f32 %v1592, %v1636
        %v1642 = vld [vmem:[#allocation14] sm:$0x1]
        %v1644 = vlaneseq
        %v1645 = vshrl.u32 %v1644, 7
        %v1646 = vsub.s32 0, %v1645
        %v1647 = vrot.slane %v1642, %v1646
        %v1649 = vadd.f32 %v1641, %v1647
        %v1650 = vld [vmem:[%s807] sm:$0xff]
        %v1651 = vadd.f32 %v1649, %v1650
        %v1652 = vld [vmem:[%s10] sm:$0x1]
        %v1653 = vld [vmem:[%s11] sm:$0x1]
        %vm1654 = vcmask 261120
        %v1655 = vsel %vm1654, %v1651, 0.0
        %1656 = vadd.xlane.f32.xlu0 %v1655
        %v1657 = vpop.xlane.xlu0 %1656
        %v1658 = vrcp.pop 32.0
        %v1659 = vmul.f32 %v1657, %v1658
        %v1660 = vsub.f32 %v1651, %v1659
        %v1661 = vmul.f32 %v1660, %v1660
        %v1662 = vsel %vm1654, %v1661, 0.0
        %1663 = vadd.xlane.f32.xlu0 %v1662
        %v1664 = vpop.xlane.xlu0 %1663
        %v1665 = vmul.f32 %v1664, %v1658
        %v1666 = vadd.f32 %v1665, 1e-05
        %v1667 = vrsqrt.pop %v1666
        %v1668 = vmul.f32 %v1660, %v1667
        %v1670 = vlaneseq
        %v1671 = vshrl.u32 %v1670, 7
        %v1672 = vsub.s32 0, %v1671
        %v1673 = vrot.slane %v1652, %v1672
        %v1675 = vmul.f32 %v1668, %v1673
        %v1677 = vlaneseq
        %v1678 = vshrl.u32 %v1677, 7
        %v1679 = vsub.s32 0, %v1678
        %v1680 = vrot.slane %v1653, %v1679
        %v1682 = vadd.f32 %v1675, %v1680
        %v1683 = vpack.c.bf16 %v1682, %v1682
        %v1684 = vld [vmem:[%s12] sm:$0xf]
        %v1685 = vld [vmem:[%s12 + $0x4] sm:$0xf]
        %v1686 = vld [vmem:[%s12 + $0x8] sm:$0xf]
        %v1687 = vld [vmem:[%s12 + $0xc] sm:$0xf]
        %v1688 = vld [vmem:[%s13] sm:$0x1]
        %v1690 = vlaneseq
        %v1691 = vshrl.u32 %v1690, 7
        %v1692 = vsub.s32 0, %v1691
        %v1693 = vrot.slane %v1688, %v1692
        %v1699 = vunpack.c.l.b16 %v1684
        %v1700 = vunpack.c.l.b16 %v1685
        %v1701 = vunpack.c.l.b16 %v1686
        %v1702 = vunpack.c.l.b16 %v1687
        %v1703 = vpack.c.b16 %v1700, %v1699
        %v1704 = vpack.c.b16 %v1702, %v1701
        %v1708 = vsel %vm1654, %v1683, 0
        %1710 = vmatprep.subr.bf16.mxu0 0
        %1711 = vmatpush1.bf16.msra.mxu0 0
        %1712 = vmatprep.subr.bf16.mxu0 0
        %1713 = vmatpush1.bf16.msra.mxu0 0
        %1714 = vmatprep.subr.bf16.mxu0 0
        %1715 = vmatpush1.bf16.msra.mxu0 0
        %1716 = vmatprep.subr.bf16.mxu0 0
        %1717 = vmatpush1.bf16.msra.mxu0 0
        %1718 = vmatprep.subr.bf16.mxu0 0
        %1719 = vmatpush1.bf16.msra.mxu0 0
        %1720 = vmatprep.subr.bf16.mxu0 0
        %1721 = vmatpush1.bf16.msra.mxu0 0
        %1722 = vmatprep.subr.bf16.mxu0 0
        %1723 = vmatpush1.bf16.msra.mxu0 %v1704
        %1724 = vmatprep.subr.bf16.mxu0 0
        %1725 = vmatpush1.bf16.msra.mxu0 %v1703
        %1726 = vmatprep.subr.bf16.mxu0 0
        %1727 = vmatpush2.bf16.msra.mxu0 0
        %1728 = vmatprep.subr.bf16.mxu0 0
        %1729 = vmatpush2.bf16.msra.mxu0 0
        %1730 = vmatprep.subr.bf16.mxu0 0
        %1731 = vmatpush2.bf16.msra.mxu0 0
        %1732 = vmatprep.subr.bf16.mxu0 0
        %1733 = vmatpush2.bf16.msra.mxu0 0
        %1734 = vmatprep.subr.bf16.mxu0 0
        %1735 = vmatpush2.bf16.msra.mxu0 0
        %1736 = vmatprep.subr.bf16.mxu0 0
        %1737 = vmatpush2.bf16.msra.mxu0 0
        %1738 = vmatprep.subr.bf16.mxu0 0
        %1739 = vmatpush2.bf16.msra.mxu0 0
        %1740 = vmatprep.subr.bf16.mxu0 0
        %1741 = vmatpush2.bf16.msra.mxu0 0
        %1742 = vmatprep.mubr.bf16.mxu0 0
        %1743 = vmatmul.mubr.bf16.gmra.mxu0 %v1708
        %v1744 = vpop.f32.mrf.mxu0
        %v1745 = vadd.f32 %v1693, %v1744
        %v1746 = vpop.f32.mrf.mxu0
        %v1747 = vpop.f32.mrf.mxu0
        %v1748 = vpop.f32.mrf.mxu0
        %1749 = vdwg.mxu0
        %v1750 = vmax.f32 %v1745, 0.0
        %v1751 = vpack.c.bf16 %v1750, %v1750
        %v1752 = vld [vmem:[%s14] sm:$0xf]
        %v1753 = vld [vmem:[%s14 + $0x4] sm:$0xf]
        %v1754 = vld [vmem:[%s14 + $0x8] sm:$0xf]
        %v1755 = vld [vmem:[%s14 + $0xc] sm:$0xf]
        %v1756 = vld [vmem:[%s14 + $0x10] sm:$0xf]
        %v1757 = vld [vmem:[%s14 + $0x14] sm:$0xf]
        %v1758 = vld [vmem:[%s14 + $0x18] sm:$0xf]
        %v1759 = vld [vmem:[%s14 + $0x1c] sm:$0xf]
        %v1760 = vld [vmem:[%s14 + $0x20] sm:$0xf]
        %v1761 = vld [vmem:[%s14 + $0x24] sm:$0xf]
        %v1762 = vld [vmem:[%s14 + $0x28] sm:$0xf]
        %v1763 = vld [vmem:[%s14 + $0x2c] sm:$0xf]
        %v1764 = vld [vmem:[%s14 + $0x30] sm:$0xf]
        %v1765 = vld [vmem:[%s14 + $0x34] sm:$0xf]
        %v1766 = vld [vmem:[%s14 + $0x38] sm:$0xf]
        %v1767 = vld [vmem:[%s14 + $0x3c] sm:$0xf]
        %v1768 = vld [vmem:[%s15] sm:$0x1]
        %v1770 = vlaneseq
        %v1771 = vshrl.u32 %v1770, 7
        %v1772 = vsub.s32 0, %v1771
        %v1773 = vrot.slane %v1768, %v1772
        %v1791 = vunpack.c.l.b16 %v1752
        %v1792 = vunpack.c.l.b16 %v1753
        %v1793 = vunpack.c.l.b16 %v1754
        %v1794 = vunpack.c.l.b16 %v1755
        %v1795 = vunpack.c.l.b16 %v1756
        %v1796 = vunpack.c.l.b16 %v1757
        %v1797 = vunpack.c.l.b16 %v1758
        %v1798 = vunpack.c.l.b16 %v1759
        %v1799 = vunpack.c.l.b16 %v1760
        %v1800 = vunpack.c.l.b16 %v1761
        %v1801 = vunpack.c.l.b16 %v1762
        %v1802 = vunpack.c.l.b16 %v1763
        %v1803 = vunpack.c.l.b16 %v1764
        %v1804 = vunpack.c.l.b16 %v1765
        %v1805 = vunpack.c.l.b16 %v1766
        %v1806 = vunpack.c.l.b16 %v1767
        %v1807 = vpack.c.b16 %v1792, %v1791
        %v1808 = vpack.c.b16 %v1794, %v1793
        %v1809 = vpack.c.b16 %v1796, %v1795
        %v1810 = vpack.c.b16 %v1798, %v1797
        %v1811 = vpack.c.b16 %v1800, %v1799
        %v1812 = vpack.c.b16 %v1802, %v1801
        %v1813 = vpack.c.b16 %v1804, %v1803
        %v1814 = vpack.c.b16 %v1806, %v1805
        %1823 = vmatprep.subr.bf16.mxu0 0
        %1824 = vmatpush1.bf16.msra.mxu0 %v1814
        %1825 = vmatprep.subr.bf16.mxu0 0
        %1826 = vmatpush1.bf16.msra.mxu0 %v1813
        %1827 = vmatprep.subr.bf16.mxu0 0
        %1828 = vmatpush1.bf16.msra.mxu0 %v1812
        %1829 = vmatprep.subr.bf16.mxu0 0
        %1830 = vmatpush1.bf16.msra.mxu0 %v1811
        %1831 = vmatprep.subr.bf16.mxu0 0
        %1832 = vmatpush1.bf16.msra.mxu0 %v1810
        %1833 = vmatprep.subr.bf16.mxu0 0
        %1834 = vmatpush1.bf16.msra.mxu0 %v1809
        %1835 = vmatprep.subr.bf16.mxu0 0
        %1836 = vmatpush1.bf16.msra.mxu0 %v1808
        %1837 = vmatprep.subr.bf16.mxu0 0
        %1838 = vmatpush1.bf16.msra.mxu0 %v1807
        %1839 = vmatprep.subr.bf16.mxu0 0
        %1840 = vmatpush2.bf16.msra.mxu0 0
        %1841 = vmatprep.subr.bf16.mxu0 0
        %1842 = vmatpush2.bf16.msra.mxu0 0
        %1843 = vmatprep.subr.bf16.mxu0 0
        %1844 = vmatpush2.bf16.msra.mxu0 0
        %1845 = vmatprep.subr.bf16.mxu0 0
        %1846 = vmatpush2.bf16.msra.mxu0 0
        %1847 = vmatprep.subr.bf16.mxu0 0
        %1848 = vmatpush2.bf16.msra.mxu0 0
        %1849 = vmatprep.subr.bf16.mxu0 0
        %1850 = vmatpush2.bf16.msra.mxu0 0
        %1851 = vmatprep.subr.bf16.mxu0 0
        %1852 = vmatpush2.bf16.msra.mxu0 0
        %1853 = vmatprep.subr.bf16.mxu0 0
        %1854 = vmatpush2.bf16.msra.mxu0 0
        %1855 = vmatprep.mubr.bf16.mxu0 0
        %1856 = vmatmul.mubr.bf16.gmra.mxu0 %v1751
        %v1857 = vpop.f32.mrf.mxu0
        %v1858 = vadd.f32 %v1773, %v1857
        %v1859 = vpop.f32.mrf.mxu0
        %v1860 = vpop.f32.mrf.mxu0
        %v1861 = vpop.f32.mrf.mxu0
        %1862 = vdwg.mxu0
        %v1863 = vadd.f32 %v1858, %v1682
        %v1864 = vld [vmem:[%s16] sm:$0x1]
        %v1865 = vld [vmem:[%s17] sm:$0x1]
        %v1866 = vsel %vm1654, %v1863, 0.0
        %1867 = vadd.xlane.f32.xlu0 %v1866
        %v1868 = vpop.xlane.xlu0 %1867
        %v1869 = vmul.f32 %v1868, %v1658
        %v1870 = vsub.f32 %v1863, %v1869
        %v1871 = vmul.f32 %v1870, %v1870
        %v1872 = vsel %vm1654, %v1871, 0.0
        %1873 = vadd.xlane.f32.xlu0 %v1872
        %v1874 = vpop.xlane.xlu0 %1873
        %v1875 = vmul.f32 %v1874, %v1658
        %v1876 = vadd.f32 %v1875, 1e-05
        %v1877 = vrsqrt.pop %v1876
        %v1878 = vmul.f32 %v1870, %v1877
        %v1880 = vlaneseq
        %v1881 = vshrl.u32 %v1880, 7
        %v1882 = vsub.s32 0, %v1881
        %v1883 = vrot.slane %v1864, %v1882
        %v1885 = vmul.f32 %v1878, %v1883
        %v1887 = vlaneseq
        %v1888 = vshrl.u32 %v1887, 7
        %v1889 = vsub.s32 0, %v1888
        %v1890 = vrot.slane %v1865, %v1889
        %v1892 = vadd.f32 %v1885, %v1890
        %1893 = vst.msk [vmem:[%s791] sm:$0xff] %vm1654, %v1892
        %s1894 = sand.u32 %s457, 1
        %s1895 = scalar_lea.sflag [#allocation4], %s1894
        %s1896 = sand.u32 %s457, 1
        %s1897 = smul.addr %s1896, 8
        %s1898 = scalar_lea.vmem [#allocation16], %s1897
        %s1899 = sand.u32 %s483, 1
        %s1900 = scalar_lea.sflag [#allocation18], %s1899
        %s1901 = sand.u32 %s483, 1
        %s1902 = smul.addr %s1901, 32
        %s1903 = scalar_lea.vmem [#allocation17], %s1902
        // Predicated region
        $region125: #{tpu_custom_call.1} parent=91 // pred_check
          %p1904 = pneg %p467
        $region126: #{tpu_custom_call.1} parent=91 // pred_check_branch
          %1906 = sbr.rel (%p1904) target = $region128
        $region127: #{tpu_custom_call.1} parent=91 // pred_region
          %s1908 = ssub.s32 128, 128
          %1909 = vsyncadd %s1895, %s1908
          %s1910 = smul.addr %s46, 128
          %s1911 = scalar_lea.hbm %s18, %s1910
          %s1913 = sshll.u32 %s1898, 4
          %s1914 = int_to_ptr.vmem [resolvable:$true] %s1913
          %1916 = dma.vmem_to_hbm [thread:$0]  %s1914, 128, %s1911, %s1895
        $region128: #{tpu_custom_call.1} parent=91 // pred_fallthru
          _
        // Predicated region
        $region129: #{tpu_custom_call.1} parent=91 // pred_check
          %p1917 = pneg %p493
        $region130: #{tpu_custom_call.1} parent=91 // pred_check_branch
          %1919 = sbr.rel (%p1917) target = $region132
        $region131: #{tpu_custom_call.1} parent=91 // pred_region
          %s1921 = ssub.s32 512, 512
          %1922 = vsyncadd %s1900, %s1921
          %s1923 = smul.addr %s46, 4
          %s1924 = smul.addr %s1923, 128
          %s1925 = scalar_lea.hbm %s19, %s1924
          %s1926 = sshll.u32 %s1903, 4
          %s1927 = int_to_ptr.vmem [resolvable:$true] %s1926
          %1932 = dma.vmem_to_hbm [thread:$0]  %s1927, 512, %s1925, %s1900, 128, 128, 8
        $region132: #{tpu_custom_call.1} parent=91 // pred_fallthru
          _
      $region92: #{tpu_custom_call.1} parent=5 // pred_fallthru
        _
      %p1933 = scmp.le.s32.totalorder 2, %s41
      // Predicated region
      $region133: #{tpu_custom_call.1} parent=5 // pred_check
        %p1934 = pneg %p1933
      $region134: #{tpu_custom_call.1} parent=5 // pred_check_branch
        %1936 = sbr.rel (%p1934) target = $region136
      $region135: #{tpu_custom_call.1} parent=5 // pred_region
        %s1937 = ssub.s32 %s41, 2
        // Predicated region
        $region137: #{tpu_custom_call.1} parent=135 // pred_check
          %p1938 = pneg %p473
        $region138: #{tpu_custom_call.1} parent=135 // pred_check_branch
          %1940 = sbr.rel (%p1938) target = $region140
        $region139: #{tpu_custom_call.1} parent=135 // pred_region
          %s1941 = sand.u32 %s458, 1
          %s1942 = scalar_lea.sflag [#allocation4], %s1941
          %s1943 = sand.u32 %s458, 1
          %s1944 = smul.addr %s1943, 8
          %s1945 = scalar_lea.vmem [#allocation16], %s1944
          %1946 = dma.done %s1942, 128
        $region140: #{tpu_custom_call.1} parent=135 // pred_fallthru
          _
        // Predicated region
        $region141: #{tpu_custom_call.1} parent=135 // pred_check
          %p1947 = pneg %p499
        $region142: #{tpu_custom_call.1} parent=135 // pred_check_branch
          %1949 = sbr.rel (%p1947) target = $region144
        $region143: #{tpu_custom_call.1} parent=135 // pred_region
          %s1950 = sand.u32 %s484, 1
          %s1951 = scalar_lea.sflag [#allocation18], %s1950
          %s1952 = sand.u32 %s484, 1
          %s1953 = smul.addr %s1952, 32
          %s1954 = scalar_lea.vmem [#allocation17], %s1953
          %1955 = dma.done %s1951, 512
        $region144: #{tpu_custom_call.1} parent=135 // pred_fallthru
          _
      $region136: #{tpu_custom_call.1} parent=5 // pred_fallthru
        _
    $region6: #{tpu_custom_call.1} parent=1 // loop_footer
      %s45 = sadd.s32 1, %s41
    $region7: #{tpu_custom_call.1} parent=1 // loop_footer_branch
      %40 = sbr.rel target = $region3
    $region8: #{tpu_custom_call.1} parent=1 // loop_exit
      _
    %1956 = vsyncpa [#allocation3], 1
    %s1957 = scalar_lea.sflag [#allocation3], 1
    %1958 = vsyncpa %s1957, 1
    %1959 = vsyncpa [#allocation6], 1
    %s1960 = scalar_lea.sflag [#allocation6], 1
    %1961 = vsyncpa %s1960, 1
    %1962 = vsyncpa [#allocation9], 1
    %1963 = vsyncpa [#allocation12], 1
    %1964 = vsyncpa [#allocation15], 1
    %1965 = vsyncpa [#allocation4], 1
    %s1966 = scalar_lea.sflag [#allocation4], 1
    %1967 = vsyncpa %s1966, 1
    %1968 = vsyncpa [#allocation18], 1
    %s1969 = scalar_lea.sflag [#allocation18], 1
    %1970 = vsyncpa %s1969, 1

</llo_original>
